<compile_context>
chip_gen: v6e
topology: v6e:2x2x1
jax: 0.10.0
libtpu: 0.0.40
codegen_flags: <defaults>
</compile_context>

<pallas_src>
import functools

import jax
import jax.numpy as jnp
from jax.experimental import pallas as pl
from jax.experimental.pallas import tpu as pltpu


def _layernorm(x, gamma, beta, eps=1e-5):
    mu = jnp.mean(x, axis=-1, keepdims=True)
    var = jnp.mean((x - mu) ** 2, axis=-1, keepdims=True)
    return (x - mu) * jax.lax.rsqrt(var + eps) * gamma + beta


def _gelu_exact(x):
    # PyTorch nn.GELU default (approximate='none'): 0.5 * x * (1 + erf(x / sqrt(2))).
    # NOTE: on v6e/v7x the erf over the (N, 4C) hidden can make the single EUP slot binding
    # at ViT-B sizes; switch to tanh-approx there if profiling shows it.  Kept exact to
    # match the PyTorch reference.
    return 0.5 * x * (1.0 + jax.lax.erf(x * jnp.float32(0.7071067811865476)))


def block_kernel(x_ref, g1_ref, b1_ref, wqkv_ref, wproj_ref, bproj_ref,
                 g2_ref, b2_ref, wfc1_ref, bfc1_ref, wfc2_ref, bfc2_ref,
                 o_ref, ao_ref, *, num_heads):
    bf16 = jnp.bfloat16
    x = x_ref[0].astype(jnp.float32)                                       # (N, C) f32
    N, C = x.shape
    hd = C // num_heads

    # ---- Attention branch: x + proj(MHSA(LN1(x))) ----
    xn = _layernorm(x, g1_ref[...], b1_ref[...]).astype(bf16)              # (N, C) bf16
    # Fused QKV projection: one full-width (N,C)x(C,3C) MXU matmul, f32 accumulation.
    # The 1/sqrt(hd) scale is already folded into the q columns of wqkv (host side).
    qkv = jnp.dot(xn, wqkv_ref[...], preferred_element_type=jnp.float32)   # (N, 3C) f32

    # Per-head attention on 2-D tiles (unrolled static loop): keeps the live score tensor
    # at (N, N) per head.  Head outputs land at their lane offset in the ao scratch, giving
    # the (N, C) layout PyTorch's transpose+reshape produces — no concatenate, no head-sum.
    # TODO(synk): at ViT-B scale (N~577) add a query-tile grid axis with a flash-style
    # running softmax (and a second "parallel" grid axis so both v7x TensorCores are busy
    # when B == 1); unnecessary at these test shapes.
    for h in range(num_heads):
        lo = h * hd
        qh = qkv[:, lo:lo + hd].astype(bf16)                               # (N, hd)
        kh = qkv[:, C + lo:C + lo + hd].astype(bf16)                       # (N, hd)
        vh = qkv[:, 2 * C + lo:2 * C + lo + hd].astype(bf16)               # (N, hd)

        s = jnp.einsum('nd,md->nm', qh, kh,
                       preferred_element_type=jnp.float32)                 # (N, N) f32
        s = s - jnp.max(s, axis=-1, keepdims=True)
        p = jnp.exp(s)
        p = p * pl.reciprocal(jnp.sum(p, axis=-1, keepdims=True), approx=True)
        ao_ref[:, lo:lo + hd] = jnp.dot(p.astype(bf16), vh,
                                        preferred_element_type=jnp.float32)

    ao = ao_ref[...].astype(bf16)                                          # (N, C) bf16
    proj = (jnp.dot(ao, wproj_ref[...], preferred_element_type=jnp.float32)
            + bproj_ref[...])                                              # (N, C) f32
    x1 = x + proj

    # ---- MLP branch: x1 + fc2(GELU(fc1(LN2(x1)))) ----
    x1n = _layernorm(x1, g2_ref[...], b2_ref[...]).astype(bf16)
    h1 = (jnp.dot(x1n, wfc1_ref[...], preferred_element_type=jnp.float32)
          + bfc1_ref[...])
    h1 = _gelu_exact(h1)
    h2 = (jnp.dot(h1.astype(bf16), wfc2_ref[...], preferred_element_type=jnp.float32)
          + bfc2_ref[...])

    o_ref[0] = (x1 + h2).astype(o_ref.dtype)


def prepare_params(params, num_heads):
    """One-time host-side weight prep: fold the attention scale into the q columns of the
    fused qkv weight and cast matmul weights to bf16 (MXU operands; f32 accumulation stays
    in-kernel).  Call once and reuse — do NOT redo this per forward call."""
    C = params["w_qkv"].shape[0]
    hd = C // num_heads
    scale = jnp.float32(hd ** (-0.5))
    w_qkv = params["w_qkv"].astype(jnp.float32)
    w_qkv = w_qkv.at[:, :C].multiply(scale)          # q columns are the first C outputs
    bf16 = jnp.bfloat16
    return {
        "g1": params["g1"], "b1": params["b1"],
        "w_qkv": w_qkv.astype(bf16),
        "w_proj": params["w_proj"].astype(bf16),
        "b_proj": params["b_proj"],
        "g2": params["g2"], "b2": params["b2"],
        "w_fc1": params["w_fc1"].astype(bf16),
        "b_fc1": params["b_fc1"],
        "w_fc2": params["w_fc2"].astype(bf16),
        "b_fc2": params["b_fc2"],
    }


def _vmem_limit_bytes():
    """Generation-aware VMEM budget: leave scratch headroom on v7x (64 MiB physical), allow
    large activation tiles on v5e/v6e (128 MiB).  None -> keep the compiler default."""
    try:
        cap = int(pltpu.get_tpu_info().vmem_capacity_bytes)
    except Exception:
        return None
    if cap >= 128 * 1024 * 1024:
        return 96 * 1024 * 1024
    return max(cap // 2, 16 * 1024 * 1024)


def _build_call(B, N, C, H, num_heads, out_dtype, single_buffer_weights):
    def const_spec(shape):
        n = len(shape)
        kwargs = {}
        if single_buffer_weights:
            # Weights never change across the batch grid; one VMEM buffer is enough
            # (default pipelining would double-buffer every constant block).
            kwargs["pipeline_mode"] = pl.Buffered(1)
        return pl.BlockSpec(shape, lambda b, _n=n: (0,) * _n, **kwargs)

    in_specs = [
        pl.BlockSpec((1, N, C), lambda b: (b, 0, 0)),           # x
        const_spec((1, C)), const_spec((1, C)),                 # norm1 gamma, beta
        const_spec((C, 3 * C)),                                 # fused qkv weight (qkv_bias=False)
        const_spec((C, C)), const_spec((1, C)),                 # proj weight, bias
        const_spec((1, C)), const_spec((1, C)),                 # norm2 gamma, beta
        const_spec((C, H)), const_spec((1, H)),                 # fc1 weight, bias
        const_spec((H, C)), const_spec((1, C)),                 # fc2 weight, bias
    ]

    cp_kwargs = dict(dimension_semantics=("parallel",))
    vmem_limit = _vmem_limit_bytes()
    if vmem_limit is not None:
        cp_kwargs["vmem_limit_bytes"] = vmem_limit

    return pl.pallas_call(
        functools.partial(block_kernel, num_heads=num_heads),
        out_shape=jax.ShapeDtypeStruct((B, N, C), out_dtype),
        grid=(B,),
        in_specs=in_specs,
        out_specs=pl.BlockSpec((1, N, C), lambda b: (b, 0, 0)),
        scratch_shapes=[pltpu.VMEM((N, C), jnp.float32)],       # per-batch attention output
        compiler_params=pltpu.CompilerParams(**cp_kwargs),
    )


def vit_block(x, prepared, num_heads):
    B, N, C = x.shape
    H = prepared["w_fc1"].shape[1]
    args = (x, prepared["g1"], prepared["b1"], prepared["w_qkv"],
            prepared["w_proj"], prepared["b_proj"], prepared["g2"], prepared["b2"],
            prepared["w_fc1"], prepared["b_fc1"], prepared["w_fc2"], prepared["b_fc2"])
    try:
        return _build_call(B, N, C, H, num_heads, x.dtype, True)(*args)
    except Exception:
        # Installed jax lacks BlockSpec(pipeline_mode=pl.Buffered(1)) support: fall back to
        # the default double-buffered weight pipeline (identical results, more VMEM).
        return _build_call(B, N, C, H, num_heads, x.dtype, False)(*args)


def block_ref(x, p, num_heads, matmul_dtype=jnp.float32):
    """Pure-JAX reference mirroring the PyTorch forward (eval mode).

    With matmul_dtype=bfloat16 it mimics the kernel's bf16-operand / f32-accumulation
    matmuls (tight numerical check); with float32 it is the exact f32 reference.
    """
    def ln(t, g, b):
        mu = t.mean(-1, keepdims=True)
        var = ((t - mu) ** 2).mean(-1, keepdims=True)
        return (t - mu) / jnp.sqrt(var + 1e-5) * g + b

    def mm(a, b):
        return jnp.matmul(a.astype(matmul_dtype), b.astype(matmul_dtype),
                          preferred_element_type=jnp.float32)

    B, N, C = x.shape
    hd = C // num_heads
    xn = ln(x, p["g1"], p["b1"])
    qkv = mm(xn, p["w_qkv"])                                       # (B, N, 3C)
    qkv = qkv.reshape(B, N, 3, num_heads, hd).transpose(2, 0, 3, 1, 4)
    q, k, v = qkv[0], qkv[1], qkv[2]
    attn = jax.nn.softmax(mm(q, jnp.swapaxes(k, -1, -2)) * hd ** (-0.5), axis=-1)
    out = mm(attn, v).transpose(0, 2, 1, 3).reshape(B, N, C)
    out = mm(out, p["w_proj"]) + p["b_proj"]
    x1 = x + out
    x1n = ln(x1, p["g2"], p["b2"])
    h = jax.nn.gelu(mm(x1n, p["w_fc1"]) + p["b_fc1"], approximate=False)
    h = mm(h, p["w_fc2"]) + p["b_fc2"]
    return x1 + h


if __name__ == "__main__":
    B, N, C = 2, 8, 128            # lane-dense channel dim (C multiple of 128)
    num_heads = 4                  # head_dim = 32
    mlp_ratio = 4.0
    H = int(C * mlp_ratio)

    key = jax.random.PRNGKey(0)
    ks = jax.random.split(key, 12)

    params = {
        "g1": 1.0 + 0.1 * jax.random.normal(ks[0], (1, C), jnp.float32),
        "b1": 0.1 * jax.random.normal(ks[1], (1, C), jnp.float32),
        "w_qkv": 0.1 * jax.random.normal(ks[2], (C, 3 * C), jnp.float32),   # (in, out)
        "w_proj": 0.1 * jax.random.normal(ks[3], (C, C), jnp.float32),
        "b_proj": 0.1 * jax.random.normal(ks[4], (1, C), jnp.float32),
        "g2": 1.0 + 0.1 * jax.random.normal(ks[5], (1, C), jnp.float32),
        "b2": 0.1 * jax.random.normal(ks[6], (1, C), jnp.float32),
        "w_fc1": 0.1 * jax.random.normal(ks[7], (C, H), jnp.float32),
        "b_fc1": 0.1 * jax.random.normal(ks[8], (1, H), jnp.float32),
        "w_fc2": 0.1 * jax.random.normal(ks[9], (H, C), jnp.float32),
        "b_fc2": 0.1 * jax.random.normal(ks[10], (1, C), jnp.float32),
    }

    x = jax.random.normal(ks[11], (B, N, C), jnp.float32)

    prepared = prepare_params(params, num_heads)     # host-side prep done ONCE
    out = jax.block_until_ready(vit_block(x, prepared, num_heads))
    ref_bf16 = jax.block_until_ready(block_ref(x, params, num_heads, jnp.bfloat16))
    ref_f32 = jax.block_until_ready(block_ref(x, params, num_heads, jnp.float32))

    assert out.shape == (B, N, C), out.shape
    # Tight check vs. a bf16-matmul-matched reference (validates layout / scale folding).
    assert jnp.allclose(out, ref_bf16, atol=3e-2, rtol=3e-2), \
        float(jnp.max(jnp.abs(out - ref_bf16)))
    # Loose sanity check vs. the full-f32 reference (bf16 MXU operands loosen the margin).
    assert jnp.allclose(out, ref_f32, atol=2e-1, rtol=2e-1), \
        float(jnp.max(jnp.abs(out - ref_f32)))
    print("KERNEL_OK")
</pallas_src>

<mosaic_0001>
module attributes {stable_mosaic.version = 11 : i64} {
  func.func @block_kernel(%arg0: i32, %arg1: memref<1x8x128xf32, #tpu.memory_space<vmem>>, %arg2: memref<1x128xf32, #tpu.memory_space<vmem>>, %arg3: memref<1x128xf32, #tpu.memory_space<vmem>>, %arg4: memref<128x384xbf16, #tpu.memory_space<vmem>>, %arg5: memref<128x128xbf16, #tpu.memory_space<vmem>>, %arg6: memref<1x128xf32, #tpu.memory_space<vmem>>, %arg7: memref<1x128xf32, #tpu.memory_space<vmem>>, %arg8: memref<1x128xf32, #tpu.memory_space<vmem>>, %arg9: memref<128x512xbf16, #tpu.memory_space<vmem>>, %arg10: memref<1x512xf32, #tpu.memory_space<vmem>>, %arg11: memref<512x128xbf16, #tpu.memory_space<vmem>>, %arg12: memref<1x128xf32, #tpu.memory_space<vmem>>, %arg13: memref<1x8x128xf32, #tpu.memory_space<vmem>>, %arg14: memref<8x128xf32, #tpu.memory_space<vmem>>) attributes {dimension_semantics = [#tpu.dimension_semantics<parallel>], iteration_bounds = array<i64: 2>, scalar_prefetch = 0 : i64, scratch_operands = 1 : i64, tpu.core_type = #tpu.core_type<tc>, window_params = [{transform_indices = @transform_0, window_bounds = array<i64: 1, 8, 128>}, {pipeline_mode = #tpu.pipeline_mode<synchronous>, transform_indices = @transform_1, window_bounds = array<i64: 1, 128>}, {pipeline_mode = #tpu.pipeline_mode<synchronous>, transform_indices = @transform_2, window_bounds = array<i64: 1, 128>}, {pipeline_mode = #tpu.pipeline_mode<synchronous>, transform_indices = @transform_3, window_bounds = array<i64: 128, 384>}, {pipeline_mode = #tpu.pipeline_mode<synchronous>, transform_indices = @transform_4, window_bounds = array<i64: 128, 128>}, {pipeline_mode = #tpu.pipeline_mode<synchronous>, transform_indices = @transform_5, window_bounds = array<i64: 1, 128>}, {pipeline_mode = #tpu.pipeline_mode<synchronous>, transform_indices = @transform_6, window_bounds = array<i64: 1, 128>}, {pipeline_mode = #tpu.pipeline_mode<synchronous>, transform_indices = @transform_7, window_bounds = array<i64: 1, 128>}, {pipeline_mode = #tpu.pipeline_mode<synchronous>, transform_indices = @transform_8, window_bounds = array<i64: 128, 512>}, {pipeline_mode = #tpu.pipeline_mode<synchronous>, transform_indices = @transform_9, window_bounds = array<i64: 1, 512>}, {pipeline_mode = #tpu.pipeline_mode<synchronous>, transform_indices = @transform_10, window_bounds = array<i64: 512, 128>}, {pipeline_mode = #tpu.pipeline_mode<synchronous>, transform_indices = @transform_11, window_bounds = array<i64: 1, 128>}, {transform_indices = @transform_12, window_bounds = array<i64: 1, 8, 128>}]} {
    %c0 = arith.constant 0 : index
    %c0_0 = arith.constant 0 : index
    %c0_1 = arith.constant 0 : index
    %0 = vector.load %arg1[%c0, %c0_0, %c0_1] : memref<1x8x128xf32, #tpu.memory_space<vmem>>, vector<1x8x128xf32>
    %1 = vector.shape_cast %0 : vector<1x8x128xf32> to vector<8x128xf32>
    %c0_2 = arith.constant 0 : index
    %c0_3 = arith.constant 0 : index
    %2 = vector.load %arg2[%c0_2, %c0_3] : memref<1x128xf32, #tpu.memory_space<vmem>>, vector<1x128xf32>
    %c0_4 = arith.constant 0 : index
    %c0_5 = arith.constant 0 : index
    %3 = vector.load %arg3[%c0_4, %c0_5] : memref<1x128xf32, #tpu.memory_space<vmem>>, vector<1x128xf32>
    %cst = arith.constant dense<0.000000e+00> : vector<8xf32>
    %4 = vector.multi_reduction <add>, %1, %cst [1] : vector<8x128xf32> to vector<8xf32>
    %5 = vector.shape_cast %4 : vector<8xf32> to vector<8x1xf32>
    %cst_6 = arith.constant 1.280000e+02 : f32
    %6 = vector.broadcast %cst_6 : f32 to vector<8x1xf32>
    %7 = arith.divf %5, %6 : vector<8x1xf32>
    %8 = vector.broadcast %7 : vector<8x1xf32> to vector<8x128xf32>
    %9 = arith.subf %1, %8 : vector<8x128xf32>
    %10 = arith.mulf %9, %9 : vector<8x128xf32>
    %cst_7 = arith.constant dense<0.000000e+00> : vector<8xf32>
    %11 = vector.multi_reduction <add>, %10, %cst_7 [1] : vector<8x128xf32> to vector<8xf32>
    %12 = vector.shape_cast %11 : vector<8xf32> to vector<8x1xf32>
    %cst_8 = arith.constant 1.280000e+02 : f32
    %13 = vector.broadcast %cst_8 : f32 to vector<8x1xf32>
    %14 = arith.divf %12, %13 : vector<8x1xf32>
    %15 = vector.broadcast %7 : vector<8x1xf32> to vector<8x128xf32>
    %16 = arith.subf %1, %15 : vector<8x128xf32>
    %cst_9 = arith.constant 9.99999974E-6 : f32
    %17 = vector.broadcast %cst_9 : f32 to vector<8x1xf32>
    %18 = arith.addf %14, %17 : vector<8x1xf32>
    %19 = math.rsqrt %18 : vector<8x1xf32>
    %20 = vector.broadcast %19 : vector<8x1xf32> to vector<8x128xf32>
    %21 = arith.mulf %16, %20 : vector<8x128xf32>
    %22 = vector.broadcast %2 : vector<1x128xf32> to vector<8x128xf32>
    %23 = arith.mulf %21, %22 : vector<8x128xf32>
    %24 = vector.broadcast %3 : vector<1x128xf32> to vector<8x128xf32>
    %25 = arith.addf %23, %24 : vector<8x128xf32>
    %26 = arith.truncf %25 : vector<8x128xf32> to vector<8x128xbf16>
    %c0_10 = arith.constant 0 : index
    %c0_11 = arith.constant 0 : index
    %27 = vector.load %arg4[%c0_10, %c0_11] : memref<128x384xbf16, #tpu.memory_space<vmem>>, vector<128x384xbf16>
    %cst_12 = arith.constant dense<0.000000e+00> : vector<8x384xf32>
    %28 = tpu.matmul %26, %27, %cst_12 {dimension_numbers = #tpu.dot_dimension_numbers<[1], [0], [0], [1], [0, 0, 1, 1], [], []>} : vector<8x128xbf16>, vector<128x384xbf16>, vector<8x384xf32> -> vector<8x384xf32>
    %29 = vector.extract_strided_slice %28 {offsets = [0, 0], sizes = [8, 32], strides = [1, 1]} : vector<8x384xf32> to vector<8x32xf32>
    %30 = arith.truncf %29 : vector<8x32xf32> to vector<8x32xbf16>
    %31 = vector.extract_strided_slice %28 {offsets = [0, 128], sizes = [8, 32], strides = [1, 1]} : vector<8x384xf32> to vector<8x32xf32>
    %32 = arith.truncf %31 : vector<8x32xf32> to vector<8x32xbf16>
    %33 = vector.extract_strided_slice %28 {offsets = [0, 256], sizes = [8, 32], strides = [1, 1]} : vector<8x384xf32> to vector<8x32xf32>
    %34 = arith.truncf %33 : vector<8x32xf32> to vector<8x32xbf16>
    "tpu.trace_start"() <{level = 10 : i32, message = "nd,md->nm"}> : () -> ()
    %cst_13 = arith.constant dense<0.000000e+00> : vector<8x8xf32>
    %35 = tpu.matmul %30, %32, %cst_13 {dimension_numbers = #tpu.dot_dimension_numbers<[1], [1], [0], [0], [0, 0, 1, 0], [], []>} : vector<8x32xbf16>, vector<8x32xbf16>, vector<8x8xf32> -> vector<8x8xf32>
    "tpu.trace_stop"() : () -> ()
    %cst_14 = arith.constant dense<0xFF800000> : vector<8xf32>
    %36 = vector.multi_reduction <maximumf>, %35, %cst_14 [1] : vector<8x8xf32> to vector<8xf32>
    %37 = vector.shape_cast %36 : vector<8xf32> to vector<8x1xf32>
    %38 = vector.broadcast %37 : vector<8x1xf32> to vector<8x8xf32>
    %39 = arith.subf %35, %38 : vector<8x8xf32>
    %40 = math.exp %39 : vector<8x8xf32>
    %cst_15 = arith.constant dense<0.000000e+00> : vector<8xf32>
    %41 = vector.multi_reduction <add>, %40, %cst_15 [1] : vector<8x8xf32> to vector<8xf32>
    %42 = vector.shape_cast %41 : vector<8xf32> to vector<8x1xf32>
    %43 = tpu.reciprocal %42 {approx = true} : vector<8x1xf32> -> vector<8x1xf32>
    %44 = vector.broadcast %43 : vector<8x1xf32> to vector<8x8xf32>
    %45 = arith.mulf %40, %44 : vector<8x8xf32>
    %46 = arith.truncf %45 : vector<8x8xf32> to vector<8x8xbf16>
    %cst_16 = arith.constant dense<0.000000e+00> : vector<8x32xf32>
    %47 = tpu.matmul %46, %34, %cst_16 {dimension_numbers = #tpu.dot_dimension_numbers<[1], [0], [0], [1], [0, 0, 1, 1], [], []>} : vector<8x8xbf16>, vector<8x32xbf16>, vector<8x32xf32> -> vector<8x32xf32>
    %c0_17 = arith.constant 0 : index
    %c0_18 = arith.constant 0 : index
    %48 = vector.load %arg14[%c0_17, %c0_18] : memref<8x128xf32, #tpu.memory_space<vmem>>, vector<8x32xf32>
    tpu.vector_store %arg14[%c0_17, %c0_18], %47 {strides = array<i32>} : memref<8x128xf32, #tpu.memory_space<vmem>>, vector<8x32xf32>,
    %49 = vector.extract_strided_slice %28 {offsets = [0, 32], sizes = [8, 32], strides = [1, 1]} : vector<8x384xf32> to vector<8x32xf32>
    %50 = arith.truncf %49 : vector<8x32xf32> to vector<8x32xbf16>
    %51 = vector.extract_strided_slice %28 {offsets = [0, 160], sizes = [8, 32], strides = [1, 1]} : vector<8x384xf32> to vector<8x32xf32>
    %52 = arith.truncf %51 : vector<8x32xf32> to vector<8x32xbf16>
    %53 = vector.extract_strided_slice %28 {offsets = [0, 288], sizes = [8, 32], strides = [1, 1]} : vector<8x384xf32> to vector<8x32xf32>
    %54 = arith.truncf %53 : vector<8x32xf32> to vector<8x32xbf16>
    "tpu.trace_start"() <{level = 10 : i32, message = "nd,md->nm"}> : () -> ()
    %cst_19 = arith.constant dense<0.000000e+00> : vector<8x8xf32>
    %55 = tpu.matmul %50, %52, %cst_19 {dimension_numbers = #tpu.dot_dimension_numbers<[1], [1], [0], [0], [0, 0, 1, 0], [], []>} : vector<8x32xbf16>, vector<8x32xbf16>, vector<8x8xf32> -> vector<8x8xf32>
    "tpu.trace_stop"() : () -> ()
    %cst_20 = arith.constant dense<0xFF800000> : vector<8xf32>
    %56 = vector.multi_reduction <maximumf>, %55, %cst_20 [1] : vector<8x8xf32> to vector<8xf32>
    %57 = vector.shape_cast %56 : vector<8xf32> to vector<8x1xf32>
    %58 = vector.broadcast %57 : vector<8x1xf32> to vector<8x8xf32>
    %59 = arith.subf %55, %58 : vector<8x8xf32>
    %60 = math.exp %59 : vector<8x8xf32>
    %cst_21 = arith.constant dense<0.000000e+00> : vector<8xf32>
    %61 = vector.multi_reduction <add>, %60, %cst_21 [1] : vector<8x8xf32> to vector<8xf32>
    %62 = vector.shape_cast %61 : vector<8xf32> to vector<8x1xf32>
    %63 = tpu.reciprocal %62 {approx = true} : vector<8x1xf32> -> vector<8x1xf32>
    %64 = vector.broadcast %63 : vector<8x1xf32> to vector<8x8xf32>
    %65 = arith.mulf %60, %64 : vector<8x8xf32>
    %66 = arith.truncf %65 : vector<8x8xf32> to vector<8x8xbf16>
    %cst_22 = arith.constant dense<0.000000e+00> : vector<8x32xf32>
    %67 = tpu.matmul %66, %54, %cst_22 {dimension_numbers = #tpu.dot_dimension_numbers<[1], [0], [0], [1], [0, 0, 1, 1], [], []>} : vector<8x8xbf16>, vector<8x32xbf16>, vector<8x32xf32> -> vector<8x32xf32>
    %c0_23 = arith.constant 0 : index
    %c32 = arith.constant 32 : index
    %68 = vector.load %arg14[%c0_23, %c32] : memref<8x128xf32, #tpu.memory_space<vmem>>, vector<8x32xf32>
    tpu.vector_store %arg14[%c0_23, %c32], %67 {strides = array<i32>} : memref<8x128xf32, #tpu.memory_space<vmem>>, vector<8x32xf32>,
    %69 = vector.extract_strided_slice %28 {offsets = [0, 64], sizes = [8, 32], strides = [1, 1]} : vector<8x384xf32> to vector<8x32xf32>
    %70 = arith.truncf %69 : vector<8x32xf32> to vector<8x32xbf16>
    %71 = vector.extract_strided_slice %28 {offsets = [0, 192], sizes = [8, 32], strides = [1, 1]} : vector<8x384xf32> to vector<8x32xf32>
    %72 = arith.truncf %71 : vector<8x32xf32> to vector<8x32xbf16>
    %73 = vector.extract_strided_slice %28 {offsets = [0, 320], sizes = [8, 32], strides = [1, 1]} : vector<8x384xf32> to vector<8x32xf32>
    %74 = arith.truncf %73 : vector<8x32xf32> to vector<8x32xbf16>
    "tpu.trace_start"() <{level = 10 : i32, message = "nd,md->nm"}> : () -> ()
    %cst_24 = arith.constant dense<0.000000e+00> : vector<8x8xf32>
    %75 = tpu.matmul %70, %72, %cst_24 {dimension_numbers = #tpu.dot_dimension_numbers<[1], [1], [0], [0], [0, 0, 1, 0], [], []>} : vector<8x32xbf16>, vector<8x32xbf16>, vector<8x8xf32> -> vector<8x8xf32>
    "tpu.trace_stop"() : () -> ()
    %cst_25 = arith.constant dense<0xFF800000> : vector<8xf32>
    %76 = vector.multi_reduction <maximumf>, %75, %cst_25 [1] : vector<8x8xf32> to vector<8xf32>
    %77 = vector.shape_cast %76 : vector<8xf32> to vector<8x1xf32>
    %78 = vector.broadcast %77 : vector<8x1xf32> to vector<8x8xf32>
    %79 = arith.subf %75, %78 : vector<8x8xf32>
    %80 = math.exp %79 : vector<8x8xf32>
    %cst_26 = arith.constant dense<0.000000e+00> : vector<8xf32>
    %81 = vector.multi_reduction <add>, %80, %cst_26 [1] : vector<8x8xf32> to vector<8xf32>
    %82 = vector.shape_cast %81 : vector<8xf32> to vector<8x1xf32>
    %83 = tpu.reciprocal %82 {approx = true} : vector<8x1xf32> -> vector<8x1xf32>
    %84 = vector.broadcast %83 : vector<8x1xf32> to vector<8x8xf32>
    %85 = arith.mulf %80, %84 : vector<8x8xf32>
    %86 = arith.truncf %85 : vector<8x8xf32> to vector<8x8xbf16>
    %cst_27 = arith.constant dense<0.000000e+00> : vector<8x32xf32>
    %87 = tpu.matmul %86, %74, %cst_27 {dimension_numbers = #tpu.dot_dimension_numbers<[1], [0], [0], [1], [0, 0, 1, 1], [], []>} : vector<8x8xbf16>, vector<8x32xbf16>, vector<8x32xf32> -> vector<8x32xf32>
    %c0_28 = arith.constant 0 : index
    %c64 = arith.constant 64 : index
    %88 = vector.load %arg14[%c0_28, %c64] : memref<8x128xf32, #tpu.memory_space<vmem>>, vector<8x32xf32>
    tpu.vector_store %arg14[%c0_28, %c64], %87 {strides = array<i32>} : memref<8x128xf32, #tpu.memory_space<vmem>>, vector<8x32xf32>,
    %89 = vector.extract_strided_slice %28 {offsets = [0, 96], sizes = [8, 32], strides = [1, 1]} : vector<8x384xf32> to vector<8x32xf32>
    %90 = arith.truncf %89 : vector<8x32xf32> to vector<8x32xbf16>
    %91 = vector.extract_strided_slice %28 {offsets = [0, 224], sizes = [8, 32], strides = [1, 1]} : vector<8x384xf32> to vector<8x32xf32>
    %92 = arith.truncf %91 : vector<8x32xf32> to vector<8x32xbf16>
    %93 = vector.extract_strided_slice %28 {offsets = [0, 352], sizes = [8, 32], strides = [1, 1]} : vector<8x384xf32> to vector<8x32xf32>
    %94 = arith.truncf %93 : vector<8x32xf32> to vector<8x32xbf16>
    "tpu.trace_start"() <{level = 10 : i32, message = "nd,md->nm"}> : () -> ()
    %cst_29 = arith.constant dense<0.000000e+00> : vector<8x8xf32>
    %95 = tpu.matmul %90, %92, %cst_29 {dimension_numbers = #tpu.dot_dimension_numbers<[1], [1], [0], [0], [0, 0, 1, 0], [], []>} : vector<8x32xbf16>, vector<8x32xbf16>, vector<8x8xf32> -> vector<8x8xf32>
    "tpu.trace_stop"() : () -> ()
    %cst_30 = arith.constant dense<0xFF800000> : vector<8xf32>
    %96 = vector.multi_reduction <maximumf>, %95, %cst_30 [1] : vector<8x8xf32> to vector<8xf32>
    %97 = vector.shape_cast %96 : vector<8xf32> to vector<8x1xf32>
    %98 = vector.broadcast %97 : vector<8x1xf32> to vector<8x8xf32>
    %99 = arith.subf %95, %98 : vector<8x8xf32>
    %100 = math.exp %99 : vector<8x8xf32>
    %cst_31 = arith.constant dense<0.000000e+00> : vector<8xf32>
    %101 = vector.multi_reduction <add>, %100, %cst_31 [1] : vector<8x8xf32> to vector<8xf32>
    %102 = vector.shape_cast %101 : vector<8xf32> to vector<8x1xf32>
    %103 = tpu.reciprocal %102 {approx = true} : vector<8x1xf32> -> vector<8x1xf32>
    %104 = vector.broadcast %103 : vector<8x1xf32> to vector<8x8xf32>
    %105 = arith.mulf %100, %104 : vector<8x8xf32>
    %106 = arith.truncf %105 : vector<8x8xf32> to vector<8x8xbf16>
    %cst_32 = arith.constant dense<0.000000e+00> : vector<8x32xf32>
    %107 = tpu.matmul %106, %94, %cst_32 {dimension_numbers = #tpu.dot_dimension_numbers<[1], [0], [0], [1], [0, 0, 1, 1], [], []>} : vector<8x8xbf16>, vector<8x32xbf16>, vector<8x32xf32> -> vector<8x32xf32>
    %c0_33 = arith.constant 0 : index
    %c96 = arith.constant 96 : index
    %108 = vector.load %arg14[%c0_33, %c96] : memref<8x128xf32, #tpu.memory_space<vmem>>, vector<8x32xf32>
    tpu.vector_store %arg14[%c0_33, %c96], %107 {strides = array<i32>} : memref<8x128xf32, #tpu.memory_space<vmem>>, vector<8x32xf32>,
    %c0_34 = arith.constant 0 : index
    %c0_35 = arith.constant 0 : index
    %109 = vector.load %arg14[%c0_34, %c0_35] : memref<8x128xf32, #tpu.memory_space<vmem>>, vector<8x128xf32>
    %110 = arith.truncf %109 : vector<8x128xf32> to vector<8x128xbf16>
    %c0_36 = arith.constant 0 : index
    %c0_37 = arith.constant 0 : index
    %111 = vector.load %arg5[%c0_36, %c0_37] : memref<128x128xbf16, #tpu.memory_space<vmem>>, vector<128x128xbf16>
    %cst_38 = arith.constant dense<0.000000e+00> : vector<8x128xf32>
    %112 = tpu.matmul %110, %111, %cst_38 {dimension_numbers = #tpu.dot_dimension_numbers<[1], [0], [0], [1], [0, 0, 1, 1], [], []>} : vector<8x128xbf16>, vector<128x128xbf16>, vector<8x128xf32> -> vector<8x128xf32>
    %c0_39 = arith.constant 0 : index
    %c0_40 = arith.constant 0 : index
    %113 = vector.load %arg6[%c0_39, %c0_40] : memref<1x128xf32, #tpu.memory_space<vmem>>, vector<1x128xf32>
    %114 = vector.broadcast %113 : vector<1x128xf32> to vector<8x128xf32>
    %115 = arith.addf %112, %114 : vector<8x128xf32>
    %116 = arith.addf %1, %115 : vector<8x128xf32>
    %c0_41 = arith.constant 0 : index
    %c0_42 = arith.constant 0 : index
    %117 = vector.load %arg7[%c0_41, %c0_42] : memref<1x128xf32, #tpu.memory_space<vmem>>, vector<1x128xf32>
    %c0_43 = arith.constant 0 : index
    %c0_44 = arith.constant 0 : index
    %118 = vector.load %arg8[%c0_43, %c0_44] : memref<1x128xf32, #tpu.memory_space<vmem>>, vector<1x128xf32>
    %cst_45 = arith.constant dense<0.000000e+00> : vector<8xf32>
    %119 = vector.multi_reduction <add>, %116, %cst_45 [1] : vector<8x128xf32> to vector<8xf32>
    %120 = vector.shape_cast %119 : vector<8xf32> to vector<8x1xf32>
    %cst_46 = arith.constant 1.280000e+02 : f32
    %121 = vector.broadcast %cst_46 : f32 to vector<8x1xf32>
    %122 = arith.divf %120, %121 : vector<8x1xf32>
    %123 = vector.broadcast %122 : vector<8x1xf32> to vector<8x128xf32>
    %124 = arith.subf %116, %123 : vector<8x128xf32>
    %125 = arith.mulf %124, %124 : vector<8x128xf32>
    %cst_47 = arith.constant dense<0.000000e+00> : vector<8xf32>
    %126 = vector.multi_reduction <add>, %125, %cst_47 [1] : vector<8x128xf32> to vector<8xf32>
    %127 = vector.shape_cast %126 : vector<8xf32> to vector<8x1xf32>
    %cst_48 = arith.constant 1.280000e+02 : f32
    %128 = vector.broadcast %cst_48 : f32 to vector<8x1xf32>
    %129 = arith.divf %127, %128 : vector<8x1xf32>
    %130 = vector.broadcast %122 : vector<8x1xf32> to vector<8x128xf32>
    %131 = arith.subf %116, %130 : vector<8x128xf32>
    %cst_49 = arith.constant 9.99999974E-6 : f32
    %132 = vector.broadcast %cst_49 : f32 to vector<8x1xf32>
    %133 = arith.addf %129, %132 : vector<8x1xf32>
    %134 = math.rsqrt %133 : vector<8x1xf32>
    %135 = vector.broadcast %134 : vector<8x1xf32> to vector<8x128xf32>
    %136 = arith.mulf %131, %135 : vector<8x128xf32>
    %137 = vector.broadcast %117 : vector<1x128xf32> to vector<8x128xf32>
    %138 = arith.mulf %136, %137 : vector<8x128xf32>
    %139 = vector.broadcast %118 : vector<1x128xf32> to vector<8x128xf32>
    %140 = arith.addf %138, %139 : vector<8x128xf32>
    %141 = arith.truncf %140 : vector<8x128xf32> to vector<8x128xbf16>
    %c0_50 = arith.constant 0 : index
    %c0_51 = arith.constant 0 : index
    %142 = vector.load %arg9[%c0_50, %c0_51] : memref<128x512xbf16, #tpu.memory_space<vmem>>, vector<128x512xbf16>
    %cst_52 = arith.constant dense<0.000000e+00> : vector<8x512xf32>
    %143 = tpu.matmul %141, %142, %cst_52 {dimension_numbers = #tpu.dot_dimension_numbers<[1], [0], [0], [1], [0, 0, 1, 1], [], []>} : vector<8x128xbf16>, vector<128x512xbf16>, vector<8x512xf32> -> vector<8x512xf32>
    %c0_53 = arith.constant 0 : index
    %c0_54 = arith.constant 0 : index
    %144 = vector.load %arg10[%c0_53, %c0_54] : memref<1x512xf32, #tpu.memory_space<vmem>>, vector<1x512xf32>
    %145 = vector.broadcast %144 : vector<1x512xf32> to vector<8x512xf32>
    %146 = arith.addf %143, %145 : vector<8x512xf32>
    %cst_55 = arith.constant 5.000000e-01 : f32
    %147 = vector.broadcast %cst_55 : f32 to vector<8x512xf32>
    %148 = arith.mulf %147, %146 : vector<8x512xf32>
    %cst_56 = arith.constant 0.707106769 : f32
    %149 = vector.broadcast %cst_56 : f32 to vector<8x512xf32>
    %150 = arith.mulf %146, %149 : vector<8x512xf32>
    %151 = math.erf %150 : vector<8x512xf32>
    %cst_57 = arith.constant 1.000000e+00 : f32
    %152 = vector.broadcast %cst_57 : f32 to vector<8x512xf32>
    %153 = arith.addf %152, %151 : vector<8x512xf32>
    %154 = arith.mulf %148, %153 : vector<8x512xf32>
    %155 = arith.truncf %154 : vector<8x512xf32> to vector<8x512xbf16>
    %c0_58 = arith.constant 0 : index
    %c0_59 = arith.constant 0 : index
    %156 = vector.load %arg11[%c0_58, %c0_59] : memref<512x128xbf16, #tpu.memory_space<vmem>>, vector<512x128xbf16>
    %cst_60 = arith.constant dense<0.000000e+00> : vector<8x128xf32>
    %157 = tpu.matmul %155, %156, %cst_60 {dimension_numbers = #tpu.dot_dimension_numbers<[1], [0], [0], [1], [0, 0, 1, 1], [], []>} : vector<8x512xbf16>, vector<512x128xbf16>, vector<8x128xf32> -> vector<8x128xf32>
    %c0_61 = arith.constant 0 : index
    %c0_62 = arith.constant 0 : index
    %158 = vector.load %arg12[%c0_61, %c0_62] : memref<1x128xf32, #tpu.memory_space<vmem>>, vector<1x128xf32>
    %159 = vector.broadcast %158 : vector<1x128xf32> to vector<8x128xf32>
    %160 = arith.addf %157, %159 : vector<8x128xf32>
    %161 = arith.addf %116, %160 : vector<8x128xf32>
    %c0_63 = arith.constant 0 : index
    %c0_64 = arith.constant 0 : index
    %c0_65 = arith.constant 0 : index
    %162 = vector.load %arg13[%c0_63, %c0_64, %c0_65] : memref<1x8x128xf32, #tpu.memory_space<vmem>>, vector<1x8x128xf32>
    %163 = vector.shape_cast %162 : vector<1x8x128xf32> to vector<8x128xf32>
    %164 = vector.shape_cast %161 : vector<8x128xf32> to vector<1x8x128xf32>
    tpu.vector_store %arg13[%c0_63, %c0_64, %c0_65], %164 {strides = array<i32>} : memref<1x8x128xf32, #tpu.memory_space<vmem>>, vector<1x8x128xf32>,
    return
  }
  func.func @transform_0(%arg0: i32) -> (i32, i32, i32) {
    %c0_i32 = arith.constant 0 : i32
    %c0_i32_0 = arith.constant 0 : i32
    %c0_i32_1 = arith.constant 0 : i32
    return %arg0, %c0_i32, %c0_i32_0 : i32, i32, i32
  }
  func.func @transform_1(%arg0: i32) -> (i32, i32) {
    %c0_i32 = arith.constant 0 : i32
    %c0_i32_0 = arith.constant 0 : i32
    %c0_i32_1 = arith.constant 0 : i32
    return %c0_i32, %c0_i32_0 : i32, i32
  }
  func.func @transform_2(%arg0: i32) -> (i32, i32) {
    %c0_i32 = arith.constant 0 : i32
    %c0_i32_0 = arith.constant 0 : i32
    %c0_i32_1 = arith.constant 0 : i32
    return %c0_i32, %c0_i32_0 : i32, i32
  }
  func.func @transform_3(%arg0: i32) -> (i32, i32) {
    %c0_i32 = arith.constant 0 : i32
    %c0_i32_0 = arith.constant 0 : i32
    %c0_i32_1 = arith.constant 0 : i32
    return %c0_i32, %c0_i32_0 : i32, i32
  }
  func.func @transform_4(%arg0: i32) -> (i32, i32) {
    %c0_i32 = arith.constant 0 : i32
    %c0_i32_0 = arith.constant 0 : i32
    %c0_i32_1 = arith.constant 0 : i32
    return %c0_i32, %c0_i32_0 : i32, i32
  }
  func.func @transform_5(%arg0: i32) -> (i32, i32) {
    %c0_i32 = arith.constant 0 : i32
    %c0_i32_0 = arith.constant 0 : i32
    %c0_i32_1 = arith.constant 0 : i32
    return %c0_i32, %c0_i32_0 : i32, i32
  }
  func.func @transform_6(%arg0: i32) -> (i32, i32) {
    %c0_i32 = arith.constant 0 : i32
    %c0_i32_0 = arith.constant 0 : i32
    %c0_i32_1 = arith.constant 0 : i32
    return %c0_i32, %c0_i32_0 : i32, i32
  }
  func.func @transform_7(%arg0: i32) -> (i32, i32) {
    %c0_i32 = arith.constant 0 : i32
    %c0_i32_0 = arith.constant 0 : i32
    %c0_i32_1 = arith.constant 0 : i32
    return %c0_i32, %c0_i32_0 : i32, i32
  }
  func.func @transform_8(%arg0: i32) -> (i32, i32) {
    %c0_i32 = arith.constant 0 : i32
    %c0_i32_0 = arith.constant 0 : i32
    %c0_i32_1 = arith.constant 0 : i32
    return %c0_i32, %c0_i32_0 : i32, i32
  }
  func.func @transform_9(%arg0: i32) -> (i32, i32) {
    %c0_i32 = arith.constant 0 : i32
    %c0_i32_0 = arith.constant 0 : i32
    %c0_i32_1 = arith.constant 0 : i32
    return %c0_i32, %c0_i32_0 : i32, i32
  }
  func.func @transform_10(%arg0: i32) -> (i32, i32) {
    %c0_i32 = arith.constant 0 : i32
    %c0_i32_0 = arith.constant 0 : i32
    %c0_i32_1 = arith.constant 0 : i32
    return %c0_i32, %c0_i32_0 : i32, i32
  }
  func.func @transform_11(%arg0: i32) -> (i32, i32) {
    %c0_i32 = arith.constant 0 : i32
    %c0_i32_0 = arith.constant 0 : i32
    %c0_i32_1 = arith.constant 0 : i32
    return %c0_i32, %c0_i32_0 : i32, i32
  }
  func.func @transform_12(%arg0: i32) -> (i32, i32, i32) {
    %c0_i32 = arith.constant 0 : i32
    %c0_i32_0 = arith.constant 0 : i32
    %c0_i32_1 = arith.constant 0 : i32
    return %arg0, %c0_i32, %c0_i32_0 : i32, i32, i32
  }
}

module attributes {stable_mosaic.version = 11 : i64} {
  func.func @block_kernel(%arg0: i32, %arg1: memref<1x8x128xf32, #tpu.memory_space<vmem>>, %arg2: memref<1x128xf32, #tpu.memory_space<vmem>>, %arg3: memref<1x128xf32, #tpu.memory_space<vmem>>, %arg4: memref<128x384xbf16, #tpu.memory_space<vmem>>, %arg5: memref<128x128xbf16, #tpu.memory_space<vmem>>, %arg6: memref<1x128xf32, #tpu.memory_space<vmem>>, %arg7: memref<1x128xf32, #tpu.memory_space<vmem>>, %arg8: memref<1x128xf32, #tpu.memory_space<vmem>>, %arg9: memref<128x512xbf16, #tpu.memory_space<vmem>>, %arg10: memref<1x512xf32, #tpu.memory_space<vmem>>, %arg11: memref<512x128xbf16, #tpu.memory_space<vmem>>, %arg12: memref<1x128xf32, #tpu.memory_space<vmem>>, %arg13: memref<1x8x128xf32, #tpu.memory_space<vmem>>, %arg14: memref<8x128xf32, #tpu.memory_space<vmem>>) attributes {dimension_semantics = [#tpu.dimension_semantics<parallel>], iteration_bounds = array<i64: 2>, scalar_prefetch = 0 : i64, scratch_operands = 1 : i64, tpu.core_type = #tpu.core_type<tc>, window_params = [{transform_indices = @transform_0, window_bounds = array<i64: 1, 8, 128>}, {pipeline_mode = #tpu.pipeline_mode<synchronous>, transform_indices = @transform_1, window_bounds = array<i64: 1, 128>}, {pipeline_mode = #tpu.pipeline_mode<synchronous>, transform_indices = @transform_2, window_bounds = array<i64: 1, 128>}, {pipeline_mode = #tpu.pipeline_mode<synchronous>, transform_indices = @transform_3, window_bounds = array<i64: 128, 384>}, {pipeline_mode = #tpu.pipeline_mode<synchronous>, transform_indices = @transform_4, window_bounds = array<i64: 128, 128>}, {pipeline_mode = #tpu.pipeline_mode<synchronous>, transform_indices = @transform_5, window_bounds = array<i64: 1, 128>}, {pipeline_mode = #tpu.pipeline_mode<synchronous>, transform_indices = @transform_6, window_bounds = array<i64: 1, 128>}, {pipeline_mode = #tpu.pipeline_mode<synchronous>, transform_indices = @transform_7, window_bounds = array<i64: 1, 128>}, {pipeline_mode = #tpu.pipeline_mode<synchronous>, transform_indices = @transform_8, window_bounds = array<i64: 128, 512>}, {pipeline_mode = #tpu.pipeline_mode<synchronous>, transform_indices = @transform_9, window_bounds = array<i64: 1, 512>}, {pipeline_mode = #tpu.pipeline_mode<synchronous>, transform_indices = @transform_10, window_bounds = array<i64: 512, 128>}, {pipeline_mode = #tpu.pipeline_mode<synchronous>, transform_indices = @transform_11, window_bounds = array<i64: 1, 128>}, {transform_indices = @transform_12, window_bounds = array<i64: 1, 8, 128>}]} {
    %c0 = arith.constant 0 : index
    %c0_0 = arith.constant 0 : index
    %c0_1 = arith.constant 0 : index
    %0 = vector.load %arg1[%c0, %c0_0, %c0_1] : memref<1x8x128xf32, #tpu.memory_space<vmem>>, vector<1x8x128xf32>
    %1 = vector.shape_cast %0 : vector<1x8x128xf32> to vector<8x128xf32>
    %c0_2 = arith.constant 0 : index
    %c0_3 = arith.constant 0 : index
    %2 = vector.load %arg2[%c0_2, %c0_3] : memref<1x128xf32, #tpu.memory_space<vmem>>, vector<1x128xf32>
    %c0_4 = arith.constant 0 : index
    %c0_5 = arith.constant 0 : index
    %3 = vector.load %arg3[%c0_4, %c0_5] : memref<1x128xf32, #tpu.memory_space<vmem>>, vector<1x128xf32>
    %cst = arith.constant dense<0.000000e+00> : vector<8xf32>
    %4 = vector.multi_reduction <add>, %1, %cst [1] : vector<8x128xf32> to vector<8xf32>
    %5 = vector.shape_cast %4 : vector<8xf32> to vector<8x1xf32>
    %cst_6 = arith.constant 1.280000e+02 : f32
    %6 = vector.broadcast %cst_6 : f32 to vector<8x1xf32>
    %7 = arith.divf %5, %6 : vector<8x1xf32>
    %8 = vector.broadcast %7 : vector<8x1xf32> to vector<8x128xf32>
    %9 = arith.subf %1, %8 : vector<8x128xf32>
    %10 = arith.mulf %9, %9 : vector<8x128xf32>
    %cst_7 = arith.constant dense<0.000000e+00> : vector<8xf32>
    %11 = vector.multi_reduction <add>, %10, %cst_7 [1] : vector<8x128xf32> to vector<8xf32>
    %12 = vector.shape_cast %11 : vector<8xf32> to vector<8x1xf32>
    %cst_8 = arith.constant 1.280000e+02 : f32
    %13 = vector.broadcast %cst_8 : f32 to vector<8x1xf32>
    %14 = arith.divf %12, %13 : vector<8x1xf32>
    %15 = vector.broadcast %7 : vector<8x1xf32> to vector<8x128xf32>
    %16 = arith.subf %1, %15 : vector<8x128xf32>
    %cst_9 = arith.constant 9.99999974E-6 : f32
    %17 = vector.broadcast %cst_9 : f32 to vector<8x1xf32>
    %18 = arith.addf %14, %17 : vector<8x1xf32>
    %19 = math.rsqrt %18 : vector<8x1xf32>
    %20 = vector.broadcast %19 : vector<8x1xf32> to vector<8x128xf32>
    %21 = arith.mulf %16, %20 : vector<8x128xf32>
    %22 = vector.broadcast %2 : vector<1x128xf32> to vector<8x128xf32>
    %23 = arith.mulf %21, %22 : vector<8x128xf32>
    %24 = vector.broadcast %3 : vector<1x128xf32> to vector<8x128xf32>
    %25 = arith.addf %23, %24 : vector<8x128xf32>
    %26 = arith.truncf %25 : vector<8x128xf32> to vector<8x128xbf16>
    %c0_10 = arith.constant 0 : index
    %c0_11 = arith.constant 0 : index
    %27 = vector.load %arg4[%c0_10, %c0_11] : memref<128x384xbf16, #tpu.memory_space<vmem>>, vector<128x384xbf16>
    %cst_12 = arith.constant dense<0.000000e+00> : vector<8x384xf32>
    %28 = tpu.matmul %26, %27, %cst_12 {dimension_numbers = #tpu.dot_dimension_numbers<[1], [0], [0], [1], [0, 0, 1, 1], [], []>} : vector<8x128xbf16>, vector<128x384xbf16>, vector<8x384xf32> -> vector<8x384xf32>
    %29 = vector.extract_strided_slice %28 {offsets = [0, 0], sizes = [8, 32], strides = [1, 1]} : vector<8x384xf32> to vector<8x32xf32>
    %30 = arith.truncf %29 : vector<8x32xf32> to vector<8x32xbf16>
    %31 = vector.extract_strided_slice %28 {offsets = [0, 128], sizes = [8, 32], strides = [1, 1]} : vector<8x384xf32> to vector<8x32xf32>
    %32 = arith.truncf %31 : vector<8x32xf32> to vector<8x32xbf16>
    %33 = vector.extract_strided_slice %28 {offsets = [0, 256], sizes = [8, 32], strides = [1, 1]} : vector<8x384xf32> to vector<8x32xf32>
    %34 = arith.truncf %33 : vector<8x32xf32> to vector<8x32xbf16>
    "tpu.trace_start"() <{level = 10 : i32, message = "nd,md->nm"}> : () -> ()
    %cst_13 = arith.constant dense<0.000000e+00> : vector<8x8xf32>
    %35 = tpu.matmul %30, %32, %cst_13 {dimension_numbers = #tpu.dot_dimension_numbers<[1], [1], [0], [0], [0, 0, 1, 0], [], []>} : vector<8x32xbf16>, vector<8x32xbf16>, vector<8x8xf32> -> vector<8x8xf32>
    "tpu.trace_stop"() : () -> ()
    %cst_14 = arith.constant dense<0xFF800000> : vector<8xf32>
    %36 = vector.multi_reduction <maximumf>, %35, %cst_14 [1] : vector<8x8xf32> to vector<8xf32>
    %37 = vector.shape_cast %36 : vector<8xf32> to vector<8x1xf32>
    %38 = vector.broadcast %37 : vector<8x1xf32> to vector<8x8xf32>
    %39 = arith.subf %35, %38 : vector<8x8xf32>
    %40 = math.exp %39 : vector<8x8xf32>
    %cst_15 = arith.constant dense<0.000000e+00> : vector<8xf32>
    %41 = vector.multi_reduction <add>, %40, %cst_15 [1] : vector<8x8xf32> to vector<8xf32>
    %42 = vector.shape_cast %41 : vector<8xf32> to vector<8x1xf32>
    %43 = tpu.reciprocal %42 {approx = true} : vector<8x1xf32> -> vector<8x1xf32>
    %44 = vector.broadcast %43 : vector<8x1xf32> to vector<8x8xf32>
    %45 = arith.mulf %40, %44 : vector<8x8xf32>
    %46 = arith.truncf %45 : vector<8x8xf32> to vector<8x8xbf16>
    %cst_16 = arith.constant dense<0.000000e+00> : vector<8x32xf32>
    %47 = tpu.matmul %46, %34, %cst_16 {dimension_numbers = #tpu.dot_dimension_numbers<[1], [0], [0], [1], [0, 0, 1, 1], [], []>} : vector<8x8xbf16>, vector<8x32xbf16>, vector<8x32xf32> -> vector<8x32xf32>
    %c0_17 = arith.constant 0 : index
    %c0_18 = arith.constant 0 : index
    %48 = vector.load %arg14[%c0_17, %c0_18] : memref<8x128xf32, #tpu.memory_space<vmem>>, vector<8x32xf32>
    tpu.vector_store %arg14[%c0_17, %c0_18], %47 {strides = array<i32>} : memref<8x128xf32, #tpu.memory_space<vmem>>, vector<8x32xf32>,
    %49 = vector.extract_strided_slice %28 {offsets = [0, 32], sizes = [8, 32], strides = [1, 1]} : vector<8x384xf32> to vector<8x32xf32>
    %50 = arith.truncf %49 : vector<8x32xf32> to vector<8x32xbf16>
    %51 = vector.extract_strided_slice %28 {offsets = [0, 160], sizes = [8, 32], strides = [1, 1]} : vector<8x384xf32> to vector<8x32xf32>
    %52 = arith.truncf %51 : vector<8x32xf32> to vector<8x32xbf16>
    %53 = vector.extract_strided_slice %28 {offsets = [0, 288], sizes = [8, 32], strides = [1, 1]} : vector<8x384xf32> to vector<8x32xf32>
    %54 = arith.truncf %53 : vector<8x32xf32> to vector<8x32xbf16>
    "tpu.trace_start"() <{level = 10 : i32, message = "nd,md->nm"}> : () -> ()
    %cst_19 = arith.constant dense<0.000000e+00> : vector<8x8xf32>
    %55 = tpu.matmul %50, %52, %cst_19 {dimension_numbers = #tpu.dot_dimension_numbers<[1], [1], [0], [0], [0, 0, 1, 0], [], []>} : vector<8x32xbf16>, vector<8x32xbf16>, vector<8x8xf32> -> vector<8x8xf32>
    "tpu.trace_stop"() : () -> ()
    %cst_20 = arith.constant dense<0xFF800000> : vector<8xf32>
    %56 = vector.multi_reduction <maximumf>, %55, %cst_20 [1] : vector<8x8xf32> to vector<8xf32>
    %57 = vector.shape_cast %56 : vector<8xf32> to vector<8x1xf32>
    %58 = vector.broadcast %57 : vector<8x1xf32> to vector<8x8xf32>
    %59 = arith.subf %55, %58 : vector<8x8xf32>
    %60 = math.exp %59 : vector<8x8xf32>
    %cst_21 = arith.constant dense<0.000000e+00> : vector<8xf32>
    %61 = vector.multi_reduction <add>, %60, %cst_21 [1] : vector<8x8xf32> to vector<8xf32>
    %62 = vector.shape_cast %61 : vector<8xf32> to vector<8x1xf32>
    %63 = tpu.reciprocal %62 {approx = true} : vector<8x1xf32> -> vector<8x1xf32>
    %64 = vector.broadcast %63 : vector<8x1xf32> to vector<8x8xf32>
    %65 = arith.mulf %60, %64 : vector<8x8xf32>
    %66 = arith.truncf %65 : vector<8x8xf32> to vector<8x8xbf16>
    %cst_22 = arith.constant dense<0.000000e+00> : vector<8x32xf32>
    %67 = tpu.matmul %66, %54, %cst_22 {dimension_numbers = #tpu.dot_dimension_numbers<[1], [0], [0], [1], [0, 0, 1, 1], [], []>} : vector<8x8xbf16>, vector<8x32xbf16>, vector<8x32xf32> -> vector<8x32xf32>
    %c0_23 = arith.constant 0 : index
    %c32 = arith.constant 32 : index
    %68 = vector.load %arg14[%c0_23, %c32] : memref<8x128xf32, #tpu.memory_space<vmem>>, vector<8x32xf32>
    tpu.vector_store %arg14[%c0_23, %c32], %67 {strides = array<i32>} : memref<8x128xf32, #tpu.memory_space<vmem>>, vector<8x32xf32>,
    %69 = vector.extract_strided_slice %28 {offsets = [0, 64], sizes = [8, 32], strides = [1, 1]} : vector<8x384xf32> to vector<8x32xf32>
    %70 = arith.truncf %69 : vector<8x32xf32> to vector<8x32xbf16>
    %71 = vector.extract_strided_slice %28 {offsets = [0, 192], sizes = [8, 32], strides = [1, 1]} : vector<8x384xf32> to vector<8x32xf32>
    %72 = arith.truncf %71 : vector<8x32xf32> to vector<8x32xbf16>
    %73 = vector.extract_strided_slice %28 {offsets = [0, 320], sizes = [8, 32], strides = [1, 1]} : vector<8x384xf32> to vector<8x32xf32>
    %74 = arith.truncf %73 : vector<8x32xf32> to vector<8x32xbf16>
    "tpu.trace_start"() <{level = 10 : i32, message = "nd,md->nm"}> : () -> ()
    %cst_24 = arith.constant dense<0.000000e+00> : vector<8x8xf32>
    %75 = tpu.matmul %70, %72, %cst_24 {dimension_numbers = #tpu.dot_dimension_numbers<[1], [1], [0], [0], [0, 0, 1, 0], [], []>} : vector<8x32xbf16>, vector<8x32xbf16>, vector<8x8xf32> -> vector<8x8xf32>
    "tpu.trace_stop"() : () -> ()
    %cst_25 = arith.constant dense<0xFF800000> : vector<8xf32>
    %76 = vector.multi_reduction <maximumf>, %75, %cst_25 [1] : vector<8x8xf32> to vector<8xf32>
    %77 = vector.shape_cast %76 : vector<8xf32> to vector<8x1xf32>
    %78 = vector.broadcast %77 : vector<8x1xf32> to vector<8x8xf32>
    %79 = arith.subf %75, %78 : vector<8x8xf32>
    %80 = math.exp %79 : vector<8x8xf32>
    %cst_26 = arith.constant dense<0.000000e+00> : vector<8xf32>
    %81 = vector.multi_reduction <add>, %80, %cst_26 [1] : vector<8x8xf32> to vector<8xf32>
    %82 = vector.shape_cast %81 : vector<8xf32> to vector<8x1xf32>
    %83 = tpu.reciprocal %82 {approx = true} : vector<8x1xf32> -> vector<8x1xf32>
    %84 = vector.broadcast %83 : vector<8x1xf32> to vector<8x8xf32>
    %85 = arith.mulf %80, %84 : vector<8x8xf32>
    %86 = arith.truncf %85 : vector<8x8xf32> to vector<8x8xbf16>
    %cst_27 = arith.constant dense<0.000000e+00> : vector<8x32xf32>
    %87 = tpu.matmul %86, %74, %cst_27 {dimension_numbers = #tpu.dot_dimension_numbers<[1], [0], [0], [1], [0, 0, 1, 1], [], []>} : vector<8x8xbf16>, vector<8x32xbf16>, vector<8x32xf32> -> vector<8x32xf32>
    %c0_28 = arith.constant 0 : index
    %c64 = arith.constant 64 : index
    %88 = vector.load %arg14[%c0_28, %c64] : memref<8x128xf32, #tpu.memory_space<vmem>>, vector<8x32xf32>
    tpu.vector_store %arg14[%c0_28, %c64], %87 {strides = array<i32>} : memref<8x128xf32, #tpu.memory_space<vmem>>, vector<8x32xf32>,
    %89 = vector.extract_strided_slice %28 {offsets = [0, 96], sizes = [8, 32], strides = [1, 1]} : vector<8x384xf32> to vector<8x32xf32>
    %90 = arith.truncf %89 : vector<8x32xf32> to vector<8x32xbf16>
    %91 = vector.extract_strided_slice %28 {offsets = [0, 224], sizes = [8, 32], strides = [1, 1]} : vector<8x384xf32> to vector<8x32xf32>
    %92 = arith.truncf %91 : vector<8x32xf32> to vector<8x32xbf16>
    %93 = vector.extract_strided_slice %28 {offsets = [0, 352], sizes = [8, 32], strides = [1, 1]} : vector<8x384xf32> to vector<8x32xf32>
    %94 = arith.truncf %93 : vector<8x32xf32> to vector<8x32xbf16>
    "tpu.trace_start"() <{level = 10 : i32, message = "nd,md->nm"}> : () -> ()
    %cst_29 = arith.constant dense<0.000000e+00> : vector<8x8xf32>
    %95 = tpu.matmul %90, %92, %cst_29 {dimension_numbers = #tpu.dot_dimension_numbers<[1], [1], [0], [0], [0, 0, 1, 0], [], []>} : vector<8x32xbf16>, vector<8x32xbf16>, vector<8x8xf32> -> vector<8x8xf32>
    "tpu.trace_stop"() : () -> ()
    %cst_30 = arith.constant dense<0xFF800000> : vector<8xf32>
    %96 = vector.multi_reduction <maximumf>, %95, %cst_30 [1] : vector<8x8xf32> to vector<8xf32>
    %97 = vector.shape_cast %96 : vector<8xf32> to vector<8x1xf32>
    %98 = vector.broadcast %97 : vector<8x1xf32> to vector<8x8xf32>
    %99 = arith.subf %95, %98 : vector<8x8xf32>
    %100 = math.exp %99 : vector<8x8xf32>
    %cst_31 = arith.constant dense<0.000000e+00> : vector<8xf32>
    %101 = vector.multi_reduction <add>, %100, %cst_31 [1] : vector<8x8xf32> to vector<8xf32>
    %102 = vector.shape_cast %101 : vector<8xf32> to vector<8x1xf32>
    %103 = tpu.reciprocal %102 {approx = true} : vector<8x1xf32> -> vector<8x1xf32>
    %104 = vector.broadcast %103 : vector<8x1xf32> to vector<8x8xf32>
    %105 = arith.mulf %100, %104 : vector<8x8xf32>
    %106 = arith.truncf %105 : vector<8x8xf32> to vector<8x8xbf16>
    %cst_32 = arith.constant dense<0.000000e+00> : vector<8x32xf32>
    %107 = tpu.matmul %106, %94, %cst_32 {dimension_numbers = #tpu.dot_dimension_numbers<[1], [0], [0], [1], [0, 0, 1, 1], [], []>} : vector<8x8xbf16>, vector<8x32xbf16>, vector<8x32xf32> -> vector<8x32xf32>
    %c0_33 = arith.constant 0 : index
    %c96 = arith.constant 96 : index
    %108 = vector.load %arg14[%c0_33, %c96] : memref<8x128xf32, #tpu.memory_space<vmem>>, vector<8x32xf32>
    tpu.vector_store %arg14[%c0_33, %c96], %107 {strides = array<i32>} : memref<8x128xf32, #tpu.memory_space<vmem>>, vector<8x32xf32>,
    %c0_34 = arith.constant 0 : index
    %c0_35 = arith.constant 0 : index
    %109 = vector.load %arg14[%c0_34, %c0_35] : memref<8x128xf32, #tpu.memory_space<vmem>>, vector<8x128xf32>
    %110 = arith.truncf %109 : vector<8x128xf32> to vector<8x128xbf16>
    %c0_36 = arith.constant 0 : index
    %c0_37 = arith.constant 0 : index
    %111 = vector.load %arg5[%c0_36, %c0_37] : memref<128x128xbf16, #tpu.memory_space<vmem>>, vector<128x128xbf16>
    %cst_38 = arith.constant dense<0.000000e+00> : vector<8x128xf32>
    %112 = tpu.matmul %110, %111, %cst_38 {dimension_numbers = #tpu.dot_dimension_numbers<[1], [0], [0], [1], [0, 0, 1, 1], [], []>} : vector<8x128xbf16>, vector<128x128xbf16>, vector<8x128xf32> -> vector<8x128xf32>
    %c0_39 = arith.constant 0 : index
    %c0_40 = arith.constant 0 : index
    %113 = vector.load %arg6[%c0_39, %c0_40] : memref<1x128xf32, #tpu.memory_space<vmem>>, vector<1x128xf32>
    %114 = vector.broadcast %113 : vector<1x128xf32> to vector<8x128xf32>
    %115 = arith.addf %112, %114 : vector<8x128xf32>
    %116 = arith.addf %1, %115 : vector<8x128xf32>
    %c0_41 = arith.constant 0 : index
    %c0_42 = arith.constant 0 : index
    %117 = vector.load %arg7[%c0_41, %c0_42] : memref<1x128xf32, #tpu.memory_space<vmem>>, vector<1x128xf32>
    %c0_43 = arith.constant 0 : index
    %c0_44 = arith.constant 0 : index
    %118 = vector.load %arg8[%c0_43, %c0_44] : memref<1x128xf32, #tpu.memory_space<vmem>>, vector<1x128xf32>
    %cst_45 = arith.constant dense<0.000000e+00> : vector<8xf32>
    %119 = vector.multi_reduction <add>, %116, %cst_45 [1] : vector<8x128xf32> to vector<8xf32>
    %120 = vector.shape_cast %119 : vector<8xf32> to vector<8x1xf32>
    %cst_46 = arith.constant 1.280000e+02 : f32
    %121 = vector.broadcast %cst_46 : f32 to vector<8x1xf32>
    %122 = arith.divf %120, %121 : vector<8x1xf32>
    %123 = vector.broadcast %122 : vector<8x1xf32> to vector<8x128xf32>
    %124 = arith.subf %116, %123 : vector<8x128xf32>
    %125 = arith.mulf %124, %124 : vector<8x128xf32>
    %cst_47 = arith.constant dense<0.000000e+00> : vector<8xf32>
    %126 = vector.multi_reduction <add>, %125, %cst_47 [1] : vector<8x128xf32> to vector<8xf32>
    %127 = vector.shape_cast %126 : vector<8xf32> to vector<8x1xf32>
    %cst_48 = arith.constant 1.280000e+02 : f32
    %128 = vector.broadcast %cst_48 : f32 to vector<8x1xf32>
    %129 = arith.divf %127, %128 : vector<8x1xf32>
    %130 = vector.broadcast %122 : vector<8x1xf32> to vector<8x128xf32>
    %131 = arith.subf %116, %130 : vector<8x128xf32>
    %cst_49 = arith.constant 9.99999974E-6 : f32
    %132 = vector.broadcast %cst_49 : f32 to vector<8x1xf32>
    %133 = arith.addf %129, %132 : vector<8x1xf32>
    %134 = math.rsqrt %133 : vector<8x1xf32>
    %135 = vector.broadcast %134 : vector<8x1xf32> to vector<8x128xf32>
    %136 = arith.mulf %131, %135 : vector<8x128xf32>
    %137 = vector.broadcast %117 : vector<1x128xf32> to vector<8x128xf32>
    %138 = arith.mulf %136, %137 : vector<8x128xf32>
    %139 = vector.broadcast %118 : vector<1x128xf32> to vector<8x128xf32>
    %140 = arith.addf %138, %139 : vector<8x128xf32>
    %141 = arith.truncf %140 : vector<8x128xf32> to vector<8x128xbf16>
    %c0_50 = arith.constant 0 : index
    %c0_51 = arith.constant 0 : index
    %142 = vector.load %arg9[%c0_50, %c0_51] : memref<128x512xbf16, #tpu.memory_space<vmem>>, vector<128x512xbf16>
    %cst_52 = arith.constant dense<0.000000e+00> : vector<8x512xf32>
    %143 = tpu.matmul %141, %142, %cst_52 {dimension_numbers = #tpu.dot_dimension_numbers<[1], [0], [0], [1], [0, 0, 1, 1], [], []>} : vector<8x128xbf16>, vector<128x512xbf16>, vector<8x512xf32> -> vector<8x512xf32>
    %c0_53 = arith.constant 0 : index
    %c0_54 = arith.constant 0 : index
    %144 = vector.load %arg10[%c0_53, %c0_54] : memref<1x512xf32, #tpu.memory_space<vmem>>, vector<1x512xf32>
    %145 = vector.broadcast %144 : vector<1x512xf32> to vector<8x512xf32>
    %146 = arith.addf %143, %145 : vector<8x512xf32>
    %cst_55 = arith.constant 5.000000e-01 : f32
    %147 = vector.broadcast %cst_55 : f32 to vector<8x512xf32>
    %148 = arith.mulf %147, %146 : vector<8x512xf32>
    %cst_56 = arith.constant 0.707106769 : f32
    %149 = vector.broadcast %cst_56 : f32 to vector<8x512xf32>
    %150 = arith.mulf %146, %149 : vector<8x512xf32>
    %151 = math.erf %150 : vector<8x512xf32>
    %cst_57 = arith.constant 1.000000e+00 : f32
    %152 = vector.broadcast %cst_57 : f32 to vector<8x512xf32>
    %153 = arith.addf %152, %151 : vector<8x512xf32>
    %154 = arith.mulf %148, %153 : vector<8x512xf32>
    %155 = arith.truncf %154 : vector<8x512xf32> to vector<8x512xbf16>
    %c0_58 = arith.constant 0 : index
    %c0_59 = arith.constant 0 : index
    %156 = vector.load %arg11[%c0_58, %c0_59] : memref<512x128xbf16, #tpu.memory_space<vmem>>, vector<512x128xbf16>
    %cst_60 = arith.constant dense<0.000000e+00> : vector<8x128xf32>
    %157 = tpu.matmul %155, %156, %cst_60 {dimension_numbers = #tpu.dot_dimension_numbers<[1], [0], [0], [1], [0, 0, 1, 1], [], []>} : vector<8x512xbf16>, vector<512x128xbf16>, vector<8x128xf32> -> vector<8x128xf32>
    %c0_61 = arith.constant 0 : index
    %c0_62 = arith.constant 0 : index
    %158 = vector.load %arg12[%c0_61, %c0_62] : memref<1x128xf32, #tpu.memory_space<vmem>>, vector<1x128xf32>
    %159 = vector.broadcast %158 : vector<1x128xf32> to vector<8x128xf32>
    %160 = arith.addf %157, %159 : vector<8x128xf32>
    %161 = arith.addf %116, %160 : vector<8x128xf32>
    %c0_63 = arith.constant 0 : index
    %c0_64 = arith.constant 0 : index
    %c0_65 = arith.constant 0 : index
    %162 = vector.load %arg13[%c0_63, %c0_64, %c0_65] : memref<1x8x128xf32, #tpu.memory_space<vmem>>, vector<1x8x128xf32>
    %163 = vector.shape_cast %162 : vector<1x8x128xf32> to vector<8x128xf32>
    %164 = vector.shape_cast %161 : vector<8x128xf32> to vector<1x8x128xf32>
    tpu.vector_store %arg13[%c0_63, %c0_64, %c0_65], %164 {strides = array<i32>} : memref<1x8x128xf32, #tpu.memory_space<vmem>>, vector<1x8x128xf32>,
    return
  }
  func.func @transform_0(%arg0: i32) -> (i32, i32, i32) {
    %c0_i32 = arith.constant 0 : i32
    %c0_i32_0 = arith.constant 0 : i32
    %c0_i32_1 = arith.constant 0 : i32
    return %arg0, %c0_i32, %c0_i32_0 : i32, i32, i32
  }
  func.func @transform_1(%arg0: i32) -> (i32, i32) {
    %c0_i32 = arith.constant 0 : i32
    %c0_i32_0 = arith.constant 0 : i32
    %c0_i32_1 = arith.constant 0 : i32
    return %c0_i32, %c0_i32_0 : i32, i32
  }
  func.func @transform_2(%arg0: i32) -> (i32, i32) {
    %c0_i32 = arith.constant 0 : i32
    %c0_i32_0 = arith.constant 0 : i32
    %c0_i32_1 = arith.constant 0 : i32
    return %c0_i32, %c0_i32_0 : i32, i32
  }
  func.func @transform_3(%arg0: i32) -> (i32, i32) {
    %c0_i32 = arith.constant 0 : i32
    %c0_i32_0 = arith.constant 0 : i32
    %c0_i32_1 = arith.constant 0 : i32
    return %c0_i32, %c0_i32_0 : i32, i32
  }
  func.func @transform_4(%arg0: i32) -> (i32, i32) {
    %c0_i32 = arith.constant 0 : i32
    %c0_i32_0 = arith.constant 0 : i32
    %c0_i32_1 = arith.constant 0 : i32
    return %c0_i32, %c0_i32_0 : i32, i32
  }
  func.func @transform_5(%arg0: i32) -> (i32, i32) {
    %c0_i32 = arith.constant 0 : i32
    %c0_i32_0 = arith.constant 0 : i32
    %c0_i32_1 = arith.constant 0 : i32
    return %c0_i32, %c0_i32_0 : i32, i32
  }
  func.func @transform_6(%arg0: i32) -> (i32, i32) {
    %c0_i32 = arith.constant 0 : i32
    %c0_i32_0 = arith.constant 0 : i32
    %c0_i32_1 = arith.constant 0 : i32
    return %c0_i32, %c0_i32_0 : i32, i32
  }
  func.func @transform_7(%arg0: i32) -> (i32, i32) {
    %c0_i32 = arith.constant 0 : i32
    %c0_i32_0 = arith.constant 0 : i32
    %c0_i32_1 = arith.constant 0 : i32
    return %c0_i32, %c0_i32_0 : i32, i32
  }
  func.func @transform_8(%arg0: i32) -> (i32, i32) {
    %c0_i32 = arith.constant 0 : i32
    %c0_i32_0 = arith.constant 0 : i32
    %c0_i32_1 = arith.constant 0 : i32
    return %c0_i32, %c0_i32_0 : i32, i32
  }
  func.func @transform_9(%arg0: i32) -> (i32, i32) {
    %c0_i32 = arith.constant 0 : i32
    %c0_i32_0 = arith.constant 0 : i32
    %c0_i32_1 = arith.constant 0 : i32
    return %c0_i32, %c0_i32_0 : i32, i32
  }
  func.func @transform_10(%arg0: i32) -> (i32, i32) {
    %c0_i32 = arith.constant 0 : i32
    %c0_i32_0 = arith.constant 0 : i32
    %c0_i32_1 = arith.constant 0 : i32
    return %c0_i32, %c0_i32_0 : i32, i32
  }
  func.func @transform_11(%arg0: i32) -> (i32, i32) {
    %c0_i32 = arith.constant 0 : i32
    %c0_i32_0 = arith.constant 0 : i32
    %c0_i32_1 = arith.constant 0 : i32
    return %c0_i32, %c0_i32_0 : i32, i32
  }
  func.func @transform_12(%arg0: i32) -> (i32, i32, i32) {
    %c0_i32 = arith.constant 0 : i32
    %c0_i32_0 = arith.constant 0 : i32
    %c0_i32_1 = arith.constant 0 : i32
    return %arg0, %c0_i32, %c0_i32_0 : i32, i32, i32
  }
}

</mosaic_0001>

<llo_original>
// kernel: tpu_custom_call.1
$region0: #{tpu_custom_call.1}
  #allocation0 [shape = 'u32[]', space=smem, size = 0x4, offset = 0x4, fixed_abs, tag = 'smem constant byte address 0x4 - core index']
  #allocation1 [shape = 'u32[144,128]{1,0:T(1,128)}', space=vmem, size = 0x12000, scoped, tag = 'internal scratch']
  #allocation2 [shape = 'f32[8,128]{1,0:T(8,128)}', space=vmem, size = 0x1000, scoped, tag = 'scratch operand']
  %s0 = inlined_call_operand.hbm [shape: f32[2,8,128], index: 0, kind: input, shape index: {}]
  %s1 = inlined_call_operand.vmem [shape: f32[1,128], index: 1, kind: input, shape index: {}]
  %s2 = inlined_call_operand.vmem [shape: f32[1,128], index: 2, kind: input, shape index: {}]
  %s3 = inlined_call_operand.hbm [shape: bf16[128,384], index: 3, kind: input, shape index: {}]
  %s4 = inlined_call_operand.hbm [shape: bf16[128,128], index: 4, kind: input, shape index: {}]
  %s5 = inlined_call_operand.vmem [shape: f32[1,128], index: 5, kind: input, shape index: {}]
  %s6 = inlined_call_operand.vmem [shape: f32[1,128], index: 6, kind: input, shape index: {}]
  %s7 = inlined_call_operand.vmem [shape: f32[1,128], index: 7, kind: input, shape index: {}]
  %s8 = inlined_call_operand.hbm [shape: bf16[128,512], index: 8, kind: input, shape index: {}]
  %s9 = inlined_call_operand.vmem [shape: f32[1,512], index: 9, kind: input, shape index: {}]
  %s10 = inlined_call_operand.hbm [shape: bf16[512,128], index: 10, kind: input, shape index: {}]
  %s11 = inlined_call_operand.vmem [shape: f32[1,128], index: 11, kind: input, shape index: {}]
  %s12 = inlined_call_operand.hbm [shape: f32[2,8,128], index: 12, kind: output, shape index: {}]
  %s13 = sld [smem:[#allocation0]]
  $region101: #{tpu_custom_call.1} parent=0
    _
  %s15 = ssub.s32 1, %s13
  %s16 = scalar_select 0, %s15, %s13
  $region1: #{tpu_custom_call.1} parent=0
    #allocation3 [shape = 'u8[8192]{0}', space=vmem, size = 0x2000, scoped, tag = 'input window, operand 0']
    #allocation4 [shape = 's32[2]{0}', space=sflag, size = 0x8, scoped, tag = 'scoped memory for tpu_custom_call.1']
    #allocation5 [shape = 's32[2]{0}', space=sflag, size = 0x8, scoped, tag = 'scoped memory for tpu_custom_call.1']
    #allocation6 [shape = 'u8[98304]{0}', space=vmem, size = 0x18000, scoped, tag = 'input window, operand 3, single buffered']
    #allocation7 [shape = 's32[1]{0}', space=sflag, size = 0x4, scoped, tag = 'scoped memory for tpu_custom_call.1']
    #allocation8 [shape = 'u8[32768]{0}', space=vmem, size = 0x8000, scoped, tag = 'input window, operand 4, single buffered']
    #allocation9 [shape = 'u8[131072]{0}', space=vmem, size = 0x20000, scoped, tag = 'input window, operand 8, single buffered']
    #allocation10 [shape = 's32[1]{0}', space=sflag, size = 0x4, scoped, tag = 'scoped memory for tpu_custom_call.1']
    #allocation11 [shape = 'u8[131072]{0}', space=vmem, size = 0x20000, scoped, tag = 'input window, operand 10, single buffered']
    #allocation12 [shape = 'u8[8192]{0}', space=vmem, size = 0x2000, scoped, tag = 'output window, operand 0']
    %17 = vsyncpa [#allocation4], 0
    %s18 = scalar_lea.sflag [#allocation4], 1
    %19 = vsyncpa %s18, 0
    %20 = vsyncpa [#allocation7], 0
    %21 = vsyncpa [#allocation10], 0
    %22 = vsyncpa [#allocation5], 0
    %s23 = scalar_lea.sflag [#allocation5], 1
    %24 = vsyncpa %s23, 0
    loop: start=0, step=1, limit=4
    $region2: #{tpu_custom_call.1} parent=1 // loop_pre_header
      _
    $region3: #{tpu_custom_call.1} parent=1 // loop_header
      %s26 = sphi 0, %s30
      %p27 = scmp.ge.s32.totalorder %s26, 4
      %s36 = sphi 0, %s38
      %s39 = sphi 0, %s36
      %s40 = sphi 0, %s39
      %s56 = sphi 0, %s40
      %s60 = sphi 0, %s60
      %s62 = sphi 0, %s60
      %s63 = sphi 0, %s62
      %s77 = sphi 0, %s63
      %s81 = sphi 0, %s81
      %s83 = sphi 0, %s81
      %s84 = sphi 0, %s83
      %s98 = sphi 0, %s84
      %s102 = sphi 0, %s102
      %s104 = sphi 0, %s102
      %s105 = sphi 0, %s104
      %s119 = sphi 0, %s105
      %s123 = sphi 0, %s123
      %s125 = sphi 0, %s123
      %s126 = sphi 0, %s125
      %s140 = sphi 0, %s126
      %s144 = sphi 0, %s144
      %s146 = sphi 0, %s144
      %s147 = sphi 0, %s146
      %s161 = sphi 0, %s147
      %s165 = sphi 0, %s165
      %s167 = sphi 0, %s165
      %s168 = sphi 0, %s167
      %s182 = sphi 0, %s168
      %s186 = sphi 0, %s186
      %s188 = sphi 0, %s186
      %s189 = sphi 0, %s188
      %s203 = sphi 0, %s189
      %s207 = sphi 0, %s207
      %s209 = sphi 0, %s207
      %s210 = sphi 0, %s209
      %s224 = sphi 0, %s210
      %s228 = sphi 0, %s228
      %s230 = sphi 0, %s228
      %s231 = sphi 0, %s230
      %s245 = sphi 0, %s231
      %s249 = sphi 0, %s249
      %s251 = sphi 0, %s249
      %s252 = sphi 0, %s251
      %s266 = sphi 0, %s252
      %s270 = sphi 0, %s270
      %s272 = sphi 0, %s270
      %s273 = sphi 0, %s272
      %s287 = sphi 0, %s273
      %s293 = sphi 0, %s295
      %s296 = sphi 0, %s293
      %s297 = sphi 0, %s296
      %s313 = sphi 0, %s297
    $region4: #{tpu_custom_call.1} parent=1 // loop_header_branch
      %29 = sbr.rel (%p27) target = $region8
    $region5: #{tpu_custom_call.1} parent=1 // loop_body
      %s31 = ssub.s32 %s26, 1
      %s32 = ssub.s32 %s26, 2
      %s33 = sadd.s32 %s26, 1
      %s34 = ssub.s32 %s26, %s33
      %p35 = scmp.eq.s32.totalorder %s34, 0
      %s37 = sadd.s32 %s36, 1
      %s38 = scalar_select %p35, %s36, %s37
      %p41 = pneg %p35
      %p42 = scmp.eq.s32.totalorder %s26, 1
      %p43 = por %p41, %p42
      %p44 = scmp.ne.s32.totalorder %s36, %s39
      %p45 = scmp.eq.s32.totalorder %s26, 0
      %p46 = por %p44, %p45
      %p47 = scmp.ne.s32.totalorder %s36, %s39
      %p48 = scmp.eq.s32.totalorder %s31, 1
      %p49 = por %p47, %p48
      %p50 = scmp.ne.s32.totalorder %s39, %s40
      %p51 = scmp.eq.s32.totalorder %s31, 0
      %p52 = por %p50, %p51
      %p53 = scmp.ne.s32.totalorder %s39, %s40
      %p54 = scmp.eq.s32.totalorder %s32, 1
      %p55 = por %p53, %p54
      %p57 = scmp.ne.s32.totalorder %s40, %s56
      %p58 = scmp.eq.s32.totalorder %s32, 0
      %p59 = por %p57, %p58
      %s61 = sadd.s32 %s60, 1
      %p64 = scmp.eq.s32.totalorder %s26, 1
      %p65 = scmp.ne.s32.totalorder %s60, %s62
      %p66 = scmp.eq.s32.totalorder %s26, 0
      %p67 = por %p65, %p66
      %p68 = scmp.ne.s32.totalorder %s60, %s62
      %p69 = scmp.eq.s32.totalorder %s31, 1
      %p70 = por %p68, %p69
      %p71 = scmp.ne.s32.totalorder %s62, %s63
      %p72 = scmp.eq.s32.totalorder %s31, 0
      %p73 = por %p71, %p72
      %p74 = scmp.ne.s32.totalorder %s62, %s63
      %p75 = scmp.eq.s32.totalorder %s32, 1
      %p76 = por %p74, %p75
      %p78 = scmp.ne.s32.totalorder %s63, %s77
      %p79 = scmp.eq.s32.totalorder %s32, 0
      %p80 = por %p78, %p79
      %s82 = sadd.s32 %s81, 1
      %p85 = scmp.eq.s32.totalorder %s26, 1
      %p86 = scmp.ne.s32.totalorder %s81, %s83
      %p87 = scmp.eq.s32.totalorder %s26, 0
      %p88 = por %p86, %p87
      %p89 = scmp.ne.s32.totalorder %s81, %s83
      %p90 = scmp.eq.s32.totalorder %s31, 1
      %p91 = por %p89, %p90
      %p92 = scmp.ne.s32.totalorder %s83, %s84
      %p93 = scmp.eq.s32.totalorder %s31, 0
      %p94 = por %p92, %p93
      %p95 = scmp.ne.s32.totalorder %s83, %s84
      %p96 = scmp.eq.s32.totalorder %s32, 1
      %p97 = por %p95, %p96
      %p99 = scmp.ne.s32.totalorder %s84, %s98
      %p100 = scmp.eq.s32.totalorder %s32, 0
      %p101 = por %p99, %p100
      %s103 = sadd.s32 %s102, 1
      %p106 = scmp.eq.s32.totalorder %s26, 1
      %p107 = scmp.ne.s32.totalorder %s102, %s104
      %p108 = scmp.eq.s32.totalorder %s26, 0
      %p109 = por %p107, %p108
      %p110 = scmp.ne.s32.totalorder %s102, %s104
      %p111 = scmp.eq.s32.totalorder %s31, 1
      %p112 = por %p110, %p111
      %p113 = scmp.ne.s32.totalorder %s104, %s105
      %p114 = scmp.eq.s32.totalorder %s31, 0
      %p115 = por %p113, %p114
      %p116 = scmp.ne.s32.totalorder %s104, %s105
      %p117 = scmp.eq.s32.totalorder %s32, 1
      %p118 = por %p116, %p117
      %p120 = scmp.ne.s32.totalorder %s105, %s119
      %p121 = scmp.eq.s32.totalorder %s32, 0
      %p122 = por %p120, %p121
      %s124 = sadd.s32 %s123, 1
      %p127 = scmp.eq.s32.totalorder %s26, 1
      %p128 = scmp.ne.s32.totalorder %s123, %s125
      %p129 = scmp.eq.s32.totalorder %s26, 0
      %p130 = por %p128, %p129
      %p131 = scmp.ne.s32.totalorder %s123, %s125
      %p132 = scmp.eq.s32.totalorder %s31, 1
      %p133 = por %p131, %p132
      %p134 = scmp.ne.s32.totalorder %s125, %s126
      %p135 = scmp.eq.s32.totalorder %s31, 0
      %p136 = por %p134, %p135
      %p137 = scmp.ne.s32.totalorder %s125, %s126
      %p138 = scmp.eq.s32.totalorder %s32, 1
      %p139 = por %p137, %p138
      %p141 = scmp.ne.s32.totalorder %s126, %s140
      %p142 = scmp.eq.s32.totalorder %s32, 0
      %p143 = por %p141, %p142
      %s145 = sadd.s32 %s144, 1
      %p148 = scmp.eq.s32.totalorder %s26, 1
      %p149 = scmp.ne.s32.totalorder %s144, %s146
      %p150 = scmp.eq.s32.totalorder %s26, 0
      %p151 = por %p149, %p150
      %p152 = scmp.ne.s32.totalorder %s144, %s146
      %p153 = scmp.eq.s32.totalorder %s31, 1
      %p154 = por %p152, %p153
      %p155 = scmp.ne.s32.totalorder %s146, %s147
      %p156 = scmp.eq.s32.totalorder %s31, 0
      %p157 = por %p155, %p156
      %p158 = scmp.ne.s32.totalorder %s146, %s147
      %p159 = scmp.eq.s32.totalorder %s32, 1
      %p160 = por %p158, %p159
      %p162 = scmp.ne.s32.totalorder %s147, %s161
      %p163 = scmp.eq.s32.totalorder %s32, 0
      %p164 = por %p162, %p163
      %s166 = sadd.s32 %s165, 1
      %p169 = scmp.eq.s32.totalorder %s26, 1
      %p170 = scmp.ne.s32.totalorder %s165, %s167
      %p171 = scmp.eq.s32.totalorder %s26, 0
      %p172 = por %p170, %p171
      %p173 = scmp.ne.s32.totalorder %s165, %s167
      %p174 = scmp.eq.s32.totalorder %s31, 1
      %p175 = por %p173, %p174
      %p176 = scmp.ne.s32.totalorder %s167, %s168
      %p177 = scmp.eq.s32.totalorder %s31, 0
      %p178 = por %p176, %p177
      %p179 = scmp.ne.s32.totalorder %s167, %s168
      %p180 = scmp.eq.s32.totalorder %s32, 1
      %p181 = por %p179, %p180
      %p183 = scmp.ne.s32.totalorder %s168, %s182
      %p184 = scmp.eq.s32.totalorder %s32, 0
      %p185 = por %p183, %p184
      %s187 = sadd.s32 %s186, 1
      %p190 = scmp.eq.s32.totalorder %s26, 1
      %p191 = scmp.ne.s32.totalorder %s186, %s188
      %p192 = scmp.eq.s32.totalorder %s26, 0
      %p193 = por %p191, %p192
      %p194 = scmp.ne.s32.totalorder %s186, %s188
      %p195 = scmp.eq.s32.totalorder %s31, 1
      %p196 = por %p194, %p195
      %p197 = scmp.ne.s32.totalorder %s188, %s189
      %p198 = scmp.eq.s32.totalorder %s31, 0
      %p199 = por %p197, %p198
      %p200 = scmp.ne.s32.totalorder %s188, %s189
      %p201 = scmp.eq.s32.totalorder %s32, 1
      %p202 = por %p200, %p201
      %p204 = scmp.ne.s32.totalorder %s189, %s203
      %p205 = scmp.eq.s32.totalorder %s32, 0
      %p206 = por %p204, %p205
      %s208 = sadd.s32 %s207, 1
      %p211 = scmp.eq.s32.totalorder %s26, 1
      %p212 = scmp.ne.s32.totalorder %s207, %s209
      %p213 = scmp.eq.s32.totalorder %s26, 0
      %p214 = por %p212, %p213
      %p215 = scmp.ne.s32.totalorder %s207, %s209
      %p216 = scmp.eq.s32.totalorder %s31, 1
      %p217 = por %p215, %p216
      %p218 = scmp.ne.s32.totalorder %s209, %s210
      %p219 = scmp.eq.s32.totalorder %s31, 0
      %p220 = por %p218, %p219
      %p221 = scmp.ne.s32.totalorder %s209, %s210
      %p222 = scmp.eq.s32.totalorder %s32, 1
      %p223 = por %p221, %p222
      %p225 = scmp.ne.s32.totalorder %s210, %s224
      %p226 = scmp.eq.s32.totalorder %s32, 0
      %p227 = por %p225, %p226
      %s229 = sadd.s32 %s228, 1
      %p232 = scmp.eq.s32.totalorder %s26, 1
      %p233 = scmp.ne.s32.totalorder %s228, %s230
      %p234 = scmp.eq.s32.totalorder %s26, 0
      %p235 = por %p233, %p234
      %p236 = scmp.ne.s32.totalorder %s228, %s230
      %p237 = scmp.eq.s32.totalorder %s31, 1
      %p238 = por %p236, %p237
      %p239 = scmp.ne.s32.totalorder %s230, %s231
      %p240 = scmp.eq.s32.totalorder %s31, 0
      %p241 = por %p239, %p240
      %p242 = scmp.ne.s32.totalorder %s230, %s231
      %p243 = scmp.eq.s32.totalorder %s32, 1
      %p244 = por %p242, %p243
      %p246 = scmp.ne.s32.totalorder %s231, %s245
      %p247 = scmp.eq.s32.totalorder %s32, 0
      %p248 = por %p246, %p247
      %s250 = sadd.s32 %s249, 1
      %p253 = scmp.eq.s32.totalorder %s26, 1
      %p254 = scmp.ne.s32.totalorder %s249, %s251
      %p255 = scmp.eq.s32.totalorder %s26, 0
      %p256 = por %p254, %p255
      %p257 = scmp.ne.s32.totalorder %s249, %s251
      %p258 = scmp.eq.s32.totalorder %s31, 1
      %p259 = por %p257, %p258
      %p260 = scmp.ne.s32.totalorder %s251, %s252
      %p261 = scmp.eq.s32.totalorder %s31, 0
      %p262 = por %p260, %p261
      %p263 = scmp.ne.s32.totalorder %s251, %s252
      %p264 = scmp.eq.s32.totalorder %s32, 1
      %p265 = por %p263, %p264
      %p267 = scmp.ne.s32.totalorder %s252, %s266
      %p268 = scmp.eq.s32.totalorder %s32, 0
      %p269 = por %p267, %p268
      %s271 = sadd.s32 %s270, 1
      %p274 = scmp.eq.s32.totalorder %s26, 1
      %p275 = scmp.ne.s32.totalorder %s270, %s272
      %p276 = scmp.eq.s32.totalorder %s26, 0
      %p277 = por %p275, %p276
      %p278 = scmp.ne.s32.totalorder %s270, %s272
      %p279 = scmp.eq.s32.totalorder %s31, 1
      %p280 = por %p278, %p279
      %p281 = scmp.ne.s32.totalorder %s272, %s273
      %p282 = scmp.eq.s32.totalorder %s31, 0
      %p283 = por %p281, %p282
      %p284 = scmp.ne.s32.totalorder %s272, %s273
      %p285 = scmp.eq.s32.totalorder %s32, 1
      %p286 = por %p284, %p285
      %p288 = scmp.ne.s32.totalorder %s273, %s287
      %p289 = scmp.eq.s32.totalorder %s32, 0
      %p290 = por %p288, %p289
      %s291 = ssub.s32 %s26, %s33
      %p292 = scmp.eq.s32.totalorder %s291, 0
      %s294 = sadd.s32 %s293, 1
      %s295 = scalar_select %p292, %s293, %s294
      %p298 = pneg %p292
      %p299 = scmp.eq.s32.totalorder %s26, 1
      %p300 = por %p298, %p299
      %p301 = scmp.ne.s32.totalorder %s293, %s296
      %p302 = scmp.eq.s32.totalorder %s26, 0
      %p303 = por %p301, %p302
      %p304 = scmp.ne.s32.totalorder %s293, %s296
      %p305 = scmp.eq.s32.totalorder %s31, 1
      %p306 = por %p304, %p305
      %p307 = scmp.ne.s32.totalorder %s296, %s297
      %p308 = scmp.eq.s32.totalorder %s31, 0
      %p309 = por %p307, %p308
      %p310 = scmp.ne.s32.totalorder %s296, %s297
      %p311 = scmp.eq.s32.totalorder %s32, 1
      %p312 = por %p310, %p311
      %p314 = scmp.ne.s32.totalorder %s297, %s313
      %p315 = scmp.eq.s32.totalorder %s32, 0
      %p316 = por %p314, %p315
      %p317 = scmp.le.s32.totalorder 1, %s26
      %p318 = scmp.lt.s32.totalorder %s26, 3
      %p319 = pnand %p317, %p318
      %p320 = pneg %p319
      // Predicated region
      $region9: #{tpu_custom_call.1} parent=5 // pred_check
        _
      $region10: #{tpu_custom_call.1} parent=5 // pred_check_branch
        %322 = sbr.rel (%p319) target = $region12
      $region11: #{tpu_custom_call.1} parent=5 // pred_region
        %s323 = ssub.s32 %s26, 1
        // Predicated region
        $region13: #{tpu_custom_call.1} parent=11 // pred_check
          %p324 = pneg %p73
        $region14: #{tpu_custom_call.1} parent=11 // pred_check_branch
          %326 = sbr.rel (%p324) target = $region16
        $region15: #{tpu_custom_call.1} parent=11 // pred_region
          _
        $region16: #{tpu_custom_call.1} parent=11 // pred_fallthru
          _
        // Predicated region
        $region17: #{tpu_custom_call.1} parent=11 // pred_check
          %p327 = pneg %p94
        $region18: #{tpu_custom_call.1} parent=11 // pred_check_branch
          %329 = sbr.rel (%p327) target = $region20
        $region19: #{tpu_custom_call.1} parent=11 // pred_region
          _
        $region20: #{tpu_custom_call.1} parent=11 // pred_fallthru
          _
        // Predicated region
        $region21: #{tpu_custom_call.1} parent=11 // pred_check
          %p330 = pneg %p115
        $region22: #{tpu_custom_call.1} parent=11 // pred_check_branch
          %332 = sbr.rel (%p330) target = $region24
        $region23: #{tpu_custom_call.1} parent=11 // pred_region
          %s334 = ssub.s32 3072, 3072
          %335 = vsyncadd [#allocation7], %s334
          %s336 = sshll.u32 [#allocation6], 4
          %s337 = int_to_ptr.vmem [resolvable:$true] %s336
          %342 = dma.hbm_to_vmem [thread:$0]  %s3, 3072, %s337, [#allocation7], 192, 192, 12
        $region24: #{tpu_custom_call.1} parent=11 // pred_fallthru
          _
        // Predicated region
        $region25: #{tpu_custom_call.1} parent=11 // pred_check
          %p343 = pneg %p136
        $region26: #{tpu_custom_call.1} parent=11 // pred_check_branch
          %345 = sbr.rel (%p343) target = $region28
        $region27: #{tpu_custom_call.1} parent=11 // pred_region
          %s347 = ssub.s32 1024, 1024
          %348 = vsyncadd [#allocation7], %s347
          %s349 = sshll.u32 [#allocation8], 4
          %s350 = int_to_ptr.vmem [resolvable:$true] %s349
          %355 = dma.hbm_to_vmem [thread:$0]  %s4, 1024, %s350, [#allocation7], 64, 64, 4
        $region28: #{tpu_custom_call.1} parent=11 // pred_fallthru
          _
        // Predicated region
        $region29: #{tpu_custom_call.1} parent=11 // pred_check
          %p356 = pneg %p157
        $region30: #{tpu_custom_call.1} parent=11 // pred_check_branch
          %358 = sbr.rel (%p356) target = $region32
        $region31: #{tpu_custom_call.1} parent=11 // pred_region
          _
        $region32: #{tpu_custom_call.1} parent=11 // pred_fallthru
          _
        // Predicated region
        $region33: #{tpu_custom_call.1} parent=11 // pred_check
          %p359 = pneg %p178
        $region34: #{tpu_custom_call.1} parent=11 // pred_check_branch
          %361 = sbr.rel (%p359) target = $region36
        $region35: #{tpu_custom_call.1} parent=11 // pred_region
          _
        $region36: #{tpu_custom_call.1} parent=11 // pred_fallthru
          _
        // Predicated region
        $region37: #{tpu_custom_call.1} parent=11 // pred_check
          %p362 = pneg %p199
        $region38: #{tpu_custom_call.1} parent=11 // pred_check_branch
          %364 = sbr.rel (%p362) target = $region40
        $region39: #{tpu_custom_call.1} parent=11 // pred_region
          _
        $region40: #{tpu_custom_call.1} parent=11 // pred_fallthru
          _
        // Predicated region
        $region41: #{tpu_custom_call.1} parent=11 // pred_check
          %p365 = pneg %p220
        $region42: #{tpu_custom_call.1} parent=11 // pred_check_branch
          %367 = sbr.rel (%p365) target = $region44
        $region43: #{tpu_custom_call.1} parent=11 // pred_region
          %s369 = ssub.s32 4096, 4096
          %370 = vsyncadd [#allocation10], %s369
          %s371 = sshll.u32 [#allocation9], 4
          %s372 = int_to_ptr.vmem [resolvable:$true] %s371
          %377 = dma.hbm_to_vmem [thread:$0]  %s8, 4096, %s372, [#allocation10], 256, 256, 16
        $region44: #{tpu_custom_call.1} parent=11 // pred_fallthru
          _
        // Predicated region
        $region45: #{tpu_custom_call.1} parent=11 // pred_check
          %p378 = pneg %p241
        $region46: #{tpu_custom_call.1} parent=11 // pred_check_branch
          %380 = sbr.rel (%p378) target = $region48
        $region47: #{tpu_custom_call.1} parent=11 // pred_region
          _
        $region48: #{tpu_custom_call.1} parent=11 // pred_fallthru
          _
        // Predicated region
        $region49: #{tpu_custom_call.1} parent=11 // pred_check
          %p381 = pneg %p262
        $region50: #{tpu_custom_call.1} parent=11 // pred_check_branch
          %383 = sbr.rel (%p381) target = $region52
        $region51: #{tpu_custom_call.1} parent=11 // pred_region
          %s385 = ssub.s32 4096, 4096
          %386 = vsyncadd [#allocation10], %s385
          %s387 = sshll.u32 [#allocation11], 4
          %s388 = int_to_ptr.vmem [resolvable:$true] %s387
          %393 = dma.hbm_to_vmem [thread:$0]  %s10, 4096, %s388, [#allocation10], 64, 64, 4
        $region52: #{tpu_custom_call.1} parent=11 // pred_fallthru
          _
        // Predicated region
        $region53: #{tpu_custom_call.1} parent=11 // pred_check
          %p394 = pneg %p283
        $region54: #{tpu_custom_call.1} parent=11 // pred_check_branch
          %396 = sbr.rel (%p394) target = $region56
        $region55: #{tpu_custom_call.1} parent=11 // pred_region
          _
        $region56: #{tpu_custom_call.1} parent=11 // pred_fallthru
          _
      $region12: #{tpu_custom_call.1} parent=5 // pred_fallthru
        _
      %p397 = scmp.lt.s32.totalorder %s26, 2
      // Predicated region
      $region57: #{tpu_custom_call.1} parent=5 // pred_check
        %p398 = pneg %p397
      $region58: #{tpu_custom_call.1} parent=5 // pred_check_branch
        %400 = sbr.rel (%p398) target = $region60
      $region59: #{tpu_custom_call.1} parent=5 // pred_region
        // Predicated region
        $region61: #{tpu_custom_call.1} parent=59 // pred_check
          %p401 = pneg %p46
        $region62: #{tpu_custom_call.1} parent=59 // pred_check_branch
          %403 = sbr.rel (%p401) target = $region64
        $region63: #{tpu_custom_call.1} parent=59 // pred_region
          %s404 = sand.u32 %s36, 1
          %s405 = scalar_lea.sflag [#allocation4], %s404
          %s406 = sand.u32 %s36, 1
          %s407 = smul.addr %s406, 8
          %s408 = scalar_lea.vmem [#allocation3], %s407
          %s410 = ssub.s32 128, 128
          %411 = vsyncadd %s405, %s410
          %s412 = smul.addr %s26, 128
          %s413 = scalar_lea.hbm %s0, %s412
          %s415 = sshll.u32 %s408, 4
          %s416 = int_to_ptr.vmem [resolvable:$true] %s415
          %418 = dma.hbm_to_vmem [thread:$0]  %s413, 128, %s416, %s405
        $region64: #{tpu_custom_call.1} parent=59 // pred_fallthru
          _
      $region60: #{tpu_custom_call.1} parent=5 // pred_fallthru
        _
      %p419 = scmp.le.s32.totalorder 1, %s26
      %p420 = scmp.lt.s32.totalorder %s26, 3
      %p421 = pnand %p419, %p420
      %p422 = pneg %p421
      // Predicated region
      $region65: #{tpu_custom_call.1} parent=5 // pred_check
        _
      $region66: #{tpu_custom_call.1} parent=5 // pred_check_branch
        %424 = sbr.rel (%p421) target = $region68
      $region67: #{tpu_custom_call.1} parent=5 // pred_region
        %s425 = ssub.s32 %s26, 1
        %s426 = sand.u32 %s39, 1
        %s427 = scalar_lea.sflag [#allocation4], %s426
        %s428 = sand.u32 %s39, 1
        %s429 = smul.addr %s428, 8
        %s430 = scalar_lea.vmem [#allocation3], %s429
        // Predicated region
        $region69: #{tpu_custom_call.1} parent=67 // pred_check
          %p431 = pneg %p52
        $region70: #{tpu_custom_call.1} parent=67 // pred_check_branch
          %433 = sbr.rel (%p431) target = $region72
        $region71: #{tpu_custom_call.1} parent=67 // pred_region
          %434 = dma.done %s427, 128
        $region72: #{tpu_custom_call.1} parent=67 // pred_fallthru
          _
        // Predicated region
        $region73: #{tpu_custom_call.1} parent=67 // pred_check
          %p435 = pneg %p115
        $region74: #{tpu_custom_call.1} parent=67 // pred_check_branch
          %437 = sbr.rel (%p435) target = $region76
        $region75: #{tpu_custom_call.1} parent=67 // pred_region
          %438 = dma.done [#allocation7], 3072
        $region76: #{tpu_custom_call.1} parent=67 // pred_fallthru
          _
        // Predicated region
        $region77: #{tpu_custom_call.1} parent=67 // pred_check
          %p439 = pneg %p136
        $region78: #{tpu_custom_call.1} parent=67 // pred_check_branch
          %441 = sbr.rel (%p439) target = $region80
        $region79: #{tpu_custom_call.1} parent=67 // pred_region
          %442 = dma.done [#allocation7], 1024
        $region80: #{tpu_custom_call.1} parent=67 // pred_fallthru
          _
        // Predicated region
        $region81: #{tpu_custom_call.1} parent=67 // pred_check
          %p443 = pneg %p220
        $region82: #{tpu_custom_call.1} parent=67 // pred_check_branch
          %445 = sbr.rel (%p443) target = $region84
        $region83: #{tpu_custom_call.1} parent=67 // pred_region
          %446 = dma.done [#allocation10], 4096
        $region84: #{tpu_custom_call.1} parent=67 // pred_fallthru
          _
        // Predicated region
        $region85: #{tpu_custom_call.1} parent=67 // pred_check
          %p447 = pneg %p262
        $region86: #{tpu_custom_call.1} parent=67 // pred_check_branch
          %449 = sbr.rel (%p447) target = $region88
        $region87: #{tpu_custom_call.1} parent=67 // pred_region
          %450 = dma.done [#allocation10], 4096
        $region88: #{tpu_custom_call.1} parent=67 // pred_fallthru
          _
        %s451 = sand.u32 %s39, 1
        %s452 = scalar_lea.sflag [#allocation4], %s451
        %s453 = sand.u32 %s39, 1
        %s454 = smul.addr %s453, 8
        %s455 = scalar_lea.vmem [#allocation3], %s454
        %p456 = pneg %p52
        %p457 = pneg %p49
        %p458 = pneg %p73
        %p459 = pneg %p70
        %p460 = pneg %p94
        %p461 = pneg %p91
        %p462 = pneg %p115
        %p463 = pneg %p112
        %p464 = pneg %p136
        %p465 = pneg %p133
        %p466 = pneg %p157
        %p467 = pneg %p154
        %p468 = pneg %p178
        %p469 = pneg %p175
        %p470 = pneg %p199
        %p471 = pneg %p196
        %p472 = pneg %p220
        %p473 = pneg %p217
        %p474 = pneg %p241
        %p475 = pneg %p238
        %p476 = pneg %p262
        %p477 = pneg %p259
        %p478 = pneg %p283
        %p479 = pneg %p280
        %p480 = pneg %p309
        %p481 = pneg %p306
        %s482 = sand.u32 %s296, 1
        %s483 = scalar_lea.sflag [#allocation5], %s482
        %s484 = sand.u32 %s296, 1
        %s485 = smul.addr %s484, 8
        %s486 = scalar_lea.vmem [#allocation12], %s485
        %v488 = vld [vmem:[%s430] sm:$0xff]
        %v489 = vld [vmem:[%s1] sm:$0x1]
        %v490 = vld [vmem:[%s2] sm:$0x1]
        %491 = vadd.xlane.f32.xlu0 %v488
        %v492 = vpop.xlane.xlu0 %491
        %v493 = vrcp.pop 128.0
        %v494 = vmul.f32 %v492, %v493
        %v495 = vsub.f32 %v488, %v494
        %v496 = vmul.f32 %v495, %v495
        %497 = vadd.xlane.f32.xlu0 %v496
        %v498 = vpop.xlane.xlu0 %497
        %v499 = vmul.f32 %v498, %v493
        %v500 = vadd.f32 %v499, 1e-05
        %v501 = vrsqrt.pop %v500
        %v502 = vmul.f32 %v495, %v501
        %v504 = vlaneseq
        %v505 = vshrl.u32 %v504, 7
        %v506 = vsub.s32 0, %v505
        %v507 = vrot.slane %v489, %v506
        %v509 = vmul.f32 %v502, %v507
        %v511 = vlaneseq
        %v512 = vshrl.u32 %v511, 7
        %v513 = vsub.s32 0, %v512
        %v514 = vrot.slane %v490, %v513
        %v516 = vadd.f32 %v509, %v514
        %v517 = vpack.c.bf16 %v516, %v516
        %v518 = vld [vmem:[#allocation6] sm:$0xff]
        %v519 = vld [vmem:[#allocation6 + $0x8] sm:$0xf]
        %v520 = vld [vmem:[#allocation6 + $0xc] sm:$0xff]
        %v521 = vld [vmem:[#allocation6 + $0x14] sm:$0xf]
        %v522 = vld [vmem:[#allocation6 + $0x18] sm:$0xff]
        %v523 = vld [vmem:[#allocation6 + $0x20] sm:$0xf]
        %v524 = vld [vmem:[#allocation6 + $0x24] sm:$0xff]
        %v525 = vld [vmem:[#allocation6 + $0x2c] sm:$0xf]
        %v526 = vld [vmem:[#allocation6 + $0x30] sm:$0xff]
        %v527 = vld [vmem:[#allocation6 + $0x38] sm:$0xf]
        %v528 = vld [vmem:[#allocation6 + $0x3c] sm:$0xff]
        %v529 = vld [vmem:[#allocation6 + $0x44] sm:$0xf]
        %v530 = vld [vmem:[#allocation6 + $0x48] sm:$0xff]
        %v531 = vld [vmem:[#allocation6 + $0x50] sm:$0xf]
        %v532 = vld [vmem:[#allocation6 + $0x54] sm:$0xff]
        %v533 = vld [vmem:[#allocation6 + $0x5c] sm:$0xf]
        %v534 = vld [vmem:[#allocation6 + $0x60] sm:$0xff]
        %v535 = vld [vmem:[#allocation6 + $0x68] sm:$0xf]
        %v536 = vld [vmem:[#allocation6 + $0x6c] sm:$0xff]
        %v537 = vld [vmem:[#allocation6 + $0x74] sm:$0xf]
        %v538 = vld [vmem:[#allocation6 + $0x78] sm:$0xff]
        %v539 = vld [vmem:[#allocation6 + $0x80] sm:$0xf]
        %v540 = vld [vmem:[#allocation6 + $0x84] sm:$0xff]
        %v541 = vld [vmem:[#allocation6 + $0x8c] sm:$0xf]
        %v542 = vld [vmem:[#allocation6 + $0x90] sm:$0xff]
        %v543 = vld [vmem:[#allocation6 + $0x98] sm:$0xf]
        %v544 = vld [vmem:[#allocation6 + $0x9c] sm:$0xff]
        %v545 = vld [vmem:[#allocation6 + $0xa4] sm:$0xf]
        %v546 = vld [vmem:[#allocation6 + $0xa8] sm:$0xff]
        %v547 = vld [vmem:[#allocation6 + $0xb0] sm:$0xf]
        %v548 = vld [vmem:[#allocation6 + $0xb4] sm:$0xff]
        %v549 = vld [vmem:[#allocation6 + $0xbc] sm:$0xf]
        %v582 = vunpack.c.l.b16 %v518
        %v583 = vunpack.c.h.b16 %v518
        %v584 = vunpack.c.l.b16 %v519
        %v585 = vunpack.c.l.b16 %v520
        %v586 = vunpack.c.h.b16 %v520
        %v587 = vunpack.c.l.b16 %v521
        %v588 = vunpack.c.l.b16 %v522
        %v589 = vunpack.c.h.b16 %v522
        %v590 = vunpack.c.l.b16 %v523
        %v591 = vunpack.c.l.b16 %v524
        %v592 = vunpack.c.h.b16 %v524
        %v593 = vunpack.c.l.b16 %v525
        %v594 = vunpack.c.l.b16 %v526
        %v595 = vunpack.c.h.b16 %v526
        %v596 = vunpack.c.l.b16 %v527
        %v597 = vunpack.c.l.b16 %v528
        %v598 = vunpack.c.h.b16 %v528
        %v599 = vunpack.c.l.b16 %v529
        %v600 = vunpack.c.l.b16 %v530
        %v601 = vunpack.c.h.b16 %v530
        %v602 = vunpack.c.l.b16 %v531
        %v603 = vunpack.c.l.b16 %v532
        %v604 = vunpack.c.h.b16 %v532
        %v605 = vunpack.c.l.b16 %v533
        %v606 = vunpack.c.l.b16 %v534
        %v607 = vunpack.c.h.b16 %v534
        %v608 = vunpack.c.l.b16 %v535
        %v609 = vunpack.c.l.b16 %v536
        %v610 = vunpack.c.h.b16 %v536
        %v611 = vunpack.c.l.b16 %v537
        %v612 = vunpack.c.l.b16 %v538
        %v613 = vunpack.c.h.b16 %v538
        %v614 = vunpack.c.l.b16 %v539
        %v615 = vunpack.c.l.b16 %v540
        %v616 = vunpack.c.h.b16 %v540
        %v617 = vunpack.c.l.b16 %v541
        %v618 = vunpack.c.l.b16 %v542
        %v619 = vunpack.c.h.b16 %v542
        %v620 = vunpack.c.l.b16 %v543
        %v621 = vunpack.c.l.b16 %v544
        %v622 = vunpack.c.h.b16 %v544
        %v623 = vunpack.c.l.b16 %v545
        %v624 = vunpack.c.l.b16 %v546
        %v625 = vunpack.c.h.b16 %v546
        %v626 = vunpack.c.l.b16 %v547
        %v627 = vunpack.c.l.b16 %v548
        %v628 = vunpack.c.h.b16 %v548
        %v629 = vunpack.c.l.b16 %v549
        %v630 = vpack.c.b16 %v585, %v582
        %v631 = vpack.c.b16 %v586, %v583
        %v632 = vpack.c.b16 %v587, %v584
        %v633 = vpack.c.b16 %v591, %v588
        %v634 = vpack.c.b16 %v592, %v589
        %v635 = vpack.c.b16 %v593, %v590
        %v636 = vpack.c.b16 %v597, %v594
        %v637 = vpack.c.b16 %v598, %v595
        %v638 = vpack.c.b16 %v599, %v596
        %v639 = vpack.c.b16 %v603, %v600
        %v640 = vpack.c.b16 %v604, %v601
        %v641 = vpack.c.b16 %v605, %v602
        %v642 = vpack.c.b16 %v609, %v606
        %v643 = vpack.c.b16 %v610, %v607
        %v644 = vpack.c.b16 %v611, %v608
        %v645 = vpack.c.b16 %v615, %v612
        %v646 = vpack.c.b16 %v616, %v613
        %v647 = vpack.c.b16 %v617, %v614
        %v648 = vpack.c.b16 %v621, %v618
        %v649 = vpack.c.b16 %v622, %v619
        %v650 = vpack.c.b16 %v623, %v620
        %v651 = vpack.c.b16 %v627, %v624
        %v652 = vpack.c.b16 %v628, %v625
        %v653 = vpack.c.b16 %v629, %v626
        %678 = vmatprep.subr.bf16.mxu0 %v652
        %679 = vmatpush1.bf16.msra.mxu0 %v651
        %680 = vmatprep.subr.bf16.mxu0 %v649
        %681 = vmatpush1.bf16.msra.mxu0 %v648
        %682 = vmatprep.subr.bf16.mxu0 %v646
        %683 = vmatpush1.bf16.msra.mxu0 %v645
        %684 = vmatprep.subr.bf16.mxu0 %v643
        %685 = vmatpush1.bf16.msra.mxu0 %v642
        %686 = vmatprep.subr.bf16.mxu0 %v640
        %687 = vmatpush1.bf16.msra.mxu0 %v639
        %688 = vmatprep.subr.bf16.mxu0 %v637
        %689 = vmatpush1.bf16.msra.mxu0 %v636
        %690 = vmatprep.subr.bf16.mxu0 %v634
        %691 = vmatpush1.bf16.msra.mxu0 %v633
        %692 = vmatprep.subr.bf16.mxu0 %v631
        %693 = vmatpush1.bf16.msra.mxu0 %v630
        %694 = vmatprep.subr.bf16.mxu0 0
        %695 = vmatpush2.bf16.msra.mxu0 0
        %696 = vmatprep.subr.bf16.mxu0 0
        %697 = vmatpush2.bf16.msra.mxu0 0
        %698 = vmatprep.subr.bf16.mxu0 0
        %699 = vmatpush2.bf16.msra.mxu0 0
        %700 = vmatprep.subr.bf16.mxu0 0
        %701 = vmatpush2.bf16.msra.mxu0 0
        %702 = vmatprep.subr.bf16.mxu0 0
        %703 = vmatpush2.bf16.msra.mxu0 0
        %704 = vmatprep.subr.bf16.mxu0 0
        %705 = vmatpush2.bf16.msra.mxu0 0
        %706 = vmatprep.subr.bf16.mxu0 0
        %707 = vmatpush2.bf16.msra.mxu0 0
        %708 = vmatprep.subr.bf16.mxu0 0
        %709 = vmatpush2.bf16.msra.mxu0 0
        %710 = vmatprep.mubr.bf16.mxu0 0
        %711 = vmatmul.mubr.bf16.gmra.mxu0 %v517
        %v712 = vpop.f32.mrf.mxu0
        %v713 = vadd.f32 0.0, %v712
        %v714 = vpop.f32.mrf.mxu0
        %v715 = vadd.f32 0.0, %v714
        %v716 = vpop.f32.mrf.mxu0
        %v717 = vpop.f32.mrf.mxu0
        %718 = vdwg.mxu0
        %719 = vmatprep.subr.bf16.mxu0 0
        %720 = vmatpush1.bf16.msra.mxu0 %v653
        %721 = vmatprep.subr.bf16.mxu0 0
        %722 = vmatpush1.bf16.msra.mxu0 %v650
        %723 = vmatprep.subr.bf16.mxu0 0
        %724 = vmatpush1.bf16.msra.mxu0 %v647
        %725 = vmatprep.subr.bf16.mxu0 0
        %726 = vmatpush1.bf16.msra.mxu0 %v644
        %727 = vmatprep.subr.bf16.mxu0 0
        %728 = vmatpush1.bf16.msra.mxu0 %v641
        %729 = vmatprep.subr.bf16.mxu0 0
        %730 = vmatpush1.bf16.msra.mxu0 %v638
        %731 = vmatprep.subr.bf16.mxu0 0
        %732 = vmatpush1.bf16.msra.mxu0 %v635
        %733 = vmatprep.subr.bf16.mxu0 0
        %734 = vmatpush1.bf16.msra.mxu0 %v632
        %735 = vmatprep.subr.bf16.mxu0 0
        %736 = vmatpush2.bf16.msra.mxu0 0
        %737 = vmatprep.subr.bf16.mxu0 0
        %738 = vmatpush2.bf16.msra.mxu0 0
        %739 = vmatprep.subr.bf16.mxu0 0
        %740 = vmatpush2.bf16.msra.mxu0 0
        %741 = vmatprep.subr.bf16.mxu0 0
        %742 = vmatpush2.bf16.msra.mxu0 0
        %743 = vmatprep.subr.bf16.mxu0 0
        %744 = vmatpush2.bf16.msra.mxu0 0
        %745 = vmatprep.subr.bf16.mxu0 0
        %746 = vmatpush2.bf16.msra.mxu0 0
        %747 = vmatprep.subr.bf16.mxu0 0
        %748 = vmatpush2.bf16.msra.mxu0 0
        %749 = vmatprep.subr.bf16.mxu0 0
        %750 = vmatpush2.bf16.msra.mxu0 0
        %751 = vmatprep.mubr.bf16.mxu0 0
        %752 = vmatmul.mubr.bf16.gmra.mxu0 %v517
        %v753 = vpop.f32.mrf.mxu0
        %v754 = vadd.f32 0.0, %v753
        %v755 = vpop.f32.mrf.mxu0
        %v756 = vpop.f32.mrf.mxu0
        %v757 = vpop.f32.mrf.mxu0
        %758 = vdwg.mxu0
        %v759 = vpack.c.bf16 %v713, %v713
        %v760 = vpack.c.bf16 %v715, %v715
        %v761 = vpack.c.bf16 %v754, %v754
        %vm762 = vcmask 261120
        %v764 = vsel %vm762, %v759, 0
        %v767 = vsel %vm762, %v760, 0
        %769 = vmatprep.subr.bf16.mxu0 0
        %770 = vmatpush1.bf16.xpose.msra.mxu0 0
        %771 = vmatprep.subr.bf16.mxu0 0
        %772 = vmatpush1.bf16.xpose.msra.mxu0 0
        %773 = vmatprep.subr.bf16.mxu0 0
        %774 = vmatpush1.bf16.xpose.msra.mxu0 0
        %775 = vmatprep.subr.bf16.mxu0 0
        %776 = vmatpush1.bf16.xpose.msra.mxu0 0
        %777 = vmatprep.subr.bf16.mxu0 0
        %778 = vmatpush1.bf16.xpose.msra.mxu0 0
        %779 = vmatprep.subr.bf16.mxu0 0
        %780 = vmatpush1.bf16.xpose.msra.mxu0 0
        %781 = vmatprep.subr.bf16.mxu0 0
        %782 = vmatpush1.bf16.xpose.msra.mxu0 0
        %783 = vmatprep.subr.bf16.mxu0 0
        %784 = vmatpush1.bf16.xpose.msra.mxu0 %v767
        %785 = vmatprep.subr.bf16.mxu0 0
        %786 = vmatpush2.bf16.xpose.msra.mxu0 0
        %787 = vmatprep.subr.bf16.mxu0 0
        %788 = vmatpush2.bf16.xpose.msra.mxu0 0
        %789 = vmatprep.subr.bf16.mxu0 0
        %790 = vmatpush2.bf16.xpose.msra.mxu0 0
        %791 = vmatprep.subr.bf16.mxu0 0
        %792 = vmatpush2.bf16.xpose.msra.mxu0 0
        %793 = vmatprep.subr.bf16.mxu0 0
        %794 = vmatpush2.bf16.xpose.msra.mxu0 0
        %795 = vmatprep.subr.bf16.mxu0 0
        %796 = vmatpush2.bf16.xpose.msra.mxu0 0
        %797 = vmatprep.subr.bf16.mxu0 0
        %798 = vmatpush2.bf16.xpose.msra.mxu0 0
        %799 = vmatprep.subr.bf16.mxu0 0
        %800 = vmatpush2.bf16.xpose.msra.mxu0 0
        %801 = vmatprep.mubr.bf16.mxu0 0
        %802 = vmatmul.mubr.bf16.gmra.mxu0 %v764
        %v803 = vpop.f32.mrf.mxu0
        %v804 = vadd.f32 0.0, %v803
        %v805 = vpop.f32.mrf.mxu0
        %v806 = vpop.f32.mrf.mxu0
        %v807 = vpop.f32.mrf.mxu0
        %808 = vdwg.mxu0
        %vm809 = vcmask 64512
        %v810 = vsel %vm809, %v804, -inf
        %811 = vmax.xlane.f32.xlu0 %v810
        %v812 = vpop.xlane.xlu0 %811
        %v813 = vsub.f32 %v804, %v812
        %v814 = vmul.f32 %v813, 1.442695
        %v815 = vpow.pop %v814
        %v816 = vsel %vm809, %v815, 0.0
        %817 = vadd.xlane.f32.xlu0 %v816
        %v818 = vpop.xlane.xlu0 %817
        %v819 = vrcp.pop %v818
        %v820 = vmul.f32 %v815, %v819
        %v821 = vpack.c.bf16 %v820, %v820
        %v823 = vsel %vm809, %v821, 0
        %vm825 = vcmask 1043456
        %v827 = vsel %vm825, %v761, 0
        %829 = vmatprep.subr.bf16.mxu0 0
        %830 = vmatpush1.bf16.msra.mxu0 0
        %831 = vmatprep.subr.bf16.mxu0 0
        %832 = vmatpush1.bf16.msra.mxu0 0
        %833 = vmatprep.subr.bf16.mxu0 0
        %834 = vmatpush1.bf16.msra.mxu0 0
        %835 = vmatprep.subr.bf16.mxu0 0
        %836 = vmatpush1.bf16.msra.mxu0 0
        %837 = vmatprep.subr.bf16.mxu0 0
        %838 = vmatpush1.bf16.msra.mxu0 0
        %839 = vmatprep.subr.bf16.mxu0 0
        %840 = vmatpush1.bf16.msra.mxu0 0
        %841 = vmatprep.subr.bf16.mxu0 0
        %842 = vmatpush1.bf16.msra.mxu0 0
        %843 = vmatprep.subr.bf16.mxu0 0
        %844 = vmatpush1.bf16.msra.mxu0 %v827
        %845 = vmatprep.subr.bf16.mxu0 0
        %846 = vmatpush2.bf16.msra.mxu0 0
        %847 = vmatprep.subr.bf16.mxu0 0
        %848 = vmatpush2.bf16.msra.mxu0 0
        %849 = vmatprep.subr.bf16.mxu0 0
        %850 = vmatpush2.bf16.msra.mxu0 0
        %851 = vmatprep.subr.bf16.mxu0 0
        %852 = vmatpush2.bf16.msra.mxu0 0
        %853 = vmatprep.subr.bf16.mxu0 0
        %854 = vmatpush2.bf16.msra.mxu0 0
        %855 = vmatprep.subr.bf16.mxu0 0
        %856 = vmatpush2.bf16.msra.mxu0 0
        %857 = vmatprep.subr.bf16.mxu0 0
        %858 = vmatpush2.bf16.msra.mxu0 0
        %859 = vmatprep.subr.bf16.mxu0 0
        %860 = vmatpush2.bf16.msra.mxu0 0
        %861 = vmatprep.mubr.bf16.mxu0 0
        %862 = vmatmul.mubr.bf16.gmra.mxu0 %v823
        %v863 = vpop.f32.mrf.mxu0
        %v864 = vadd.f32 0.0, %v863
        %v865 = vpop.f32.mrf.mxu0
        %v866 = vpop.f32.mrf.mxu0
        %v867 = vpop.f32.mrf.mxu0
        %868 = vdwg.mxu0
        %869 = vst.msk [vmem:[#allocation2] sm:$0xff] %vm762, %v864
        %871 = vrot.lane.b32.xlu0 %v759, 96
        %v872 = vpop.permute.xlu0 %871
        %874 = vrot.lane.b32.xlu0 %v760, 96
        %v875 = vpop.permute.xlu0 %874
        %v877 = vsel %vm762, %v872, 0
        %v880 = vsel %vm762, %v875, 0
        %882 = vmatprep.subr.bf16.mxu0 0
        %883 = vmatpush1.bf16.xpose.msra.mxu0 0
        %884 = vmatprep.subr.bf16.mxu0 0
        %885 = vmatpush1.bf16.xpose.msra.mxu0 0
        %886 = vmatprep.subr.bf16.mxu0 0
        %887 = vmatpush1.bf16.xpose.msra.mxu0 0
        %888 = vmatprep.subr.bf16.mxu0 0
        %889 = vmatpush1.bf16.xpose.msra.mxu0 0
        %890 = vmatprep.subr.bf16.mxu0 0
        %891 = vmatpush1.bf16.xpose.msra.mxu0 0
        %892 = vmatprep.subr.bf16.mxu0 0
        %893 = vmatpush1.bf16.xpose.msra.mxu0 0
        %894 = vmatprep.subr.bf16.mxu0 0
        %895 = vmatpush1.bf16.xpose.msra.mxu0 0
        %896 = vmatprep.subr.bf16.mxu0 0
        %897 = vmatpush1.bf16.xpose.msra.mxu0 %v880
        %898 = vmatprep.subr.bf16.mxu0 0
        %899 = vmatpush2.bf16.xpose.msra.mxu0 0
        %900 = vmatprep.subr.bf16.mxu0 0
        %901 = vmatpush2.bf16.xpose.msra.mxu0 0
        %902 = vmatprep.subr.bf16.mxu0 0
        %903 = vmatpush2.bf16.xpose.msra.mxu0 0
        %904 = vmatprep.subr.bf16.mxu0 0
        %905 = vmatpush2.bf16.xpose.msra.mxu0 0
        %906 = vmatprep.subr.bf16.mxu0 0
        %907 = vmatpush2.bf16.xpose.msra.mxu0 0
        %908 = vmatprep.subr.bf16.mxu0 0
        %909 = vmatpush2.bf16.xpose.msra.mxu0 0
        %910 = vmatprep.subr.bf16.mxu0 0
        %911 = vmatpush2.bf16.xpose.msra.mxu0 0
        %912 = vmatprep.subr.bf16.mxu0 0
        %913 = vmatpush2.bf16.xpose.msra.mxu0 0
        %914 = vmatprep.mubr.bf16.mxu0 0
        %915 = vmatmul.mubr.bf16.gmra.mxu0 %v877
        %v916 = vpop.f32.mrf.mxu0
        %v917 = vadd.f32 0.0, %v916
        %v918 = vpop.f32.mrf.mxu0
        %v919 = vpop.f32.mrf.mxu0
        %v920 = vpop.f32.mrf.mxu0
        %921 = vdwg.mxu0
        %v922 = vsel %vm809, %v917, -inf
        %923 = vmax.xlane.f32.xlu0 %v922
        %v924 = vpop.xlane.xlu0 %923
        %v925 = vsub.f32 %v917, %v924
        %v926 = vmul.f32 %v925, 1.442695
        %v927 = vpow.pop %v926
        %v928 = vsel %vm809, %v927, 0.0
        %929 = vadd.xlane.f32.xlu0 %v928
        %v930 = vpop.xlane.xlu0 %929
        %v931 = vrcp.pop %v930
        %v932 = vmul.f32 %v927, %v931
        %v933 = vpack.c.bf16 %v932, %v932
        %935 = vrot.lane.b32.xlu0 %v761, 96
        %v936 = vpop.permute.xlu0 %935
        %v938 = vsel %vm809, %v933, 0
        %v941 = vsel %vm825, %v936, 0
        %943 = vmatprep.subr.bf16.mxu0 0
        %944 = vmatpush1.bf16.msra.mxu0 0
        %945 = vmatprep.subr.bf16.mxu0 0
        %946 = vmatpush1.bf16.msra.mxu0 0
        %947 = vmatprep.subr.bf16.mxu0 0
        %948 = vmatpush1.bf16.msra.mxu0 0
        %949 = vmatprep.subr.bf16.mxu0 0
        %950 = vmatpush1.bf16.msra.mxu0 0
        %951 = vmatprep.subr.bf16.mxu0 0
        %952 = vmatpush1.bf16.msra.mxu0 0
        %953 = vmatprep.subr.bf16.mxu0 0
        %954 = vmatpush1.bf16.msra.mxu0 0
        %955 = vmatprep.subr.bf16.mxu0 0
        %956 = vmatpush1.bf16.msra.mxu0 0
        %957 = vmatprep.subr.bf16.mxu0 0
        %958 = vmatpush1.bf16.msra.mxu0 %v941
        %959 = vmatprep.subr.bf16.mxu0 0
        %960 = vmatpush2.bf16.msra.mxu0 0
        %961 = vmatprep.subr.bf16.mxu0 0
        %962 = vmatpush2.bf16.msra.mxu0 0
        %963 = vmatprep.subr.bf16.mxu0 0
        %964 = vmatpush2.bf16.msra.mxu0 0
        %965 = vmatprep.subr.bf16.mxu0 0
        %966 = vmatpush2.bf16.msra.mxu0 0
        %967 = vmatprep.subr.bf16.mxu0 0
        %968 = vmatpush2.bf16.msra.mxu0 0
        %969 = vmatprep.subr.bf16.mxu0 0
        %970 = vmatpush2.bf16.msra.mxu0 0
        %971 = vmatprep.subr.bf16.mxu0 0
        %972 = vmatpush2.bf16.msra.mxu0 0
        %973 = vmatprep.subr.bf16.mxu0 0
        %974 = vmatpush2.bf16.msra.mxu0 0
        %975 = vmatprep.mubr.bf16.mxu0 0
        %976 = vmatmul.mubr.bf16.gmra.mxu0 %v938
        %v977 = vpop.f32.mrf.mxu0
        %v978 = vadd.f32 0.0, %v977
        %v979 = vpop.f32.mrf.mxu0
        %v980 = vpop.f32.mrf.mxu0
        %v981 = vpop.f32.mrf.mxu0
        %982 = vdwg.mxu0
        %984 = vrot.lane.b32.xlu0 %v978, 32
        %v985 = vpop.permute.xlu0 %984
        %vm987 = vcmask 523520
        %988 = vst.msk [vmem:[#allocation2] sm:$0xff] %vm987, %v985
        %989 = vrot.lane.b32.xlu0 %v759, 64
        %v990 = vpop.permute.xlu0 %989
        %991 = vrot.lane.b32.xlu0 %v760, 64
        %v992 = vpop.permute.xlu0 %991
        %v994 = vsel %vm762, %v990, 0
        %v997 = vsel %vm762, %v992, 0
        %999 = vmatprep.subr.bf16.mxu0 0
        %1000 = vmatpush1.bf16.xpose.msra.mxu0 0
        %1001 = vmatprep.subr.bf16.mxu0 0
        %1002 = vmatpush1.bf16.xpose.msra.mxu0 0
        %1003 = vmatprep.subr.bf16.mxu0 0
        %1004 = vmatpush1.bf16.xpose.msra.mxu0 0
        %1005 = vmatprep.subr.bf16.mxu0 0
        %1006 = vmatpush1.bf16.xpose.msra.mxu0 0
        %1007 = vmatprep.subr.bf16.mxu0 0
        %1008 = vmatpush1.bf16.xpose.msra.mxu0 0
        %1009 = vmatprep.subr.bf16.mxu0 0
        %1010 = vmatpush1.bf16.xpose.msra.mxu0 0
        %1011 = vmatprep.subr.bf16.mxu0 0
        %1012 = vmatpush1.bf16.xpose.msra.mxu0 0
        %1013 = vmatprep.subr.bf16.mxu0 0
        %1014 = vmatpush1.bf16.xpose.msra.mxu0 %v997
        %1015 = vmatprep.subr.bf16.mxu0 0
        %1016 = vmatpush2.bf16.xpose.msra.mxu0 0
        %1017 = vmatprep.subr.bf16.mxu0 0
        %1018 = vmatpush2.bf16.xpose.msra.mxu0 0
        %1019 = vmatprep.subr.bf16.mxu0 0
        %1020 = vmatpush2.bf16.xpose.msra.mxu0 0
        %1021 = vmatprep.subr.bf16.mxu0 0
        %1022 = vmatpush2.bf16.xpose.msra.mxu0 0
        %1023 = vmatprep.subr.bf16.mxu0 0
        %1024 = vmatpush2.bf16.xpose.msra.mxu0 0
        %1025 = vmatprep.subr.bf16.mxu0 0
        %1026 = vmatpush2.bf16.xpose.msra.mxu0 0
        %1027 = vmatprep.subr.bf16.mxu0 0
        %1028 = vmatpush2.bf16.xpose.msra.mxu0 0
        %1029 = vmatprep.subr.bf16.mxu0 0
        %1030 = vmatpush2.bf16.xpose.msra.mxu0 0
        %1031 = vmatprep.mubr.bf16.mxu0 0
        %1032 = vmatmul.mubr.bf16.gmra.mxu0 %v994
        %v1033 = vpop.f32.mrf.mxu0
        %v1034 = vadd.f32 0.0, %v1033
        %v1035 = vpop.f32.mrf.mxu0
        %v1036 = vpop.f32.mrf.mxu0
        %v1037 = vpop.f32.mrf.mxu0
        %1038 = vdwg.mxu0
        %v1039 = vsel %vm809, %v1034, -inf
        %1040 = vmax.xlane.f32.xlu0 %v1039
        %v1041 = vpop.xlane.xlu0 %1040
        %v1042 = vsub.f32 %v1034, %v1041
        %v1043 = vmul.f32 %v1042, 1.442695
        %v1044 = vpow.pop %v1043
        %v1045 = vsel %vm809, %v1044, 0.0
        %1046 = vadd.xlane.f32.xlu0 %v1045
        %v1047 = vpop.xlane.xlu0 %1046
        %v1048 = vrcp.pop %v1047
        %v1049 = vmul.f32 %v1044, %v1048
        %v1050 = vpack.c.bf16 %v1049, %v1049
        %1051 = vrot.lane.b32.xlu0 %v761, 64
        %v1052 = vpop.permute.xlu0 %1051
        %v1054 = vsel %vm809, %v1050, 0
        %v1057 = vsel %vm825, %v1052, 0
        %1059 = vmatprep.subr.bf16.mxu0 0
        %1060 = vmatpush1.bf16.msra.mxu0 0
        %1061 = vmatprep.subr.bf16.mxu0 0
        %1062 = vmatpush1.bf16.msra.mxu0 0
        %1063 = vmatprep.subr.bf16.mxu0 0
        %1064 = vmatpush1.bf16.msra.mxu0 0
        %1065 = vmatprep.subr.bf16.mxu0 0
        %1066 = vmatpush1.bf16.msra.mxu0 0
        %1067 = vmatprep.subr.bf16.mxu0 0
        %1068 = vmatpush1.bf16.msra.mxu0 0
        %1069 = vmatprep.subr.bf16.mxu0 0
        %1070 = vmatpush1.bf16.msra.mxu0 0
        %1071 = vmatprep.subr.bf16.mxu0 0
        %1072 = vmatpush1.bf16.msra.mxu0 0
        %1073 = vmatprep.subr.bf16.mxu0 0
        %1074 = vmatpush1.bf16.msra.mxu0 %v1057
        %1075 = vmatprep.subr.bf16.mxu0 0
        %1076 = vmatpush2.bf16.msra.mxu0 0
        %1077 = vmatprep.subr.bf16.mxu0 0
        %1078 = vmatpush2.bf16.msra.mxu0 0
        %1079 = vmatprep.subr.bf16.mxu0 0
        %1080 = vmatpush2.bf16.msra.mxu0 0
        %1081 = vmatprep.subr.bf16.mxu0 0
        %1082 = vmatpush2.bf16.msra.mxu0 0
        %1083 = vmatprep.subr.bf16.mxu0 0
        %1084 = vmatpush2.bf16.msra.mxu0 0
        %1085 = vmatprep.subr.bf16.mxu0 0
        %1086 = vmatpush2.bf16.msra.mxu0 0
        %1087 = vmatprep.subr.bf16.mxu0 0
        %1088 = vmatpush2.bf16.msra.mxu0 0
        %1089 = vmatprep.subr.bf16.mxu0 0
        %1090 = vmatpush2.bf16.msra.mxu0 0
        %1091 = vmatprep.mubr.bf16.mxu0 0
        %1092 = vmatmul.mubr.bf16.gmra.mxu0 %v1054
        %v1093 = vpop.f32.mrf.mxu0
        %v1094 = vadd.f32 0.0, %v1093
        %v1095 = vpop.f32.mrf.mxu0
        %v1096 = vpop.f32.mrf.mxu0
        %v1097 = vpop.f32.mrf.mxu0
        %1098 = vdwg.mxu0
        %1100 = vrot.lane.b32.xlu0 %v1094, 64
        %v1101 = vpop.permute.xlu0 %1100
        %vm1103 = vcmask 785920
        %1104 = vst.msk [vmem:[#allocation2] sm:$0xff] %vm1103, %v1101
        %1105 = vrot.lane.b32.xlu0 %v759, 32
        %v1106 = vpop.permute.xlu0 %1105
        %1107 = vrot.lane.b32.xlu0 %v760, 32
        %v1108 = vpop.permute.xlu0 %1107
        %v1110 = vsel %vm762, %v1106, 0
        %v1113 = vsel %vm762, %v1108, 0
        %1115 = vmatprep.subr.bf16.mxu0 0
        %1116 = vmatpush1.bf16.xpose.msra.mxu0 0
        %1117 = vmatprep.subr.bf16.mxu0 0
        %1118 = vmatpush1.bf16.xpose.msra.mxu0 0
        %1119 = vmatprep.subr.bf16.mxu0 0
        %1120 = vmatpush1.bf16.xpose.msra.mxu0 0
        %1121 = vmatprep.subr.bf16.mxu0 0
        %1122 = vmatpush1.bf16.xpose.msra.mxu0 0
        %1123 = vmatprep.subr.bf16.mxu0 0
        %1124 = vmatpush1.bf16.xpose.msra.mxu0 0
        %1125 = vmatprep.subr.bf16.mxu0 0
        %1126 = vmatpush1.bf16.xpose.msra.mxu0 0
        %1127 = vmatprep.subr.bf16.mxu0 0
        %1128 = vmatpush1.bf16.xpose.msra.mxu0 0
        %1129 = vmatprep.subr.bf16.mxu0 0
        %1130 = vmatpush1.bf16.xpose.msra.mxu0 %v1113
        %1131 = vmatprep.subr.bf16.mxu0 0
        %1132 = vmatpush2.bf16.xpose.msra.mxu0 0
        %1133 = vmatprep.subr.bf16.mxu0 0
        %1134 = vmatpush2.bf16.xpose.msra.mxu0 0
        %1135 = vmatprep.subr.bf16.mxu0 0
        %1136 = vmatpush2.bf16.xpose.msra.mxu0 0
        %1137 = vmatprep.subr.bf16.mxu0 0
        %1138 = vmatpush2.bf16.xpose.msra.mxu0 0
        %1139 = vmatprep.subr.bf16.mxu0 0
        %1140 = vmatpush2.bf16.xpose.msra.mxu0 0
        %1141 = vmatprep.subr.bf16.mxu0 0
        %1142 = vmatpush2.bf16.xpose.msra.mxu0 0
        %1143 = vmatprep.subr.bf16.mxu0 0
        %1144 = vmatpush2.bf16.xpose.msra.mxu0 0
        %1145 = vmatprep.subr.bf16.mxu0 0
        %1146 = vmatpush2.bf16.xpose.msra.mxu0 0
        %1147 = vmatprep.mubr.bf16.mxu0 0
        %1148 = vmatmul.mubr.bf16.gmra.mxu0 %v1110
        %v1149 = vpop.f32.mrf.mxu0
        %v1150 = vadd.f32 0.0, %v1149
        %v1151 = vpop.f32.mrf.mxu0
        %v1152 = vpop.f32.mrf.mxu0
        %v1153 = vpop.f32.mrf.mxu0
        %1154 = vdwg.mxu0
        %v1155 = vsel %vm809, %v1150, -inf
        %1156 = vmax.xlane.f32.xlu0 %v1155
        %v1157 = vpop.xlane.xlu0 %1156
        %v1158 = vsub.f32 %v1150, %v1157
        %v1159 = vmul.f32 %v1158, 1.442695
        %v1160 = vpow.pop %v1159
        %v1161 = vsel %vm809, %v1160, 0.0
        %1162 = vadd.xlane.f32.xlu0 %v1161
        %v1163 = vpop.xlane.xlu0 %1162
        %v1164 = vrcp.pop %v1163
        %v1165 = vmul.f32 %v1160, %v1164
        %v1166 = vpack.c.bf16 %v1165, %v1165
        %1167 = vrot.lane.b32.xlu0 %v761, 32
        %v1168 = vpop.permute.xlu0 %1167
        %v1170 = vsel %vm809, %v1166, 0
        %v1173 = vsel %vm825, %v1168, 0
        %1175 = vmatprep.subr.bf16.mxu0 0
        %1176 = vmatpush1.bf16.msra.mxu0 0
        %1177 = vmatprep.subr.bf16.mxu0 0
        %1178 = vmatpush1.bf16.msra.mxu0 0
        %1179 = vmatprep.subr.bf16.mxu0 0
        %1180 = vmatpush1.bf16.msra.mxu0 0
        %1181 = vmatprep.subr.bf16.mxu0 0
        %1182 = vmatpush1.bf16.msra.mxu0 0
        %1183 = vmatprep.subr.bf16.mxu0 0
        %1184 = vmatpush1.bf16.msra.mxu0 0
        %1185 = vmatprep.subr.bf16.mxu0 0
        %1186 = vmatpush1.bf16.msra.mxu0 0
        %1187 = vmatprep.subr.bf16.mxu0 0
        %1188 = vmatpush1.bf16.msra.mxu0 0
        %1189 = vmatprep.subr.bf16.mxu0 0
        %1190 = vmatpush1.bf16.msra.mxu0 %v1173
        %1191 = vmatprep.subr.bf16.mxu0 0
        %1192 = vmatpush2.bf16.msra.mxu0 0
        %1193 = vmatprep.subr.bf16.mxu0 0
        %1194 = vmatpush2.bf16.msra.mxu0 0
        %1195 = vmatprep.subr.bf16.mxu0 0
        %1196 = vmatpush2.bf16.msra.mxu0 0
        %1197 = vmatprep.subr.bf16.mxu0 0
        %1198 = vmatpush2.bf16.msra.mxu0 0
        %1199 = vmatprep.subr.bf16.mxu0 0
        %1200 = vmatpush2.bf16.msra.mxu0 0
        %1201 = vmatprep.subr.bf16.mxu0 0
        %1202 = vmatpush2.bf16.msra.mxu0 0
        %1203 = vmatprep.subr.bf16.mxu0 0
        %1204 = vmatpush2.bf16.msra.mxu0 0
        %1205 = vmatprep.subr.bf16.mxu0 0
        %1206 = vmatpush2.bf16.msra.mxu0 0
        %1207 = vmatprep.mubr.bf16.mxu0 0
        %1208 = vmatmul.mubr.bf16.gmra.mxu0 %v1170
        %v1209 = vpop.f32.mrf.mxu0
        %v1210 = vadd.f32 0.0, %v1209
        %v1211 = vpop.f32.mrf.mxu0
        %v1212 = vpop.f32.mrf.mxu0
        %v1213 = vpop.f32.mrf.mxu0
        %1214 = vdwg.mxu0
        %1216 = vrot.lane.b32.xlu0 %v1210, 96
        %v1217 = vpop.permute.xlu0 %1216
        %vm1219 = vcmask 1048320
        %1220 = vst.msk [vmem:[#allocation2] sm:$0xff] %vm1219, %v1217
        %v1221 = vld [vmem:[#allocation2] sm:$0xff]
        %v1222 = vpack.c.bf16 %v1221, %v1221
        %v1223 = vld [vmem:[#allocation8] sm:$0xf]
        %v1224 = vld [vmem:[#allocation8 + $0x4] sm:$0xf]
        %v1225 = vld [vmem:[#allocation8 + $0x8] sm:$0xf]
        %v1226 = vld [vmem:[#allocation8 + $0xc] sm:$0xf]
        %v1227 = vld [vmem:[#allocation8 + $0x10] sm:$0xf]
        %v1228 = vld [vmem:[#allocation8 + $0x14] sm:$0xf]
        %v1229 = vld [vmem:[#allocation8 + $0x18] sm:$0xf]
        %v1230 = vld [vmem:[#allocation8 + $0x1c] sm:$0xf]
        %v1231 = vld [vmem:[#allocation8 + $0x20] sm:$0xf]
        %v1232 = vld [vmem:[#allocation8 + $0x24] sm:$0xf]
        %v1233 = vld [vmem:[#allocation8 + $0x28] sm:$0xf]
        %v1234 = vld [vmem:[#allocation8 + $0x2c] sm:$0xf]
        %v1235 = vld [vmem:[#allocation8 + $0x30] sm:$0xf]
        %v1236 = vld [vmem:[#allocation8 + $0x34] sm:$0xf]
        %v1237 = vld [vmem:[#allocation8 + $0x38] sm:$0xf]
        %v1238 = vld [vmem:[#allocation8 + $0x3c] sm:$0xf]
        %v1239 = vld [vmem:[%s5] sm:$0x1]
        %v1241 = vlaneseq
        %v1242 = vshrl.u32 %v1241, 7
        %v1243 = vsub.s32 0, %v1242
        %v1244 = vrot.slane %v1239, %v1243
        %v1262 = vunpack.c.l.b16 %v1223
        %v1263 = vunpack.c.l.b16 %v1224
        %v1264 = vunpack.c.l.b16 %v1225
        %v1265 = vunpack.c.l.b16 %v1226
        %v1266 = vunpack.c.l.b16 %v1227
        %v1267 = vunpack.c.l.b16 %v1228
        %v1268 = vunpack.c.l.b16 %v1229
        %v1269 = vunpack.c.l.b16 %v1230
        %v1270 = vunpack.c.l.b16 %v1231
        %v1271 = vunpack.c.l.b16 %v1232
        %v1272 = vunpack.c.l.b16 %v1233
        %v1273 = vunpack.c.l.b16 %v1234
        %v1274 = vunpack.c.l.b16 %v1235
        %v1275 = vunpack.c.l.b16 %v1236
        %v1276 = vunpack.c.l.b16 %v1237
        %v1277 = vunpack.c.l.b16 %v1238
        %v1278 = vpack.c.b16 %v1263, %v1262
        %v1279 = vpack.c.b16 %v1265, %v1264
        %v1280 = vpack.c.b16 %v1267, %v1266
        %v1281 = vpack.c.b16 %v1269, %v1268
        %v1282 = vpack.c.b16 %v1271, %v1270
        %v1283 = vpack.c.b16 %v1273, %v1272
        %v1284 = vpack.c.b16 %v1275, %v1274
        %v1285 = vpack.c.b16 %v1277, %v1276
        %1294 = vmatprep.subr.bf16.mxu0 0
        %1295 = vmatpush1.bf16.msra.mxu0 %v1285
        %1296 = vmatprep.subr.bf16.mxu0 0
        %1297 = vmatpush1.bf16.msra.mxu0 %v1284
        %1298 = vmatprep.subr.bf16.mxu0 0
        %1299 = vmatpush1.bf16.msra.mxu0 %v1283
        %1300 = vmatprep.subr.bf16.mxu0 0
        %1301 = vmatpush1.bf16.msra.mxu0 %v1282
        %1302 = vmatprep.subr.bf16.mxu0 0
        %1303 = vmatpush1.bf16.msra.mxu0 %v1281
        %1304 = vmatprep.subr.bf16.mxu0 0
        %1305 = vmatpush1.bf16.msra.mxu0 %v1280
        %1306 = vmatprep.subr.bf16.mxu0 0
        %1307 = vmatpush1.bf16.msra.mxu0 %v1279
        %1308 = vmatprep.subr.bf16.mxu0 0
        %1309 = vmatpush1.bf16.msra.mxu0 %v1278
        %1310 = vmatprep.subr.bf16.mxu0 0
        %1311 = vmatpush2.bf16.msra.mxu0 0
        %1312 = vmatprep.subr.bf16.mxu0 0
        %1313 = vmatpush2.bf16.msra.mxu0 0
        %1314 = vmatprep.subr.bf16.mxu0 0
        %1315 = vmatpush2.bf16.msra.mxu0 0
        %1316 = vmatprep.subr.bf16.mxu0 0
        %1317 = vmatpush2.bf16.msra.mxu0 0
        %1318 = vmatprep.subr.bf16.mxu0 0
        %1319 = vmatpush2.bf16.msra.mxu0 0
        %1320 = vmatprep.subr.bf16.mxu0 0
        %1321 = vmatpush2.bf16.msra.mxu0 0
        %1322 = vmatprep.subr.bf16.mxu0 0
        %1323 = vmatpush2.bf16.msra.mxu0 0
        %1324 = vmatprep.subr.bf16.mxu0 0
        %1325 = vmatpush2.bf16.msra.mxu0 0
        %1326 = vmatprep.mubr.bf16.mxu0 0
        %1327 = vmatmul.mubr.bf16.gmra.mxu0 %v1222
        %v1328 = vpop.f32.mrf.mxu0
        %v1329 = vadd.f32 %v1244, %v1328
        %v1330 = vpop.f32.mrf.mxu0
        %v1331 = vpop.f32.mrf.mxu0
        %v1332 = vpop.f32.mrf.mxu0
        %1333 = vdwg.mxu0
        %v1334 = vadd.f32 %v488, %v1329
        %v1335 = vld [vmem:[%s6] sm:$0x1]
        %v1336 = vld [vmem:[%s7] sm:$0x1]
        %1337 = vadd.xlane.f32.xlu0 %v1334
        %v1338 = vpop.xlane.xlu0 %1337
        %v1339 = vmul.f32 %v1338, %v493
        %v1340 = vsub.f32 %v1334, %v1339
        %v1341 = vmul.f32 %v1340, %v1340
        %1342 = vadd.xlane.f32.xlu0 %v1341
        %v1343 = vpop.xlane.xlu0 %1342
        %v1344 = vmul.f32 %v1343, %v493
        %v1345 = vadd.f32 %v1344, 1e-05
        %v1346 = vrsqrt.pop %v1345
        %v1347 = vmul.f32 %v1340, %v1346
        %v1349 = vlaneseq
        %v1350 = vshrl.u32 %v1349, 7
        %v1351 = vsub.s32 0, %v1350
        %v1352 = vrot.slane %v1335, %v1351
        %v1354 = vmul.f32 %v1347, %v1352
        %v1356 = vlaneseq
        %v1357 = vshrl.u32 %v1356, 7
        %v1358 = vsub.s32 0, %v1357
        %v1359 = vrot.slane %v1336, %v1358
        %v1361 = vadd.f32 %v1354, %v1359
        %v1362 = vpack.c.bf16 %v1361, %v1361
        %v1363 = vld [vmem:[#allocation9] sm:$0xff]
        %v1364 = vld [vmem:[#allocation9 + $0x8] sm:$0xff]
        %v1365 = vld [vmem:[#allocation9 + $0x10] sm:$0xff]
        %v1366 = vld [vmem:[#allocation9 + $0x18] sm:$0xff]
        %v1367 = vld [vmem:[#allocation9 + $0x20] sm:$0xff]
        %v1368 = vld [vmem:[#allocation9 + $0x28] sm:$0xff]
        %v1369 = vld [vmem:[#allocation9 + $0x30] sm:$0xff]
        %v1370 = vld [vmem:[#allocation9 + $0x38] sm:$0xff]
        %v1371 = vld [vmem:[#allocation9 + $0x40] sm:$0xff]
        %v1372 = vld [vmem:[#allocation9 + $0x48] sm:$0xff]
        %v1373 = vld [vmem:[#allocation9 + $0x50] sm:$0xff]
        %v1374 = vld [vmem:[#allocation9 + $0x58] sm:$0xff]
        %v1375 = vld [vmem:[#allocation9 + $0x60] sm:$0xff]
        %v1376 = vld [vmem:[#allocation9 + $0x68] sm:$0xff]
        %v1377 = vld [vmem:[#allocation9 + $0x70] sm:$0xff]
        %v1378 = vld [vmem:[#allocation9 + $0x78] sm:$0xff]
        %v1379 = vld [vmem:[#allocation9 + $0x80] sm:$0xff]
        %v1380 = vld [vmem:[#allocation9 + $0x88] sm:$0xff]
        %v1381 = vld [vmem:[#allocation9 + $0x90] sm:$0xff]
        %v1382 = vld [vmem:[#allocation9 + $0x98] sm:$0xff]
        %v1383 = vld [vmem:[#allocation9 + $0xa0] sm:$0xff]
        %v1384 = vld [vmem:[#allocation9 + $0xa8] sm:$0xff]
        %v1385 = vld [vmem:[#allocation9 + $0xb0] sm:$0xff]
        %v1386 = vld [vmem:[#allocation9 + $0xb8] sm:$0xff]
        %v1387 = vld [vmem:[#allocation9 + $0xc0] sm:$0xff]
        %v1388 = vld [vmem:[#allocation9 + $0xc8] sm:$0xff]
        %v1389 = vld [vmem:[#allocation9 + $0xd0] sm:$0xff]
        %v1390 = vld [vmem:[#allocation9 + $0xd8] sm:$0xff]
        %v1391 = vld [vmem:[#allocation9 + $0xe0] sm:$0xff]
        %v1392 = vld [vmem:[#allocation9 + $0xe8] sm:$0xff]
        %v1393 = vld [vmem:[#allocation9 + $0xf0] sm:$0xff]
        %v1394 = vld [vmem:[#allocation9 + $0xf8] sm:$0xff]
        %v1395 = vld [vmem:[%s9] sm:$0xf]
        %v1397 = vlaneseq
        %v1398 = vshrl.u32 %v1397, 7
        %v1399 = vsub.s32 0, %v1398
        %v1400 = vrot.slane %v1395, %v1399
        %v1401 = vlaneseq
        %v1402 = vshrl.u32 %v1401, 7
        %v1403 = vsub.s32 1, %v1402
        %v1404 = vrot.slane %v1395, %v1403
        %v1405 = vlaneseq
        %v1406 = vshrl.u32 %v1405, 7
        %v1407 = vsub.s32 2, %v1406
        %v1408 = vrot.slane %v1395, %v1407
        %v1409 = vlaneseq
        %v1410 = vshrl.u32 %v1409, 7
        %v1411 = vsub.s32 3, %v1410
        %v1412 = vrot.slane %v1395, %v1411
        %v1449 = vunpack.c.l.b16 %v1363
        %v1450 = vunpack.c.h.b16 %v1363
        %v1451 = vunpack.c.l.b16 %v1364
        %v1452 = vunpack.c.h.b16 %v1364
        %v1453 = vunpack.c.l.b16 %v1365
        %v1454 = vunpack.c.h.b16 %v1365
        %v1455 = vunpack.c.l.b16 %v1366
        %v1456 = vunpack.c.h.b16 %v1366
        %v1457 = vunpack.c.l.b16 %v1367
        %v1458 = vunpack.c.h.b16 %v1367
        %v1459 = vunpack.c.l.b16 %v1368
        %v1460 = vunpack.c.h.b16 %v1368
        %v1461 = vunpack.c.l.b16 %v1369
        %v1462 = vunpack.c.h.b16 %v1369
        %v1463 = vunpack.c.l.b16 %v1370
        %v1464 = vunpack.c.h.b16 %v1370
        %v1465 = vunpack.c.l.b16 %v1371
        %v1466 = vunpack.c.h.b16 %v1371
        %v1467 = vunpack.c.l.b16 %v1372
        %v1468 = vunpack.c.h.b16 %v1372
        %v1469 = vunpack.c.l.b16 %v1373
        %v1470 = vunpack.c.h.b16 %v1373
        %v1471 = vunpack.c.l.b16 %v1374
        %v1472 = vunpack.c.h.b16 %v1374
        %v1473 = vunpack.c.l.b16 %v1375
        %v1474 = vunpack.c.h.b16 %v1375
        %v1475 = vunpack.c.l.b16 %v1376
        %v1476 = vunpack.c.h.b16 %v1376
        %v1477 = vunpack.c.l.b16 %v1377
        %v1478 = vunpack.c.h.b16 %v1377
        %v1479 = vunpack.c.l.b16 %v1378
        %v1480 = vunpack.c.h.b16 %v1378
        %v1481 = vunpack.c.l.b16 %v1379
        %v1482 = vunpack.c.h.b16 %v1379
        %v1483 = vunpack.c.l.b16 %v1380
        %v1484 = vunpack.c.h.b16 %v1380
        %v1485 = vunpack.c.l.b16 %v1381
        %v1486 = vunpack.c.h.b16 %v1381
        %v1487 = vunpack.c.l.b16 %v1382
        %v1488 = vunpack.c.h.b16 %v1382
        %v1489 = vunpack.c.l.b16 %v1383
        %v1490 = vunpack.c.h.b16 %v1383
        %v1491 = vunpack.c.l.b16 %v1384
        %v1492 = vunpack.c.h.b16 %v1384
        %v1493 = vunpack.c.l.b16 %v1385
        %v1494 = vunpack.c.h.b16 %v1385
        %v1495 = vunpack.c.l.b16 %v1386
        %v1496 = vunpack.c.h.b16 %v1386
        %v1497 = vunpack.c.l.b16 %v1387
        %v1498 = vunpack.c.h.b16 %v1387
        %v1499 = vunpack.c.l.b16 %v1388
        %v1500 = vunpack.c.h.b16 %v1388
        %v1501 = vunpack.c.l.b16 %v1389
        %v1502 = vunpack.c.h.b16 %v1389
        %v1503 = vunpack.c.l.b16 %v1390
        %v1504 = vunpack.c.h.b16 %v1390
        %v1505 = vunpack.c.l.b16 %v1391
        %v1506 = vunpack.c.h.b16 %v1391
        %v1507 = vunpack.c.l.b16 %v1392
        %v1508 = vunpack.c.h.b16 %v1392
        %v1509 = vunpack.c.l.b16 %v1393
        %v1510 = vunpack.c.h.b16 %v1393
        %v1511 = vunpack.c.l.b16 %v1394
        %v1512 = vunpack.c.h.b16 %v1394
        %v1513 = vpack.c.b16 %v1453, %v1449
        %v1514 = vpack.c.b16 %v1454, %v1450
        %v1515 = vpack.c.b16 %v1455, %v1451
        %v1516 = vpack.c.b16 %v1456, %v1452
        %v1517 = vpack.c.b16 %v1461, %v1457
        %v1518 = vpack.c.b16 %v1462, %v1458
        %v1519 = vpack.c.b16 %v1463, %v1459
        %v1520 = vpack.c.b16 %v1464, %v1460
        %v1521 = vpack.c.b16 %v1469, %v1465
        %v1522 = vpack.c.b16 %v1470, %v1466
        %v1523 = vpack.c.b16 %v1471, %v1467
        %v1524 = vpack.c.b16 %v1472, %v1468
        %v1525 = vpack.c.b16 %v1477, %v1473
        %v1526 = vpack.c.b16 %v1478, %v1474
        %v1527 = vpack.c.b16 %v1479, %v1475
        %v1528 = vpack.c.b16 %v1480, %v1476
        %v1529 = vpack.c.b16 %v1485, %v1481
        %v1530 = vpack.c.b16 %v1486, %v1482
        %v1531 = vpack.c.b16 %v1487, %v1483
        %v1532 = vpack.c.b16 %v1488, %v1484
        %v1533 = vpack.c.b16 %v1493, %v1489
        %v1534 = vpack.c.b16 %v1494, %v1490
        %v1535 = vpack.c.b16 %v1495, %v1491
        %v1536 = vpack.c.b16 %v1496, %v1492
        %v1537 = vpack.c.b16 %v1501, %v1497
        %v1538 = vpack.c.b16 %v1502, %v1498
        %v1539 = vpack.c.b16 %v1503, %v1499
        %v1540 = vpack.c.b16 %v1504, %v1500
        %v1541 = vpack.c.b16 %v1509, %v1505
        %v1542 = vpack.c.b16 %v1510, %v1506
        %v1543 = vpack.c.b16 %v1511, %v1507
        %v1544 = vpack.c.b16 %v1512, %v1508
        %1577 = vmatprep.subr.bf16.mxu0 %v1542
        %1578 = vmatpush1.bf16.msra.mxu0 %v1541
        %1579 = vmatprep.subr.bf16.mxu0 %v1538
        %1580 = vmatpush1.bf16.msra.mxu0 %v1537
        %1581 = vmatprep.subr.bf16.mxu0 %v1534
        %1582 = vmatpush1.bf16.msra.mxu0 %v1533
        %1583 = vmatprep.subr.bf16.mxu0 %v1530
        %1584 = vmatpush1.bf16.msra.mxu0 %v1529
        %1585 = vmatprep.subr.bf16.mxu0 %v1526
        %1586 = vmatpush1.bf16.msra.mxu0 %v1525
        %1587 = vmatprep.subr.bf16.mxu0 %v1522
        %1588 = vmatpush1.bf16.msra.mxu0 %v1521
        %1589 = vmatprep.subr.bf16.mxu0 %v1518
        %1590 = vmatpush1.bf16.msra.mxu0 %v1517
        %1591 = vmatprep.subr.bf16.mxu0 %v1514
        %1592 = vmatpush1.bf16.msra.mxu0 %v1513
        %1593 = vmatprep.subr.bf16.mxu0 0
        %1594 = vmatpush2.bf16.msra.mxu0 0
        %1595 = vmatprep.subr.bf16.mxu0 0
        %1596 = vmatpush2.bf16.msra.mxu0 0
        %1597 = vmatprep.subr.bf16.mxu0 0
        %1598 = vmatpush2.bf16.msra.mxu0 0
        %1599 = vmatprep.subr.bf16.mxu0 0
        %1600 = vmatpush2.bf16.msra.mxu0 0
        %1601 = vmatprep.subr.bf16.mxu0 0
        %1602 = vmatpush2.bf16.msra.mxu0 0
        %1603 = vmatprep.subr.bf16.mxu0 0
        %1604 = vmatpush2.bf16.msra.mxu0 0
        %1605 = vmatprep.subr.bf16.mxu0 0
        %1606 = vmatpush2.bf16.msra.mxu0 0
        %1607 = vmatprep.subr.bf16.mxu0 0
        %1608 = vmatpush2.bf16.msra.mxu0 0
        %1609 = vmatprep.mubr.bf16.mxu0 0
        %1610 = vmatmul.mubr.bf16.gmra.mxu0 %v1362
        %v1611 = vpop.f32.mrf.mxu0
        %v1612 = vadd.f32 %v1400, %v1611
        %v1613 = vpop.f32.mrf.mxu0
        %v1614 = vadd.f32 %v1404, %v1613
        %v1615 = vpop.f32.mrf.mxu0
        %v1616 = vpop.f32.mrf.mxu0
        %1617 = vdwg.mxu0
        %1618 = vmatprep.subr.bf16.mxu0 %v1544
        %1619 = vmatpush1.bf16.msra.mxu0 %v1543
        %1620 = vmatprep.subr.bf16.mxu0 %v1540
        %1621 = vmatpush1.bf16.msra.mxu0 %v1539
        %1622 = vmatprep.subr.bf16.mxu0 %v1536
        %1623 = vmatpush1.bf16.msra.mxu0 %v1535
        %1624 = vmatprep.subr.bf16.mxu0 %v1532
        %1625 = vmatpush1.bf16.msra.mxu0 %v1531
        %1626 = vmatprep.subr.bf16.mxu0 %v1528
        %1627 = vmatpush1.bf16.msra.mxu0 %v1527
        %1628 = vmatprep.subr.bf16.mxu0 %v1524
        %1629 = vmatpush1.bf16.msra.mxu0 %v1523
        %1630 = vmatprep.subr.bf16.mxu0 %v1520
        %1631 = vmatpush1.bf16.msra.mxu0 %v1519
        %1632 = vmatprep.subr.bf16.mxu0 %v1516
        %1633 = vmatpush1.bf16.msra.mxu0 %v1515
        %1634 = vmatprep.subr.bf16.mxu0 0
        %1635 = vmatpush2.bf16.msra.mxu0 0
        %1636 = vmatprep.subr.bf16.mxu0 0
        %1637 = vmatpush2.bf16.msra.mxu0 0
        %1638 = vmatprep.subr.bf16.mxu0 0
        %1639 = vmatpush2.bf16.msra.mxu0 0
        %1640 = vmatprep.subr.bf16.mxu0 0
        %1641 = vmatpush2.bf16.msra.mxu0 0
        %1642 = vmatprep.subr.bf16.mxu0 0
        %1643 = vmatpush2.bf16.msra.mxu0 0
        %1644 = vmatprep.subr.bf16.mxu0 0
        %1645 = vmatpush2.bf16.msra.mxu0 0
        %1646 = vmatprep.subr.bf16.mxu0 0
        %1647 = vmatpush2.bf16.msra.mxu0 0
        %1648 = vmatprep.subr.bf16.mxu0 0
        %1649 = vmatpush2.bf16.msra.mxu0 0
        %1650 = vmatprep.mubr.bf16.mxu0 0
        %1651 = vmatmul.mubr.bf16.gmra.mxu0 %v1362
        %v1652 = vpop.f32.mrf.mxu0
        %v1653 = vadd.f32 %v1408, %v1652
        %v1654 = vpop.f32.mrf.mxu0
        %v1655 = vadd.f32 %v1412, %v1654
        %v1656 = vpop.f32.mrf.mxu0
        %v1657 = vpop.f32.mrf.mxu0
        %1658 = vdwg.mxu0
        %v1659 = vmul.f32 %v1612, 0.5
        %v1660 = vmul.f32 %v1614, 0.5
        %v1661 = vmul.f32 %v1653, 0.5
        %v1662 = vmul.f32 %v1655, 0.5
        %v1663 = vmul.f32 %v1612, 0.70710677
        %v1664 = vmul.f32 %v1614, 0.70710677
        %v1665 = vmul.f32 %v1653, 0.70710677
        %v1666 = vmul.f32 %v1655, 0.70710677
        %v1667 = verf.f32.pop %v1663
        %v1668 = verf.f32.pop %v1664
        %v1669 = verf.f32.pop %v1665
        %v1670 = verf.f32.pop %v1666
        %v1671 = vadd.f32 %v1667, 1.0
        %v1672 = vadd.f32 %v1668, 1.0
        %v1673 = vadd.f32 %v1669, 1.0
        %v1674 = vadd.f32 %v1670, 1.0
        %v1675 = vmul.f32 %v1659, %v1671
        %v1676 = vmul.f32 %v1660, %v1672
        %v1677 = vmul.f32 %v1661, %v1673
        %v1678 = vmul.f32 %v1662, %v1674
        %v1679 = vpack.c.bf16 %v1675, %v1675
        %v1680 = vpack.c.bf16 %v1676, %v1676
        %v1681 = vpack.c.bf16 %v1677, %v1677
        %v1682 = vpack.c.bf16 %v1678, %v1678
        %v1683 = vld [vmem:[#allocation11] sm:$0xf]
        %v1684 = vld [vmem:[#allocation11 + $0x4] sm:$0xf]
        %v1685 = vld [vmem:[#allocation11 + $0x8] sm:$0xf]
        %v1686 = vld [vmem:[#allocation11 + $0xc] sm:$0xf]
        %v1687 = vld [vmem:[#allocation11 + $0x10] sm:$0xf]
        %v1688 = vld [vmem:[#allocation11 + $0x14] sm:$0xf]
        %v1689 = vld [vmem:[#allocation11 + $0x18] sm:$0xf]
        %v1690 = vld [vmem:[#allocation11 + $0x1c] sm:$0xf]
        %v1691 = vld [vmem:[#allocation11 + $0x20] sm:$0xf]
        %v1692 = vld [vmem:[#allocation11 + $0x24] sm:$0xf]
        %v1693 = vld [vmem:[#allocation11 + $0x28] sm:$0xf]
        %v1694 = vld [vmem:[#allocation11 + $0x2c] sm:$0xf]
        %v1695 = vld [vmem:[#allocation11 + $0x30] sm:$0xf]
        %v1696 = vld [vmem:[#allocation11 + $0x34] sm:$0xf]
        %v1697 = vld [vmem:[#allocation11 + $0x38] sm:$0xf]
        %v1698 = vld [vmem:[#allocation11 + $0x3c] sm:$0xf]
        %v1699 = vld [vmem:[#allocation11 + $0x40] sm:$0xf]
        %v1700 = vld [vmem:[#allocation11 + $0x44] sm:$0xf]
        %v1701 = vld [vmem:[#allocation11 + $0x48] sm:$0xf]
        %v1702 = vld [vmem:[#allocation11 + $0x4c] sm:$0xf]
        %v1703 = vld [vmem:[#allocation11 + $0x50] sm:$0xf]
        %v1704 = vld [vmem:[#allocation11 + $0x54] sm:$0xf]
        %v1705 = vld [vmem:[#allocation11 + $0x58] sm:$0xf]
        %v1706 = vld [vmem:[#allocation11 + $0x5c] sm:$0xf]
        %v1707 = vld [vmem:[#allocation11 + $0x60] sm:$0xf]
        %v1708 = vld [vmem:[#allocation11 + $0x64] sm:$0xf]
        %v1709 = vld [vmem:[#allocation11 + $0x68] sm:$0xf]
        %v1710 = vld [vmem:[#allocation11 + $0x6c] sm:$0xf]
        %v1711 = vld [vmem:[#allocation11 + $0x70] sm:$0xf]
        %v1712 = vld [vmem:[#allocation11 + $0x74] sm:$0xf]
        %v1713 = vld [vmem:[#allocation11 + $0x78] sm:$0xf]
        %v1714 = vld [vmem:[#allocation11 + $0x7c] sm:$0xf]
        %v1715 = vld [vmem:[#allocation11 + $0x80] sm:$0xf]
        %v1716 = vld [vmem:[#allocation11 + $0x84] sm:$0xf]
        %v1717 = vld [vmem:[#allocation11 + $0x88] sm:$0xf]
        %v1718 = vld [vmem:[#allocation11 + $0x8c] sm:$0xf]
        %v1719 = vld [vmem:[#allocation11 + $0x90] sm:$0xf]
        %v1720 = vld [vmem:[#allocation11 + $0x94] sm:$0xf]
        %v1721 = vld [vmem:[#allocation11 + $0x98] sm:$0xf]
        %v1722 = vld [vmem:[#allocation11 + $0x9c] sm:$0xf]
        %v1723 = vld [vmem:[#allocation11 + $0xa0] sm:$0xf]
        %v1724 = vld [vmem:[#allocation11 + $0xa4] sm:$0xf]
        %v1725 = vld [vmem:[#allocation11 + $0xa8] sm:$0xf]
        %v1726 = vld [vmem:[#allocation11 + $0xac] sm:$0xf]
        %v1727 = vld [vmem:[#allocation11 + $0xb0] sm:$0xf]
        %v1728 = vld [vmem:[#allocation11 + $0xb4] sm:$0xf]
        %v1729 = vld [vmem:[#allocation11 + $0xb8] sm:$0xf]
        %v1730 = vld [vmem:[#allocation11 + $0xbc] sm:$0xf]
        %v1731 = vld [vmem:[#allocation11 + $0xc0] sm:$0xf]
        %v1732 = vld [vmem:[#allocation11 + $0xc4] sm:$0xf]
        %v1733 = vld [vmem:[#allocation11 + $0xc8] sm:$0xf]
        %v1734 = vld [vmem:[#allocation11 + $0xcc] sm:$0xf]
        %v1735 = vld [vmem:[#allocation11 + $0xd0] sm:$0xf]
        %v1736 = vld [vmem:[#allocation11 + $0xd4] sm:$0xf]
        %v1737 = vld [vmem:[#allocation11 + $0xd8] sm:$0xf]
        %v1738 = vld [vmem:[#allocation11 + $0xdc] sm:$0xf]
        %v1739 = vld [vmem:[#allocation11 + $0xe0] sm:$0xf]
        %v1740 = vld [vmem:[#allocation11 + $0xe4] sm:$0xf]
        %v1741 = vld [vmem:[#allocation11 + $0xe8] sm:$0xf]
        %v1742 = vld [vmem:[#allocation11 + $0xec] sm:$0xf]
        %v1743 = vld [vmem:[#allocation11 + $0xf0] sm:$0xf]
        %v1744 = vld [vmem:[#allocation11 + $0xf4] sm:$0xf]
        %v1745 = vld [vmem:[#allocation11 + $0xf8] sm:$0xf]
        %v1746 = vld [vmem:[#allocation11 + $0xfc] sm:$0xf]
        %v1747 = vld [vmem:[%s11] sm:$0x1]
        %v1749 = vlaneseq
        %v1750 = vshrl.u32 %v1749, 7
        %v1751 = vsub.s32 0, %v1750
        %v1752 = vrot.slane %v1747, %v1751
        %v1818 = vunpack.c.l.b16 %v1683
        %v1819 = vunpack.c.l.b16 %v1684
        %v1820 = vunpack.c.l.b16 %v1685
        %v1821 = vunpack.c.l.b16 %v1686
        %v1822 = vunpack.c.l.b16 %v1687
        %v1823 = vunpack.c.l.b16 %v1688
        %v1824 = vunpack.c.l.b16 %v1689
        %v1825 = vunpack.c.l.b16 %v1690
        %v1826 = vunpack.c.l.b16 %v1691
        %v1827 = vunpack.c.l.b16 %v1692
        %v1828 = vunpack.c.l.b16 %v1693
        %v1829 = vunpack.c.l.b16 %v1694
        %v1830 = vunpack.c.l.b16 %v1695
        %v1831 = vunpack.c.l.b16 %v1696
        %v1832 = vunpack.c.l.b16 %v1697
        %v1833 = vunpack.c.l.b16 %v1698
        %v1834 = vunpack.c.l.b16 %v1699
        %v1835 = vunpack.c.l.b16 %v1700
        %v1836 = vunpack.c.l.b16 %v1701
        %v1837 = vunpack.c.l.b16 %v1702
        %v1838 = vunpack.c.l.b16 %v1703
        %v1839 = vunpack.c.l.b16 %v1704
        %v1840 = vunpack.c.l.b16 %v1705
        %v1841 = vunpack.c.l.b16 %v1706
        %v1842 = vunpack.c.l.b16 %v1707
        %v1843 = vunpack.c.l.b16 %v1708
        %v1844 = vunpack.c.l.b16 %v1709
        %v1845 = vunpack.c.l.b16 %v1710
        %v1846 = vunpack.c.l.b16 %v1711
        %v1847 = vunpack.c.l.b16 %v1712
        %v1848 = vunpack.c.l.b16 %v1713
        %v1849 = vunpack.c.l.b16 %v1714
        %v1850 = vunpack.c.l.b16 %v1715
        %v1851 = vunpack.c.l.b16 %v1716
        %v1852 = vunpack.c.l.b16 %v1717
        %v1853 = vunpack.c.l.b16 %v1718
        %v1854 = vunpack.c.l.b16 %v1719
        %v1855 = vunpack.c.l.b16 %v1720
        %v1856 = vunpack.c.l.b16 %v1721
        %v1857 = vunpack.c.l.b16 %v1722
        %v1858 = vunpack.c.l.b16 %v1723
        %v1859 = vunpack.c.l.b16 %v1724
        %v1860 = vunpack.c.l.b16 %v1725
        %v1861 = vunpack.c.l.b16 %v1726
        %v1862 = vunpack.c.l.b16 %v1727
        %v1863 = vunpack.c.l.b16 %v1728
        %v1864 = vunpack.c.l.b16 %v1729
        %v1865 = vunpack.c.l.b16 %v1730
        %v1866 = vunpack.c.l.b16 %v1731
        %v1867 = vunpack.c.l.b16 %v1732
        %v1868 = vunpack.c.l.b16 %v1733
        %v1869 = vunpack.c.l.b16 %v1734
        %v1870 = vunpack.c.l.b16 %v1735
        %v1871 = vunpack.c.l.b16 %v1736
        %v1872 = vunpack.c.l.b16 %v1737
        %v1873 = vunpack.c.l.b16 %v1738
        %v1874 = vunpack.c.l.b16 %v1739
        %v1875 = vunpack.c.l.b16 %v1740
        %v1876 = vunpack.c.l.b16 %v1741
        %v1877 = vunpack.c.l.b16 %v1742
        %v1878 = vunpack.c.l.b16 %v1743
        %v1879 = vunpack.c.l.b16 %v1744
        %v1880 = vunpack.c.l.b16 %v1745
        %v1881 = vunpack.c.l.b16 %v1746
        %v1882 = vpack.c.b16 %v1819, %v1818
        %v1883 = vpack.c.b16 %v1821, %v1820
        %v1884 = vpack.c.b16 %v1823, %v1822
        %v1885 = vpack.c.b16 %v1825, %v1824
        %v1886 = vpack.c.b16 %v1827, %v1826
        %v1887 = vpack.c.b16 %v1829, %v1828
        %v1888 = vpack.c.b16 %v1831, %v1830
        %v1889 = vpack.c.b16 %v1833, %v1832
        %v1890 = vpack.c.b16 %v1835, %v1834
        %v1891 = vpack.c.b16 %v1837, %v1836
        %v1892 = vpack.c.b16 %v1839, %v1838
        %v1893 = vpack.c.b16 %v1841, %v1840
        %v1894 = vpack.c.b16 %v1843, %v1842
        %v1895 = vpack.c.b16 %v1845, %v1844
        %v1896 = vpack.c.b16 %v1847, %v1846
        %v1897 = vpack.c.b16 %v1849, %v1848
        %v1898 = vpack.c.b16 %v1851, %v1850
        %v1899 = vpack.c.b16 %v1853, %v1852
        %v1900 = vpack.c.b16 %v1855, %v1854
        %v1901 = vpack.c.b16 %v1857, %v1856
        %v1902 = vpack.c.b16 %v1859, %v1858
        %v1903 = vpack.c.b16 %v1861, %v1860
        %v1904 = vpack.c.b16 %v1863, %v1862
        %v1905 = vpack.c.b16 %v1865, %v1864
        %v1906 = vpack.c.b16 %v1867, %v1866
        %v1907 = vpack.c.b16 %v1869, %v1868
        %v1908 = vpack.c.b16 %v1871, %v1870
        %v1909 = vpack.c.b16 %v1873, %v1872
        %v1910 = vpack.c.b16 %v1875, %v1874
        %v1911 = vpack.c.b16 %v1877, %v1876
        %v1912 = vpack.c.b16 %v1879, %v1878
        %v1913 = vpack.c.b16 %v1881, %v1880
        %1946 = vmatprep.subr.bf16.mxu0 0
        %1947 = vmatpush1.bf16.msra.mxu0 %v1889
        %1948 = vmatprep.subr.bf16.mxu0 0
        %1949 = vmatpush1.bf16.msra.mxu0 %v1888
        %1950 = vmatprep.subr.bf16.mxu0 0
        %1951 = vmatpush1.bf16.msra.mxu0 %v1887
        %1952 = vmatprep.subr.bf16.mxu0 0
        %1953 = vmatpush1.bf16.msra.mxu0 %v1886
        %1954 = vmatprep.subr.bf16.mxu0 0
        %1955 = vmatpush1.bf16.msra.mxu0 %v1885
        %1956 = vmatprep.subr.bf16.mxu0 0
        %1957 = vmatpush1.bf16.msra.mxu0 %v1884
        %1958 = vmatprep.subr.bf16.mxu0 0
        %1959 = vmatpush1.bf16.msra.mxu0 %v1883
        %1960 = vmatprep.subr.bf16.mxu0 0
        %1961 = vmatpush1.bf16.msra.mxu0 %v1882
        %1962 = vmatprep.subr.bf16.mxu0 0
        %1963 = vmatpush2.bf16.msra.mxu0 %v1897
        %1964 = vmatprep.subr.bf16.mxu0 0
        %1965 = vmatpush2.bf16.msra.mxu0 %v1896
        %1966 = vmatprep.subr.bf16.mxu0 0
        %1967 = vmatpush2.bf16.msra.mxu0 %v1895
        %1968 = vmatprep.subr.bf16.mxu0 0
        %1969 = vmatpush2.bf16.msra.mxu0 %v1894
        %1970 = vmatprep.subr.bf16.mxu0 0
        %1971 = vmatpush2.bf16.msra.mxu0 %v1893
        %1972 = vmatprep.subr.bf16.mxu0 0
        %1973 = vmatpush2.bf16.msra.mxu0 %v1892
        %1974 = vmatprep.subr.bf16.mxu0 0
        %1975 = vmatpush2.bf16.msra.mxu0 %v1891
        %1976 = vmatprep.subr.bf16.mxu0 0
        %1977 = vmatpush2.bf16.msra.mxu0 %v1890
        %1978 = vmatprep.mubr.bf16.mxu0 %v1680
        %1979 = vmatmul.mubr.bf16.gmra.mxu0 %v1679
        %v1980 = vpop.f32.mrf.mxu0
        %v1981 = vadd.f32 %v1752, %v1980
        %v1982 = vpop.f32.mrf.mxu0
        %v1983 = vpop.f32.mrf.mxu0
        %v1984 = vpop.f32.mrf.mxu0
        %1985 = vdwg.mxu0
        %1986 = vmatprep.subr.bf16.mxu0 0
        %1987 = vmatpush1.bf16.msra.mxu0 %v1905
        %1988 = vmatprep.subr.bf16.mxu0 0
        %1989 = vmatpush1.bf16.msra.mxu0 %v1904
        %1990 = vmatprep.subr.bf16.mxu0 0
        %1991 = vmatpush1.bf16.msra.mxu0 %v1903
        %1992 = vmatprep.subr.bf16.mxu0 0
        %1993 = vmatpush1.bf16.msra.mxu0 %v1902
        %1994 = vmatprep.subr.bf16.mxu0 0
        %1995 = vmatpush1.bf16.msra.mxu0 %v1901
        %1996 = vmatprep.subr.bf16.mxu0 0
        %1997 = vmatpush1.bf16.msra.mxu0 %v1900
        %1998 = vmatprep.subr.bf16.mxu0 0
        %1999 = vmatpush1.bf16.msra.mxu0 %v1899
        %2000 = vmatprep.subr.bf16.mxu0 0
        %2001 = vmatpush1.bf16.msra.mxu0 %v1898
        %2002 = vmatprep.subr.bf16.mxu0 0
        %2003 = vmatpush2.bf16.msra.mxu0 %v1913
        %2004 = vmatprep.subr.bf16.mxu0 0
        %2005 = vmatpush2.bf16.msra.mxu0 %v1912
        %2006 = vmatprep.subr.bf16.mxu0 0
        %2007 = vmatpush2.bf16.msra.mxu0 %v1911
        %2008 = vmatprep.subr.bf16.mxu0 0
        %2009 = vmatpush2.bf16.msra.mxu0 %v1910
        %2010 = vmatprep.subr.bf16.mxu0 0
        %2011 = vmatpush2.bf16.msra.mxu0 %v1909
        %2012 = vmatprep.subr.bf16.mxu0 0
        %2013 = vmatpush2.bf16.msra.mxu0 %v1908
        %2014 = vmatprep.subr.bf16.mxu0 0
        %2015 = vmatpush2.bf16.msra.mxu0 %v1907
        %2016 = vmatprep.subr.bf16.mxu0 0
        %2017 = vmatpush2.bf16.msra.mxu0 %v1906
        %2018 = vmatprep.mubr.bf16.mxu0 %v1682
        %2019 = vmatmul.mubr.bf16.gmra.mxu0 %v1681
        %v2020 = vpop.f32.mrf.mxu0
        %v2021 = vadd.f32 %v1981, %v2020
        %v2022 = vpop.f32.mrf.mxu0
        %v2023 = vpop.f32.mrf.mxu0
        %v2024 = vpop.f32.mrf.mxu0
        %2025 = vdwg.mxu0
        %v2026 = vadd.f32 %v1334, %v2021
        %2027 = vst [vmem:[%s486] sm:$0xff] %v2026
        %s2028 = sand.u32 %s296, 1
        %s2029 = scalar_lea.sflag [#allocation5], %s2028
        %s2030 = sand.u32 %s296, 1
        %s2031 = smul.addr %s2030, 8
        %s2032 = scalar_lea.vmem [#allocation12], %s2031
        // Predicated region
        $region89: #{tpu_custom_call.1} parent=67 // pred_check
          %p2033 = pneg %p306
        $region90: #{tpu_custom_call.1} parent=67 // pred_check_branch
          %2035 = sbr.rel (%p2033) target = $region92
        $region91: #{tpu_custom_call.1} parent=67 // pred_region
          %s2037 = ssub.s32 128, 128
          %2038 = vsyncadd %s2029, %s2037
          %s2039 = smul.addr %s31, 128
          %s2040 = scalar_lea.hbm %s12, %s2039
          %s2042 = sshll.u32 %s2032, 4
          %s2043 = int_to_ptr.vmem [resolvable:$true] %s2042
          %2045 = dma.vmem_to_hbm [thread:$0]  %s2043, 128, %s2040, %s2029
        $region92: #{tpu_custom_call.1} parent=67 // pred_fallthru
          _
      $region68: #{tpu_custom_call.1} parent=5 // pred_fallthru
        _
      %p2046 = scmp.le.s32.totalorder 2, %s26
      // Predicated region
      $region93: #{tpu_custom_call.1} parent=5 // pred_check
        %p2047 = pneg %p2046
      $region94: #{tpu_custom_call.1} parent=5 // pred_check_branch
        %2049 = sbr.rel (%p2047) target = $region96
      $region95: #{tpu_custom_call.1} parent=5 // pred_region
        %s2050 = ssub.s32 %s26, 2
        // Predicated region
        $region97: #{tpu_custom_call.1} parent=95 // pred_check
          %p2051 = pneg %p312
        $region98: #{tpu_custom_call.1} parent=95 // pred_check_branch
          %2053 = sbr.rel (%p2051) target = $region100
        $region99: #{tpu_custom_call.1} parent=95 // pred_region
          %s2054 = sand.u32 %s297, 1
          %s2055 = scalar_lea.sflag [#allocation5], %s2054
          %s2056 = sand.u32 %s297, 1
          %s2057 = smul.addr %s2056, 8
          %s2058 = scalar_lea.vmem [#allocation12], %s2057
          %2059 = dma.done %s2055, 128
        $region100: #{tpu_custom_call.1} parent=95 // pred_fallthru
          _
      $region96: #{tpu_custom_call.1} parent=5 // pred_fallthru
        _
    $region6: #{tpu_custom_call.1} parent=1 // loop_footer
      %s30 = sadd.s32 1, %s26
    $region7: #{tpu_custom_call.1} parent=1 // loop_footer_branch
      %25 = sbr.rel target = $region3
    $region8: #{tpu_custom_call.1} parent=1 // loop_exit
      _
    %2060 = vsyncpa [#allocation4], 1
    %s2061 = scalar_lea.sflag [#allocation4], 1
    %2062 = vsyncpa %s2061, 1
    %2063 = vsyncpa [#allocation7], 1
    %2064 = vsyncpa [#allocation10], 1
    %2065 = vsyncpa [#allocation5], 1
    %s2066 = scalar_lea.sflag [#allocation5], 1
    %2067 = vsyncpa %s2066, 1

// kernel: tpu_custom_call.1
$region0: #{tpu_custom_call.1}
  #allocation0 [shape = 'u32[]', space=smem, size = 0x4, offset = 0x4, fixed_abs, tag = 'smem constant byte address 0x4 - core index']
  #allocation1 [shape = 'u32[144,128]{1,0:T(1,128)}', space=vmem, size = 0x12000, scoped, tag = 'internal scratch']
  #allocation2 [shape = 'f32[8,128]{1,0:T(8,128)}', space=vmem, size = 0x1000, scoped, tag = 'scratch operand']
  %s0 = inlined_call_operand.hbm [shape: f32[2,8,128], index: 0, kind: input, shape index: {}]
  %s1 = inlined_call_operand.vmem [shape: f32[1,128], index: 1, kind: input, shape index: {}]
  %s2 = inlined_call_operand.vmem [shape: f32[1,128], index: 2, kind: input, shape index: {}]
  %s3 = inlined_call_operand.hbm [shape: bf16[128,384], index: 3, kind: input, shape index: {}]
  %s4 = inlined_call_operand.hbm [shape: bf16[128,128], index: 4, kind: input, shape index: {}]
  %s5 = inlined_call_operand.vmem [shape: f32[1,128], index: 5, kind: input, shape index: {}]
  %s6 = inlined_call_operand.vmem [shape: f32[1,128], index: 6, kind: input, shape index: {}]
  %s7 = inlined_call_operand.vmem [shape: f32[1,128], index: 7, kind: input, shape index: {}]
  %s8 = inlined_call_operand.hbm [shape: bf16[128,512], index: 8, kind: input, shape index: {}]
  %s9 = inlined_call_operand.vmem [shape: f32[1,512], index: 9, kind: input, shape index: {}]
  %s10 = inlined_call_operand.hbm [shape: bf16[512,128], index: 10, kind: input, shape index: {}]
  %s11 = inlined_call_operand.vmem [shape: f32[1,128], index: 11, kind: input, shape index: {}]
  %s12 = inlined_call_operand.hbm [shape: f32[2,8,128], index: 12, kind: output, shape index: {}]
  %s13 = sld [smem:[#allocation0]]
  $region101: #{tpu_custom_call.1} parent=0
    _
  %s15 = ssub.s32 1, %s13
  %s16 = scalar_select 0, %s15, %s13
  $region1: #{tpu_custom_call.1} parent=0
    #allocation3 [shape = 'u8[8192]{0}', space=vmem, size = 0x2000, scoped, tag = 'input window, operand 0']
    #allocation4 [shape = 's32[2]{0}', space=sflag, size = 0x8, scoped, tag = 'scoped memory for tpu_custom_call.1']
    #allocation5 [shape = 's32[2]{0}', space=sflag, size = 0x8, scoped, tag = 'scoped memory for tpu_custom_call.1']
    #allocation6 [shape = 'u8[98304]{0}', space=vmem, size = 0x18000, scoped, tag = 'input window, operand 3, single buffered']
    #allocation7 [shape = 's32[1]{0}', space=sflag, size = 0x4, scoped, tag = 'scoped memory for tpu_custom_call.1']
    #allocation8 [shape = 'u8[32768]{0}', space=vmem, size = 0x8000, scoped, tag = 'input window, operand 4, single buffered']
    #allocation9 [shape = 'u8[131072]{0}', space=vmem, size = 0x20000, scoped, tag = 'input window, operand 8, single buffered']
    #allocation10 [shape = 's32[1]{0}', space=sflag, size = 0x4, scoped, tag = 'scoped memory for tpu_custom_call.1']
    #allocation11 [shape = 'u8[131072]{0}', space=vmem, size = 0x20000, scoped, tag = 'input window, operand 10, single buffered']
    #allocation12 [shape = 'u8[8192]{0}', space=vmem, size = 0x2000, scoped, tag = 'output window, operand 0']
    %17 = vsyncpa [#allocation4], 0
    %s18 = scalar_lea.sflag [#allocation4], 1
    %19 = vsyncpa %s18, 0
    %20 = vsyncpa [#allocation7], 0
    %21 = vsyncpa [#allocation10], 0
    %22 = vsyncpa [#allocation5], 0
    %s23 = scalar_lea.sflag [#allocation5], 1
    %24 = vsyncpa %s23, 0
    loop: start=0, step=1, limit=4
    $region2: #{tpu_custom_call.1} parent=1 // loop_pre_header
      _
    $region3: #{tpu_custom_call.1} parent=1 // loop_header
      %s26 = sphi 0, %s30
      %p27 = scmp.ge.s32.totalorder %s26, 4
      %s36 = sphi 0, %s38
      %s39 = sphi 0, %s36
      %s40 = sphi 0, %s39
      %s56 = sphi 0, %s40
      %s60 = sphi 0, %s60
      %s62 = sphi 0, %s60
      %s63 = sphi 0, %s62
      %s77 = sphi 0, %s63
      %s81 = sphi 0, %s81
      %s83 = sphi 0, %s81
      %s84 = sphi 0, %s83
      %s98 = sphi 0, %s84
      %s102 = sphi 0, %s102
      %s104 = sphi 0, %s102
      %s105 = sphi 0, %s104
      %s119 = sphi 0, %s105
      %s123 = sphi 0, %s123
      %s125 = sphi 0, %s123
      %s126 = sphi 0, %s125
      %s140 = sphi 0, %s126
      %s144 = sphi 0, %s144
      %s146 = sphi 0, %s144
      %s147 = sphi 0, %s146
      %s161 = sphi 0, %s147
      %s165 = sphi 0, %s165
      %s167 = sphi 0, %s165
      %s168 = sphi 0, %s167
      %s182 = sphi 0, %s168
      %s186 = sphi 0, %s186
      %s188 = sphi 0, %s186
      %s189 = sphi 0, %s188
      %s203 = sphi 0, %s189
      %s207 = sphi 0, %s207
      %s209 = sphi 0, %s207
      %s210 = sphi 0, %s209
      %s224 = sphi 0, %s210
      %s228 = sphi 0, %s228
      %s230 = sphi 0, %s228
      %s231 = sphi 0, %s230
      %s245 = sphi 0, %s231
      %s249 = sphi 0, %s249
      %s251 = sphi 0, %s249
      %s252 = sphi 0, %s251
      %s266 = sphi 0, %s252
      %s270 = sphi 0, %s270
      %s272 = sphi 0, %s270
      %s273 = sphi 0, %s272
      %s287 = sphi 0, %s273
      %s293 = sphi 0, %s295
      %s296 = sphi 0, %s293
      %s297 = sphi 0, %s296
      %s313 = sphi 0, %s297
    $region4: #{tpu_custom_call.1} parent=1 // loop_header_branch
      %29 = sbr.rel (%p27) target = $region8
    $region5: #{tpu_custom_call.1} parent=1 // loop_body
      %s31 = ssub.s32 %s26, 1
      %s32 = ssub.s32 %s26, 2
      %s33 = sadd.s32 %s26, 1
      %s34 = ssub.s32 %s26, %s33
      %p35 = scmp.eq.s32.totalorder %s34, 0
      %s37 = sadd.s32 %s36, 1
      %s38 = scalar_select %p35, %s36, %s37
      %p41 = pneg %p35
      %p42 = scmp.eq.s32.totalorder %s26, 1
      %p43 = por %p41, %p42
      %p44 = scmp.ne.s32.totalorder %s36, %s39
      %p45 = scmp.eq.s32.totalorder %s26, 0
      %p46 = por %p44, %p45
      %p47 = scmp.ne.s32.totalorder %s36, %s39
      %p48 = scmp.eq.s32.totalorder %s31, 1
      %p49 = por %p47, %p48
      %p50 = scmp.ne.s32.totalorder %s39, %s40
      %p51 = scmp.eq.s32.totalorder %s31, 0
      %p52 = por %p50, %p51
      %p53 = scmp.ne.s32.totalorder %s39, %s40
      %p54 = scmp.eq.s32.totalorder %s32, 1
      %p55 = por %p53, %p54
      %p57 = scmp.ne.s32.totalorder %s40, %s56
      %p58 = scmp.eq.s32.totalorder %s32, 0
      %p59 = por %p57, %p58
      %s61 = sadd.s32 %s60, 1
      %p64 = scmp.eq.s32.totalorder %s26, 1
      %p65 = scmp.ne.s32.totalorder %s60, %s62
      %p66 = scmp.eq.s32.totalorder %s26, 0
      %p67 = por %p65, %p66
      %p68 = scmp.ne.s32.totalorder %s60, %s62
      %p69 = scmp.eq.s32.totalorder %s31, 1
      %p70 = por %p68, %p69
      %p71 = scmp.ne.s32.totalorder %s62, %s63
      %p72 = scmp.eq.s32.totalorder %s31, 0
      %p73 = por %p71, %p72
      %p74 = scmp.ne.s32.totalorder %s62, %s63
      %p75 = scmp.eq.s32.totalorder %s32, 1
      %p76 = por %p74, %p75
      %p78 = scmp.ne.s32.totalorder %s63, %s77
      %p79 = scmp.eq.s32.totalorder %s32, 0
      %p80 = por %p78, %p79
      %s82 = sadd.s32 %s81, 1
      %p85 = scmp.eq.s32.totalorder %s26, 1
      %p86 = scmp.ne.s32.totalorder %s81, %s83
      %p87 = scmp.eq.s32.totalorder %s26, 0
      %p88 = por %p86, %p87
      %p89 = scmp.ne.s32.totalorder %s81, %s83
      %p90 = scmp.eq.s32.totalorder %s31, 1
      %p91 = por %p89, %p90
      %p92 = scmp.ne.s32.totalorder %s83, %s84
      %p93 = scmp.eq.s32.totalorder %s31, 0
      %p94 = por %p92, %p93
      %p95 = scmp.ne.s32.totalorder %s83, %s84
      %p96 = scmp.eq.s32.totalorder %s32, 1
      %p97 = por %p95, %p96
      %p99 = scmp.ne.s32.totalorder %s84, %s98
      %p100 = scmp.eq.s32.totalorder %s32, 0
      %p101 = por %p99, %p100
      %s103 = sadd.s32 %s102, 1
      %p106 = scmp.eq.s32.totalorder %s26, 1
      %p107 = scmp.ne.s32.totalorder %s102, %s104
      %p108 = scmp.eq.s32.totalorder %s26, 0
      %p109 = por %p107, %p108
      %p110 = scmp.ne.s32.totalorder %s102, %s104
      %p111 = scmp.eq.s32.totalorder %s31, 1
      %p112 = por %p110, %p111
      %p113 = scmp.ne.s32.totalorder %s104, %s105
      %p114 = scmp.eq.s32.totalorder %s31, 0
      %p115 = por %p113, %p114
      %p116 = scmp.ne.s32.totalorder %s104, %s105
      %p117 = scmp.eq.s32.totalorder %s32, 1
      %p118 = por %p116, %p117
      %p120 = scmp.ne.s32.totalorder %s105, %s119
      %p121 = scmp.eq.s32.totalorder %s32, 0
      %p122 = por %p120, %p121
      %s124 = sadd.s32 %s123, 1
      %p127 = scmp.eq.s32.totalorder %s26, 1
      %p128 = scmp.ne.s32.totalorder %s123, %s125
      %p129 = scmp.eq.s32.totalorder %s26, 0
      %p130 = por %p128, %p129
      %p131 = scmp.ne.s32.totalorder %s123, %s125
      %p132 = scmp.eq.s32.totalorder %s31, 1
      %p133 = por %p131, %p132
      %p134 = scmp.ne.s32.totalorder %s125, %s126
      %p135 = scmp.eq.s32.totalorder %s31, 0
      %p136 = por %p134, %p135
      %p137 = scmp.ne.s32.totalorder %s125, %s126
      %p138 = scmp.eq.s32.totalorder %s32, 1
      %p139 = por %p137, %p138
      %p141 = scmp.ne.s32.totalorder %s126, %s140
      %p142 = scmp.eq.s32.totalorder %s32, 0
      %p143 = por %p141, %p142
      %s145 = sadd.s32 %s144, 1
      %p148 = scmp.eq.s32.totalorder %s26, 1
      %p149 = scmp.ne.s32.totalorder %s144, %s146
      %p150 = scmp.eq.s32.totalorder %s26, 0
      %p151 = por %p149, %p150
      %p152 = scmp.ne.s32.totalorder %s144, %s146
      %p153 = scmp.eq.s32.totalorder %s31, 1
      %p154 = por %p152, %p153
      %p155 = scmp.ne.s32.totalorder %s146, %s147
      %p156 = scmp.eq.s32.totalorder %s31, 0
      %p157 = por %p155, %p156
      %p158 = scmp.ne.s32.totalorder %s146, %s147
      %p159 = scmp.eq.s32.totalorder %s32, 1
      %p160 = por %p158, %p159
      %p162 = scmp.ne.s32.totalorder %s147, %s161
      %p163 = scmp.eq.s32.totalorder %s32, 0
      %p164 = por %p162, %p163
      %s166 = sadd.s32 %s165, 1
      %p169 = scmp.eq.s32.totalorder %s26, 1
      %p170 = scmp.ne.s32.totalorder %s165, %s167
      %p171 = scmp.eq.s32.totalorder %s26, 0
      %p172 = por %p170, %p171
      %p173 = scmp.ne.s32.totalorder %s165, %s167
      %p174 = scmp.eq.s32.totalorder %s31, 1
      %p175 = por %p173, %p174
      %p176 = scmp.ne.s32.totalorder %s167, %s168
      %p177 = scmp.eq.s32.totalorder %s31, 0
      %p178 = por %p176, %p177
      %p179 = scmp.ne.s32.totalorder %s167, %s168
      %p180 = scmp.eq.s32.totalorder %s32, 1
      %p181 = por %p179, %p180
      %p183 = scmp.ne.s32.totalorder %s168, %s182
      %p184 = scmp.eq.s32.totalorder %s32, 0
      %p185 = por %p183, %p184
      %s187 = sadd.s32 %s186, 1
      %p190 = scmp.eq.s32.totalorder %s26, 1
      %p191 = scmp.ne.s32.totalorder %s186, %s188
      %p192 = scmp.eq.s32.totalorder %s26, 0
      %p193 = por %p191, %p192
      %p194 = scmp.ne.s32.totalorder %s186, %s188
      %p195 = scmp.eq.s32.totalorder %s31, 1
      %p196 = por %p194, %p195
      %p197 = scmp.ne.s32.totalorder %s188, %s189
      %p198 = scmp.eq.s32.totalorder %s31, 0
      %p199 = por %p197, %p198
      %p200 = scmp.ne.s32.totalorder %s188, %s189
      %p201 = scmp.eq.s32.totalorder %s32, 1
      %p202 = por %p200, %p201
      %p204 = scmp.ne.s32.totalorder %s189, %s203
      %p205 = scmp.eq.s32.totalorder %s32, 0
      %p206 = por %p204, %p205
      %s208 = sadd.s32 %s207, 1
      %p211 = scmp.eq.s32.totalorder %s26, 1
      %p212 = scmp.ne.s32.totalorder %s207, %s209
      %p213 = scmp.eq.s32.totalorder %s26, 0
      %p214 = por %p212, %p213
      %p215 = scmp.ne.s32.totalorder %s207, %s209
      %p216 = scmp.eq.s32.totalorder %s31, 1
      %p217 = por %p215, %p216
      %p218 = scmp.ne.s32.totalorder %s209, %s210
      %p219 = scmp.eq.s32.totalorder %s31, 0
      %p220 = por %p218, %p219
      %p221 = scmp.ne.s32.totalorder %s209, %s210
      %p222 = scmp.eq.s32.totalorder %s32, 1
      %p223 = por %p221, %p222
      %p225 = scmp.ne.s32.totalorder %s210, %s224
      %p226 = scmp.eq.s32.totalorder %s32, 0
      %p227 = por %p225, %p226
      %s229 = sadd.s32 %s228, 1
      %p232 = scmp.eq.s32.totalorder %s26, 1
      %p233 = scmp.ne.s32.totalorder %s228, %s230
      %p234 = scmp.eq.s32.totalorder %s26, 0
      %p235 = por %p233, %p234
      %p236 = scmp.ne.s32.totalorder %s228, %s230
      %p237 = scmp.eq.s32.totalorder %s31, 1
      %p238 = por %p236, %p237
      %p239 = scmp.ne.s32.totalorder %s230, %s231
      %p240 = scmp.eq.s32.totalorder %s31, 0
      %p241 = por %p239, %p240
      %p242 = scmp.ne.s32.totalorder %s230, %s231
      %p243 = scmp.eq.s32.totalorder %s32, 1
      %p244 = por %p242, %p243
      %p246 = scmp.ne.s32.totalorder %s231, %s245
      %p247 = scmp.eq.s32.totalorder %s32, 0
      %p248 = por %p246, %p247
      %s250 = sadd.s32 %s249, 1
      %p253 = scmp.eq.s32.totalorder %s26, 1
      %p254 = scmp.ne.s32.totalorder %s249, %s251
      %p255 = scmp.eq.s32.totalorder %s26, 0
      %p256 = por %p254, %p255
      %p257 = scmp.ne.s32.totalorder %s249, %s251
      %p258 = scmp.eq.s32.totalorder %s31, 1
      %p259 = por %p257, %p258
      %p260 = scmp.ne.s32.totalorder %s251, %s252
      %p261 = scmp.eq.s32.totalorder %s31, 0
      %p262 = por %p260, %p261
      %p263 = scmp.ne.s32.totalorder %s251, %s252
      %p264 = scmp.eq.s32.totalorder %s32, 1
      %p265 = por %p263, %p264
      %p267 = scmp.ne.s32.totalorder %s252, %s266
      %p268 = scmp.eq.s32.totalorder %s32, 0
      %p269 = por %p267, %p268
      %s271 = sadd.s32 %s270, 1
      %p274 = scmp.eq.s32.totalorder %s26, 1
      %p275 = scmp.ne.s32.totalorder %s270, %s272
      %p276 = scmp.eq.s32.totalorder %s26, 0
      %p277 = por %p275, %p276
      %p278 = scmp.ne.s32.totalorder %s270, %s272
      %p279 = scmp.eq.s32.totalorder %s31, 1
      %p280 = por %p278, %p279
      %p281 = scmp.ne.s32.totalorder %s272, %s273
      %p282 = scmp.eq.s32.totalorder %s31, 0
      %p283 = por %p281, %p282
      %p284 = scmp.ne.s32.totalorder %s272, %s273
      %p285 = scmp.eq.s32.totalorder %s32, 1
      %p286 = por %p284, %p285
      %p288 = scmp.ne.s32.totalorder %s273, %s287
      %p289 = scmp.eq.s32.totalorder %s32, 0
      %p290 = por %p288, %p289
      %s291 = ssub.s32 %s26, %s33
      %p292 = scmp.eq.s32.totalorder %s291, 0
      %s294 = sadd.s32 %s293, 1
      %s295 = scalar_select %p292, %s293, %s294
      %p298 = pneg %p292
      %p299 = scmp.eq.s32.totalorder %s26, 1
      %p300 = por %p298, %p299
      %p301 = scmp.ne.s32.totalorder %s293, %s296
      %p302 = scmp.eq.s32.totalorder %s26, 0
      %p303 = por %p301, %p302
      %p304 = scmp.ne.s32.totalorder %s293, %s296
      %p305 = scmp.eq.s32.totalorder %s31, 1
      %p306 = por %p304, %p305
      %p307 = scmp.ne.s32.totalorder %s296, %s297
      %p308 = scmp.eq.s32.totalorder %s31, 0
      %p309 = por %p307, %p308
      %p310 = scmp.ne.s32.totalorder %s296, %s297
      %p311 = scmp.eq.s32.totalorder %s32, 1
      %p312 = por %p310, %p311
      %p314 = scmp.ne.s32.totalorder %s297, %s313
      %p315 = scmp.eq.s32.totalorder %s32, 0
      %p316 = por %p314, %p315
      %p317 = scmp.le.s32.totalorder 1, %s26
      %p318 = scmp.lt.s32.totalorder %s26, 3
      %p319 = pnand %p317, %p318
      %p320 = pneg %p319
      // Predicated region
      $region9: #{tpu_custom_call.1} parent=5 // pred_check
        _
      $region10: #{tpu_custom_call.1} parent=5 // pred_check_branch
        %322 = sbr.rel (%p319) target = $region12
      $region11: #{tpu_custom_call.1} parent=5 // pred_region
        %s323 = ssub.s32 %s26, 1
        // Predicated region
        $region13: #{tpu_custom_call.1} parent=11 // pred_check
          %p324 = pneg %p73
        $region14: #{tpu_custom_call.1} parent=11 // pred_check_branch
          %326 = sbr.rel (%p324) target = $region16
        $region15: #{tpu_custom_call.1} parent=11 // pred_region
          _
        $region16: #{tpu_custom_call.1} parent=11 // pred_fallthru
          _
        // Predicated region
        $region17: #{tpu_custom_call.1} parent=11 // pred_check
          %p327 = pneg %p94
        $region18: #{tpu_custom_call.1} parent=11 // pred_check_branch
          %329 = sbr.rel (%p327) target = $region20
        $region19: #{tpu_custom_call.1} parent=11 // pred_region
          _
        $region20: #{tpu_custom_call.1} parent=11 // pred_fallthru
          _
        // Predicated region
        $region21: #{tpu_custom_call.1} parent=11 // pred_check
          %p330 = pneg %p115
        $region22: #{tpu_custom_call.1} parent=11 // pred_check_branch
          %332 = sbr.rel (%p330) target = $region24
        $region23: #{tpu_custom_call.1} parent=11 // pred_region
          %s334 = ssub.s32 3072, 3072
          %335 = vsyncadd [#allocation7], %s334
          %s336 = sshll.u32 [#allocation6], 4
          %s337 = int_to_ptr.vmem [resolvable:$true] %s336
          %342 = dma.hbm_to_vmem [thread:$0]  %s3, 3072, %s337, [#allocation7], 192, 192, 12
        $region24: #{tpu_custom_call.1} parent=11 // pred_fallthru
          _
        // Predicated region
        $region25: #{tpu_custom_call.1} parent=11 // pred_check
          %p343 = pneg %p136
        $region26: #{tpu_custom_call.1} parent=11 // pred_check_branch
          %345 = sbr.rel (%p343) target = $region28
        $region27: #{tpu_custom_call.1} parent=11 // pred_region
          %s347 = ssub.s32 1024, 1024
          %348 = vsyncadd [#allocation7], %s347
          %s349 = sshll.u32 [#allocation8], 4
          %s350 = int_to_ptr.vmem [resolvable:$true] %s349
          %355 = dma.hbm_to_vmem [thread:$0]  %s4, 1024, %s350, [#allocation7], 64, 64, 4
        $region28: #{tpu_custom_call.1} parent=11 // pred_fallthru
          _
        // Predicated region
        $region29: #{tpu_custom_call.1} parent=11 // pred_check
          %p356 = pneg %p157
        $region30: #{tpu_custom_call.1} parent=11 // pred_check_branch
          %358 = sbr.rel (%p356) target = $region32
        $region31: #{tpu_custom_call.1} parent=11 // pred_region
          _
        $region32: #{tpu_custom_call.1} parent=11 // pred_fallthru
          _
        // Predicated region
        $region33: #{tpu_custom_call.1} parent=11 // pred_check
          %p359 = pneg %p178
        $region34: #{tpu_custom_call.1} parent=11 // pred_check_branch
          %361 = sbr.rel (%p359) target = $region36
        $region35: #{tpu_custom_call.1} parent=11 // pred_region
          _
        $region36: #{tpu_custom_call.1} parent=11 // pred_fallthru
          _
        // Predicated region
        $region37: #{tpu_custom_call.1} parent=11 // pred_check
          %p362 = pneg %p199
        $region38: #{tpu_custom_call.1} parent=11 // pred_check_branch
          %364 = sbr.rel (%p362) target = $region40
        $region39: #{tpu_custom_call.1} parent=11 // pred_region
          _
        $region40: #{tpu_custom_call.1} parent=11 // pred_fallthru
          _
        // Predicated region
        $region41: #{tpu_custom_call.1} parent=11 // pred_check
          %p365 = pneg %p220
        $region42: #{tpu_custom_call.1} parent=11 // pred_check_branch
          %367 = sbr.rel (%p365) target = $region44
        $region43: #{tpu_custom_call.1} parent=11 // pred_region
          %s369 = ssub.s32 4096, 4096
          %370 = vsyncadd [#allocation10], %s369
          %s371 = sshll.u32 [#allocation9], 4
          %s372 = int_to_ptr.vmem [resolvable:$true] %s371
          %377 = dma.hbm_to_vmem [thread:$0]  %s8, 4096, %s372, [#allocation10], 256, 256, 16
        $region44: #{tpu_custom_call.1} parent=11 // pred_fallthru
          _
        // Predicated region
        $region45: #{tpu_custom_call.1} parent=11 // pred_check
          %p378 = pneg %p241
        $region46: #{tpu_custom_call.1} parent=11 // pred_check_branch
          %380 = sbr.rel (%p378) target = $region48
        $region47: #{tpu_custom_call.1} parent=11 // pred_region
          _
        $region48: #{tpu_custom_call.1} parent=11 // pred_fallthru
          _
        // Predicated region
        $region49: #{tpu_custom_call.1} parent=11 // pred_check
          %p381 = pneg %p262
        $region50: #{tpu_custom_call.1} parent=11 // pred_check_branch
          %383 = sbr.rel (%p381) target = $region52
        $region51: #{tpu_custom_call.1} parent=11 // pred_region
          %s385 = ssub.s32 4096, 4096
          %386 = vsyncadd [#allocation10], %s385
          %s387 = sshll.u32 [#allocation11], 4
          %s388 = int_to_ptr.vmem [resolvable:$true] %s387
          %393 = dma.hbm_to_vmem [thread:$0]  %s10, 4096, %s388, [#allocation10], 64, 64, 4
        $region52: #{tpu_custom_call.1} parent=11 // pred_fallthru
          _
        // Predicated region
        $region53: #{tpu_custom_call.1} parent=11 // pred_check
          %p394 = pneg %p283
        $region54: #{tpu_custom_call.1} parent=11 // pred_check_branch
          %396 = sbr.rel (%p394) target = $region56
        $region55: #{tpu_custom_call.1} parent=11 // pred_region
          _
        $region56: #{tpu_custom_call.1} parent=11 // pred_fallthru
          _
      $region12: #{tpu_custom_call.1} parent=5 // pred_fallthru
        _
      %p397 = scmp.lt.s32.totalorder %s26, 2
      // Predicated region
      $region57: #{tpu_custom_call.1} parent=5 // pred_check
        %p398 = pneg %p397
      $region58: #{tpu_custom_call.1} parent=5 // pred_check_branch
        %400 = sbr.rel (%p398) target = $region60
      $region59: #{tpu_custom_call.1} parent=5 // pred_region
        // Predicated region
        $region61: #{tpu_custom_call.1} parent=59 // pred_check
          %p401 = pneg %p46
        $region62: #{tpu_custom_call.1} parent=59 // pred_check_branch
          %403 = sbr.rel (%p401) target = $region64
        $region63: #{tpu_custom_call.1} parent=59 // pred_region
          %s404 = sand.u32 %s36, 1
          %s405 = scalar_lea.sflag [#allocation4], %s404
          %s406 = sand.u32 %s36, 1
          %s407 = smul.addr %s406, 8
          %s408 = scalar_lea.vmem [#allocation3], %s407
          %s410 = ssub.s32 128, 128
          %411 = vsyncadd %s405, %s410
          %s412 = smul.addr %s26, 128
          %s413 = scalar_lea.hbm %s0, %s412
          %s415 = sshll.u32 %s408, 4
          %s416 = int_to_ptr.vmem [resolvable:$true] %s415
          %418 = dma.hbm_to_vmem [thread:$0]  %s413, 128, %s416, %s405
        $region64: #{tpu_custom_call.1} parent=59 // pred_fallthru
          _
      $region60: #{tpu_custom_call.1} parent=5 // pred_fallthru
        _
      %p419 = scmp.le.s32.totalorder 1, %s26
      %p420 = scmp.lt.s32.totalorder %s26, 3
      %p421 = pnand %p419, %p420
      %p422 = pneg %p421
      // Predicated region
      $region65: #{tpu_custom_call.1} parent=5 // pred_check
        _
      $region66: #{tpu_custom_call.1} parent=5 // pred_check_branch
        %424 = sbr.rel (%p421) target = $region68
      $region67: #{tpu_custom_call.1} parent=5 // pred_region
        %s425 = ssub.s32 %s26, 1
        %s426 = sand.u32 %s39, 1
        %s427 = scalar_lea.sflag [#allocation4], %s426
        %s428 = sand.u32 %s39, 1
        %s429 = smul.addr %s428, 8
        %s430 = scalar_lea.vmem [#allocation3], %s429
        // Predicated region
        $region69: #{tpu_custom_call.1} parent=67 // pred_check
          %p431 = pneg %p52
        $region70: #{tpu_custom_call.1} parent=67 // pred_check_branch
          %433 = sbr.rel (%p431) target = $region72
        $region71: #{tpu_custom_call.1} parent=67 // pred_region
          %434 = dma.done %s427, 128
        $region72: #{tpu_custom_call.1} parent=67 // pred_fallthru
          _
        // Predicated region
        $region73: #{tpu_custom_call.1} parent=67 // pred_check
          %p435 = pneg %p115
        $region74: #{tpu_custom_call.1} parent=67 // pred_check_branch
          %437 = sbr.rel (%p435) target = $region76
        $region75: #{tpu_custom_call.1} parent=67 // pred_region
          %438 = dma.done [#allocation7], 3072
        $region76: #{tpu_custom_call.1} parent=67 // pred_fallthru
          _
        // Predicated region
        $region77: #{tpu_custom_call.1} parent=67 // pred_check
          %p439 = pneg %p136
        $region78: #{tpu_custom_call.1} parent=67 // pred_check_branch
          %441 = sbr.rel (%p439) target = $region80
        $region79: #{tpu_custom_call.1} parent=67 // pred_region
          %442 = dma.done [#allocation7], 1024
        $region80: #{tpu_custom_call.1} parent=67 // pred_fallthru
          _
        // Predicated region
        $region81: #{tpu_custom_call.1} parent=67 // pred_check
          %p443 = pneg %p220
        $region82: #{tpu_custom_call.1} parent=67 // pred_check_branch
          %445 = sbr.rel (%p443) target = $region84
        $region83: #{tpu_custom_call.1} parent=67 // pred_region
          %446 = dma.done [#allocation10], 4096
        $region84: #{tpu_custom_call.1} parent=67 // pred_fallthru
          _
        // Predicated region
        $region85: #{tpu_custom_call.1} parent=67 // pred_check
          %p447 = pneg %p262
        $region86: #{tpu_custom_call.1} parent=67 // pred_check_branch
          %449 = sbr.rel (%p447) target = $region88
        $region87: #{tpu_custom_call.1} parent=67 // pred_region
          %450 = dma.done [#allocation10], 4096
        $region88: #{tpu_custom_call.1} parent=67 // pred_fallthru
          _
        %s451 = sand.u32 %s39, 1
        %s452 = scalar_lea.sflag [#allocation4], %s451
        %s453 = sand.u32 %s39, 1
        %s454 = smul.addr %s453, 8
        %s455 = scalar_lea.vmem [#allocation3], %s454
        %p456 = pneg %p52
        %p457 = pneg %p49
        %p458 = pneg %p73
        %p459 = pneg %p70
        %p460 = pneg %p94
        %p461 = pneg %p91
        %p462 = pneg %p115
        %p463 = pneg %p112
        %p464 = pneg %p136
        %p465 = pneg %p133
        %p466 = pneg %p157
        %p467 = pneg %p154
        %p468 = pneg %p178
        %p469 = pneg %p175
        %p470 = pneg %p199
        %p471 = pneg %p196
        %p472 = pneg %p220
        %p473 = pneg %p217
        %p474 = pneg %p241
        %p475 = pneg %p238
        %p476 = pneg %p262
        %p477 = pneg %p259
        %p478 = pneg %p283
        %p479 = pneg %p280
        %p480 = pneg %p309
        %p481 = pneg %p306
        %s482 = sand.u32 %s296, 1
        %s483 = scalar_lea.sflag [#allocation5], %s482
        %s484 = sand.u32 %s296, 1
        %s485 = smul.addr %s484, 8
        %s486 = scalar_lea.vmem [#allocation12], %s485
        %v488 = vld [vmem:[%s430] sm:$0xff]
        %v489 = vld [vmem:[%s1] sm:$0x1]
        %v490 = vld [vmem:[%s2] sm:$0x1]
        %491 = vadd.xlane.f32.xlu0 %v488
        %v492 = vpop.xlane.xlu0 %491
        %v493 = vrcp.pop 128.0
        %v494 = vmul.f32 %v492, %v493
        %v495 = vsub.f32 %v488, %v494
        %v496 = vmul.f32 %v495, %v495
        %497 = vadd.xlane.f32.xlu0 %v496
        %v498 = vpop.xlane.xlu0 %497
        %v499 = vmul.f32 %v498, %v493
        %v500 = vadd.f32 %v499, 1e-05
        %v501 = vrsqrt.pop %v500
        %v502 = vmul.f32 %v495, %v501
        %v504 = vlaneseq
        %v505 = vshrl.u32 %v504, 7
        %v506 = vsub.s32 0, %v505
        %v507 = vrot.slane %v489, %v506
        %v509 = vmul.f32 %v502, %v507
        %v511 = vlaneseq
        %v512 = vshrl.u32 %v511, 7
        %v513 = vsub.s32 0, %v512
        %v514 = vrot.slane %v490, %v513
        %v516 = vadd.f32 %v509, %v514
        %v517 = vpack.c.bf16 %v516, %v516
        %v518 = vld [vmem:[#allocation6] sm:$0xff]
        %v519 = vld [vmem:[#allocation6 + $0x8] sm:$0xf]
        %v520 = vld [vmem:[#allocation6 + $0xc] sm:$0xff]
        %v521 = vld [vmem:[#allocation6 + $0x14] sm:$0xf]
        %v522 = vld [vmem:[#allocation6 + $0x18] sm:$0xff]
        %v523 = vld [vmem:[#allocation6 + $0x20] sm:$0xf]
        %v524 = vld [vmem:[#allocation6 + $0x24] sm:$0xff]
        %v525 = vld [vmem:[#allocation6 + $0x2c] sm:$0xf]
        %v526 = vld [vmem:[#allocation6 + $0x30] sm:$0xff]
        %v527 = vld [vmem:[#allocation6 + $0x38] sm:$0xf]
        %v528 = vld [vmem:[#allocation6 + $0x3c] sm:$0xff]
        %v529 = vld [vmem:[#allocation6 + $0x44] sm:$0xf]
        %v530 = vld [vmem:[#allocation6 + $0x48] sm:$0xff]
        %v531 = vld [vmem:[#allocation6 + $0x50] sm:$0xf]
        %v532 = vld [vmem:[#allocation6 + $0x54] sm:$0xff]
        %v533 = vld [vmem:[#allocation6 + $0x5c] sm:$0xf]
        %v534 = vld [vmem:[#allocation6 + $0x60] sm:$0xff]
        %v535 = vld [vmem:[#allocation6 + $0x68] sm:$0xf]
        %v536 = vld [vmem:[#allocation6 + $0x6c] sm:$0xff]
        %v537 = vld [vmem:[#allocation6 + $0x74] sm:$0xf]
        %v538 = vld [vmem:[#allocation6 + $0x78] sm:$0xff]
        %v539 = vld [vmem:[#allocation6 + $0x80] sm:$0xf]
        %v540 = vld [vmem:[#allocation6 + $0x84] sm:$0xff]
        %v541 = vld [vmem:[#allocation6 + $0x8c] sm:$0xf]
        %v542 = vld [vmem:[#allocation6 + $0x90] sm:$0xff]
        %v543 = vld [vmem:[#allocation6 + $0x98] sm:$0xf]
        %v544 = vld [vmem:[#allocation6 + $0x9c] sm:$0xff]
        %v545 = vld [vmem:[#allocation6 + $0xa4] sm:$0xf]
        %v546 = vld [vmem:[#allocation6 + $0xa8] sm:$0xff]
        %v547 = vld [vmem:[#allocation6 + $0xb0] sm:$0xf]
        %v548 = vld [vmem:[#allocation6 + $0xb4] sm:$0xff]
        %v549 = vld [vmem:[#allocation6 + $0xbc] sm:$0xf]
        %v582 = vunpack.c.l.b16 %v518
        %v583 = vunpack.c.h.b16 %v518
        %v584 = vunpack.c.l.b16 %v519
        %v585 = vunpack.c.l.b16 %v520
        %v586 = vunpack.c.h.b16 %v520
        %v587 = vunpack.c.l.b16 %v521
        %v588 = vunpack.c.l.b16 %v522
        %v589 = vunpack.c.h.b16 %v522
        %v590 = vunpack.c.l.b16 %v523
        %v591 = vunpack.c.l.b16 %v524
        %v592 = vunpack.c.h.b16 %v524
        %v593 = vunpack.c.l.b16 %v525
        %v594 = vunpack.c.l.b16 %v526
        %v595 = vunpack.c.h.b16 %v526
        %v596 = vunpack.c.l.b16 %v527
        %v597 = vunpack.c.l.b16 %v528
        %v598 = vunpack.c.h.b16 %v528
        %v599 = vunpack.c.l.b16 %v529
        %v600 = vunpack.c.l.b16 %v530
        %v601 = vunpack.c.h.b16 %v530
        %v602 = vunpack.c.l.b16 %v531
        %v603 = vunpack.c.l.b16 %v532
        %v604 = vunpack.c.h.b16 %v532
        %v605 = vunpack.c.l.b16 %v533
        %v606 = vunpack.c.l.b16 %v534
        %v607 = vunpack.c.h.b16 %v534
        %v608 = vunpack.c.l.b16 %v535
        %v609 = vunpack.c.l.b16 %v536
        %v610 = vunpack.c.h.b16 %v536
        %v611 = vunpack.c.l.b16 %v537
        %v612 = vunpack.c.l.b16 %v538
        %v613 = vunpack.c.h.b16 %v538
        %v614 = vunpack.c.l.b16 %v539
        %v615 = vunpack.c.l.b16 %v540
        %v616 = vunpack.c.h.b16 %v540
        %v617 = vunpack.c.l.b16 %v541
        %v618 = vunpack.c.l.b16 %v542
        %v619 = vunpack.c.h.b16 %v542
        %v620 = vunpack.c.l.b16 %v543
        %v621 = vunpack.c.l.b16 %v544
        %v622 = vunpack.c.h.b16 %v544
        %v623 = vunpack.c.l.b16 %v545
        %v624 = vunpack.c.l.b16 %v546
        %v625 = vunpack.c.h.b16 %v546
        %v626 = vunpack.c.l.b16 %v547
        %v627 = vunpack.c.l.b16 %v548
        %v628 = vunpack.c.h.b16 %v548
        %v629 = vunpack.c.l.b16 %v549
        %v630 = vpack.c.b16 %v585, %v582
        %v631 = vpack.c.b16 %v586, %v583
        %v632 = vpack.c.b16 %v587, %v584
        %v633 = vpack.c.b16 %v591, %v588
        %v634 = vpack.c.b16 %v592, %v589
        %v635 = vpack.c.b16 %v593, %v590
        %v636 = vpack.c.b16 %v597, %v594
        %v637 = vpack.c.b16 %v598, %v595
        %v638 = vpack.c.b16 %v599, %v596
        %v639 = vpack.c.b16 %v603, %v600
        %v640 = vpack.c.b16 %v604, %v601
        %v641 = vpack.c.b16 %v605, %v602
        %v642 = vpack.c.b16 %v609, %v606
        %v643 = vpack.c.b16 %v610, %v607
        %v644 = vpack.c.b16 %v611, %v608
        %v645 = vpack.c.b16 %v615, %v612
        %v646 = vpack.c.b16 %v616, %v613
        %v647 = vpack.c.b16 %v617, %v614
        %v648 = vpack.c.b16 %v621, %v618
        %v649 = vpack.c.b16 %v622, %v619
        %v650 = vpack.c.b16 %v623, %v620
        %v651 = vpack.c.b16 %v627, %v624
        %v652 = vpack.c.b16 %v628, %v625
        %v653 = vpack.c.b16 %v629, %v626
        %678 = vmatprep.subr.bf16.mxu0 %v652
        %679 = vmatpush1.bf16.msra.mxu0 %v651
        %680 = vmatprep.subr.bf16.mxu0 %v649
        %681 = vmatpush1.bf16.msra.mxu0 %v648
        %682 = vmatprep.subr.bf16.mxu0 %v646
        %683 = vmatpush1.bf16.msra.mxu0 %v645
        %684 = vmatprep.subr.bf16.mxu0 %v643
        %685 = vmatpush1.bf16.msra.mxu0 %v642
        %686 = vmatprep.subr.bf16.mxu0 %v640
        %687 = vmatpush1.bf16.msra.mxu0 %v639
        %688 = vmatprep.subr.bf16.mxu0 %v637
        %689 = vmatpush1.bf16.msra.mxu0 %v636
        %690 = vmatprep.subr.bf16.mxu0 %v634
        %691 = vmatpush1.bf16.msra.mxu0 %v633
        %692 = vmatprep.subr.bf16.mxu0 %v631
        %693 = vmatpush1.bf16.msra.mxu0 %v630
        %694 = vmatprep.subr.bf16.mxu0 0
        %695 = vmatpush2.bf16.msra.mxu0 0
        %696 = vmatprep.subr.bf16.mxu0 0
        %697 = vmatpush2.bf16.msra.mxu0 0
        %698 = vmatprep.subr.bf16.mxu0 0
        %699 = vmatpush2.bf16.msra.mxu0 0
        %700 = vmatprep.subr.bf16.mxu0 0
        %701 = vmatpush2.bf16.msra.mxu0 0
        %702 = vmatprep.subr.bf16.mxu0 0
        %703 = vmatpush2.bf16.msra.mxu0 0
        %704 = vmatprep.subr.bf16.mxu0 0
        %705 = vmatpush2.bf16.msra.mxu0 0
        %706 = vmatprep.subr.bf16.mxu0 0
        %707 = vmatpush2.bf16.msra.mxu0 0
        %708 = vmatprep.subr.bf16.mxu0 0
        %709 = vmatpush2.bf16.msra.mxu0 0
        %710 = vmatprep.mubr.bf16.mxu0 0
        %711 = vmatmul.mubr.bf16.gmra.mxu0 %v517
        %v712 = vpop.f32.mrf.mxu0
        %v713 = vadd.f32 0.0, %v712
        %v714 = vpop.f32.mrf.mxu0
        %v715 = vadd.f32 0.0, %v714
        %v716 = vpop.f32.mrf.mxu0
        %v717 = vpop.f32.mrf.mxu0
        %718 = vdwg.mxu0
        %719 = vmatprep.subr.bf16.mxu0 0
        %720 = vmatpush1.bf16.msra.mxu0 %v653
        %721 = vmatprep.subr.bf16.mxu0 0
        %722 = vmatpush1.bf16.msra.mxu0 %v650
        %723 = vmatprep.subr.bf16.mxu0 0
        %724 = vmatpush1.bf16.msra.mxu0 %v647
        %725 = vmatprep.subr.bf16.mxu0 0
        %726 = vmatpush1.bf16.msra.mxu0 %v644
        %727 = vmatprep.subr.bf16.mxu0 0
        %728 = vmatpush1.bf16.msra.mxu0 %v641
        %729 = vmatprep.subr.bf16.mxu0 0
        %730 = vmatpush1.bf16.msra.mxu0 %v638
        %731 = vmatprep.subr.bf16.mxu0 0
        %732 = vmatpush1.bf16.msra.mxu0 %v635
        %733 = vmatprep.subr.bf16.mxu0 0
        %734 = vmatpush1.bf16.msra.mxu0 %v632
        %735 = vmatprep.subr.bf16.mxu0 0
        %736 = vmatpush2.bf16.msra.mxu0 0
        %737 = vmatprep.subr.bf16.mxu0 0
        %738 = vmatpush2.bf16.msra.mxu0 0
        %739 = vmatprep.subr.bf16.mxu0 0
        %740 = vmatpush2.bf16.msra.mxu0 0
        %741 = vmatprep.subr.bf16.mxu0 0
        %742 = vmatpush2.bf16.msra.mxu0 0
        %743 = vmatprep.subr.bf16.mxu0 0
        %744 = vmatpush2.bf16.msra.mxu0 0
        %745 = vmatprep.subr.bf16.mxu0 0
        %746 = vmatpush2.bf16.msra.mxu0 0
        %747 = vmatprep.subr.bf16.mxu0 0
        %748 = vmatpush2.bf16.msra.mxu0 0
        %749 = vmatprep.subr.bf16.mxu0 0
        %750 = vmatpush2.bf16.msra.mxu0 0
        %751 = vmatprep.mubr.bf16.mxu0 0
        %752 = vmatmul.mubr.bf16.gmra.mxu0 %v517
        %v753 = vpop.f32.mrf.mxu0
        %v754 = vadd.f32 0.0, %v753
        %v755 = vpop.f32.mrf.mxu0
        %v756 = vpop.f32.mrf.mxu0
        %v757 = vpop.f32.mrf.mxu0
        %758 = vdwg.mxu0
        %v759 = vpack.c.bf16 %v713, %v713
        %v760 = vpack.c.bf16 %v715, %v715
        %v761 = vpack.c.bf16 %v754, %v754
        %vm762 = vcmask 261120
        %v764 = vsel %vm762, %v759, 0
        %v767 = vsel %vm762, %v760, 0
        %769 = vmatprep.subr.bf16.mxu0 0
        %770 = vmatpush1.bf16.xpose.msra.mxu0 0
        %771 = vmatprep.subr.bf16.mxu0 0
        %772 = vmatpush1.bf16.xpose.msra.mxu0 0
        %773 = vmatprep.subr.bf16.mxu0 0
        %774 = vmatpush1.bf16.xpose.msra.mxu0 0
        %775 = vmatprep.subr.bf16.mxu0 0
        %776 = vmatpush1.bf16.xpose.msra.mxu0 0
        %777 = vmatprep.subr.bf16.mxu0 0
        %778 = vmatpush1.bf16.xpose.msra.mxu0 0
        %779 = vmatprep.subr.bf16.mxu0 0
        %780 = vmatpush1.bf16.xpose.msra.mxu0 0
        %781 = vmatprep.subr.bf16.mxu0 0
        %782 = vmatpush1.bf16.xpose.msra.mxu0 0
        %783 = vmatprep.subr.bf16.mxu0 0
        %784 = vmatpush1.bf16.xpose.msra.mxu0 %v767
        %785 = vmatprep.subr.bf16.mxu0 0
        %786 = vmatpush2.bf16.xpose.msra.mxu0 0
        %787 = vmatprep.subr.bf16.mxu0 0
        %788 = vmatpush2.bf16.xpose.msra.mxu0 0
        %789 = vmatprep.subr.bf16.mxu0 0
        %790 = vmatpush2.bf16.xpose.msra.mxu0 0
        %791 = vmatprep.subr.bf16.mxu0 0
        %792 = vmatpush2.bf16.xpose.msra.mxu0 0
        %793 = vmatprep.subr.bf16.mxu0 0
        %794 = vmatpush2.bf16.xpose.msra.mxu0 0
        %795 = vmatprep.subr.bf16.mxu0 0
        %796 = vmatpush2.bf16.xpose.msra.mxu0 0
        %797 = vmatprep.subr.bf16.mxu0 0
        %798 = vmatpush2.bf16.xpose.msra.mxu0 0
        %799 = vmatprep.subr.bf16.mxu0 0
        %800 = vmatpush2.bf16.xpose.msra.mxu0 0
        %801 = vmatprep.mubr.bf16.mxu0 0
        %802 = vmatmul.mubr.bf16.gmra.mxu0 %v764
        %v803 = vpop.f32.mrf.mxu0
        %v804 = vadd.f32 0.0, %v803
        %v805 = vpop.f32.mrf.mxu0
        %v806 = vpop.f32.mrf.mxu0
        %v807 = vpop.f32.mrf.mxu0
        %808 = vdwg.mxu0
        %vm809 = vcmask 64512
        %v810 = vsel %vm809, %v804, -inf
        %811 = vmax.xlane.f32.xlu0 %v810
        %v812 = vpop.xlane.xlu0 %811
        %v813 = vsub.f32 %v804, %v812
        %v814 = vmul.f32 %v813, 1.442695
        %v815 = vpow.pop %v814
        %v816 = vsel %vm809, %v815, 0.0
        %817 = vadd.xlane.f32.xlu0 %v816
        %v818 = vpop.xlane.xlu0 %817
        %v819 = vrcp.pop %v818
        %v820 = vmul.f32 %v815, %v819
        %v821 = vpack.c.bf16 %v820, %v820
        %v823 = vsel %vm809, %v821, 0
        %vm825 = vcmask 1043456
        %v827 = vsel %vm825, %v761, 0
        %829 = vmatprep.subr.bf16.mxu0 0
        %830 = vmatpush1.bf16.msra.mxu0 0
        %831 = vmatprep.subr.bf16.mxu0 0
        %832 = vmatpush1.bf16.msra.mxu0 0
        %833 = vmatprep.subr.bf16.mxu0 0
        %834 = vmatpush1.bf16.msra.mxu0 0
        %835 = vmatprep.subr.bf16.mxu0 0
        %836 = vmatpush1.bf16.msra.mxu0 0
        %837 = vmatprep.subr.bf16.mxu0 0
        %838 = vmatpush1.bf16.msra.mxu0 0
        %839 = vmatprep.subr.bf16.mxu0 0
        %840 = vmatpush1.bf16.msra.mxu0 0
        %841 = vmatprep.subr.bf16.mxu0 0
        %842 = vmatpush1.bf16.msra.mxu0 0
        %843 = vmatprep.subr.bf16.mxu0 0
        %844 = vmatpush1.bf16.msra.mxu0 %v827
        %845 = vmatprep.subr.bf16.mxu0 0
        %846 = vmatpush2.bf16.msra.mxu0 0
        %847 = vmatprep.subr.bf16.mxu0 0
        %848 = vmatpush2.bf16.msra.mxu0 0
        %849 = vmatprep.subr.bf16.mxu0 0
        %850 = vmatpush2.bf16.msra.mxu0 0
        %851 = vmatprep.subr.bf16.mxu0 0
        %852 = vmatpush2.bf16.msra.mxu0 0
        %853 = vmatprep.subr.bf16.mxu0 0
        %854 = vmatpush2.bf16.msra.mxu0 0
        %855 = vmatprep.subr.bf16.mxu0 0
        %856 = vmatpush2.bf16.msra.mxu0 0
        %857 = vmatprep.subr.bf16.mxu0 0
        %858 = vmatpush2.bf16.msra.mxu0 0
        %859 = vmatprep.subr.bf16.mxu0 0
        %860 = vmatpush2.bf16.msra.mxu0 0
        %861 = vmatprep.mubr.bf16.mxu0 0
        %862 = vmatmul.mubr.bf16.gmra.mxu0 %v823
        %v863 = vpop.f32.mrf.mxu0
        %v864 = vadd.f32 0.0, %v863
        %v865 = vpop.f32.mrf.mxu0
        %v866 = vpop.f32.mrf.mxu0
        %v867 = vpop.f32.mrf.mxu0
        %868 = vdwg.mxu0
        %869 = vst.msk [vmem:[#allocation2] sm:$0xff] %vm762, %v864
        %871 = vrot.lane.b32.xlu0 %v759, 96
        %v872 = vpop.permute.xlu0 %871
        %874 = vrot.lane.b32.xlu0 %v760, 96
        %v875 = vpop.permute.xlu0 %874
        %v877 = vsel %vm762, %v872, 0
        %v880 = vsel %vm762, %v875, 0
        %882 = vmatprep.subr.bf16.mxu0 0
        %883 = vmatpush1.bf16.xpose.msra.mxu0 0
        %884 = vmatprep.subr.bf16.mxu0 0
        %885 = vmatpush1.bf16.xpose.msra.mxu0 0
        %886 = vmatprep.subr.bf16.mxu0 0
        %887 = vmatpush1.bf16.xpose.msra.mxu0 0
        %888 = vmatprep.subr.bf16.mxu0 0
        %889 = vmatpush1.bf16.xpose.msra.mxu0 0
        %890 = vmatprep.subr.bf16.mxu0 0
        %891 = vmatpush1.bf16.xpose.msra.mxu0 0
        %892 = vmatprep.subr.bf16.mxu0 0
        %893 = vmatpush1.bf16.xpose.msra.mxu0 0
        %894 = vmatprep.subr.bf16.mxu0 0
        %895 = vmatpush1.bf16.xpose.msra.mxu0 0
        %896 = vmatprep.subr.bf16.mxu0 0
        %897 = vmatpush1.bf16.xpose.msra.mxu0 %v880
        %898 = vmatprep.subr.bf16.mxu0 0
        %899 = vmatpush2.bf16.xpose.msra.mxu0 0
        %900 = vmatprep.subr.bf16.mxu0 0
        %901 = vmatpush2.bf16.xpose.msra.mxu0 0
        %902 = vmatprep.subr.bf16.mxu0 0
        %903 = vmatpush2.bf16.xpose.msra.mxu0 0
        %904 = vmatprep.subr.bf16.mxu0 0
        %905 = vmatpush2.bf16.xpose.msra.mxu0 0
        %906 = vmatprep.subr.bf16.mxu0 0
        %907 = vmatpush2.bf16.xpose.msra.mxu0 0
        %908 = vmatprep.subr.bf16.mxu0 0
        %909 = vmatpush2.bf16.xpose.msra.mxu0 0
        %910 = vmatprep.subr.bf16.mxu0 0
        %911 = vmatpush2.bf16.xpose.msra.mxu0 0
        %912 = vmatprep.subr.bf16.mxu0 0
        %913 = vmatpush2.bf16.xpose.msra.mxu0 0
        %914 = vmatprep.mubr.bf16.mxu0 0
        %915 = vmatmul.mubr.bf16.gmra.mxu0 %v877
        %v916 = vpop.f32.mrf.mxu0
        %v917 = vadd.f32 0.0, %v916
        %v918 = vpop.f32.mrf.mxu0
        %v919 = vpop.f32.mrf.mxu0
        %v920 = vpop.f32.mrf.mxu0
        %921 = vdwg.mxu0
        %v922 = vsel %vm809, %v917, -inf
        %923 = vmax.xlane.f32.xlu0 %v922
        %v924 = vpop.xlane.xlu0 %923
        %v925 = vsub.f32 %v917, %v924
        %v926 = vmul.f32 %v925, 1.442695
        %v927 = vpow.pop %v926
        %v928 = vsel %vm809, %v927, 0.0
        %929 = vadd.xlane.f32.xlu0 %v928
        %v930 = vpop.xlane.xlu0 %929
        %v931 = vrcp.pop %v930
        %v932 = vmul.f32 %v927, %v931
        %v933 = vpack.c.bf16 %v932, %v932
        %935 = vrot.lane.b32.xlu0 %v761, 96
        %v936 = vpop.permute.xlu0 %935
        %v938 = vsel %vm809, %v933, 0
        %v941 = vsel %vm825, %v936, 0
        %943 = vmatprep.subr.bf16.mxu0 0
        %944 = vmatpush1.bf16.msra.mxu0 0
        %945 = vmatprep.subr.bf16.mxu0 0
        %946 = vmatpush1.bf16.msra.mxu0 0
        %947 = vmatprep.subr.bf16.mxu0 0
        %948 = vmatpush1.bf16.msra.mxu0 0
        %949 = vmatprep.subr.bf16.mxu0 0
        %950 = vmatpush1.bf16.msra.mxu0 0
        %951 = vmatprep.subr.bf16.mxu0 0
        %952 = vmatpush1.bf16.msra.mxu0 0
        %953 = vmatprep.subr.bf16.mxu0 0
        %954 = vmatpush1.bf16.msra.mxu0 0
        %955 = vmatprep.subr.bf16.mxu0 0
        %956 = vmatpush1.bf16.msra.mxu0 0
        %957 = vmatprep.subr.bf16.mxu0 0
        %958 = vmatpush1.bf16.msra.mxu0 %v941
        %959 = vmatprep.subr.bf16.mxu0 0
        %960 = vmatpush2.bf16.msra.mxu0 0
        %961 = vmatprep.subr.bf16.mxu0 0
        %962 = vmatpush2.bf16.msra.mxu0 0
        %963 = vmatprep.subr.bf16.mxu0 0
        %964 = vmatpush2.bf16.msra.mxu0 0
        %965 = vmatprep.subr.bf16.mxu0 0
        %966 = vmatpush2.bf16.msra.mxu0 0
        %967 = vmatprep.subr.bf16.mxu0 0
        %968 = vmatpush2.bf16.msra.mxu0 0
        %969 = vmatprep.subr.bf16.mxu0 0
        %970 = vmatpush2.bf16.msra.mxu0 0
        %971 = vmatprep.subr.bf16.mxu0 0
        %972 = vmatpush2.bf16.msra.mxu0 0
        %973 = vmatprep.subr.bf16.mxu0 0
        %974 = vmatpush2.bf16.msra.mxu0 0
        %975 = vmatprep.mubr.bf16.mxu0 0
        %976 = vmatmul.mubr.bf16.gmra.mxu0 %v938
        %v977 = vpop.f32.mrf.mxu0
        %v978 = vadd.f32 0.0, %v977
        %v979 = vpop.f32.mrf.mxu0
        %v980 = vpop.f32.mrf.mxu0
        %v981 = vpop.f32.mrf.mxu0
        %982 = vdwg.mxu0
        %984 = vrot.lane.b32.xlu0 %v978, 32
        %v985 = vpop.permute.xlu0 %984
        %vm987 = vcmask 523520
        %988 = vst.msk [vmem:[#allocation2] sm:$0xff] %vm987, %v985
        %989 = vrot.lane.b32.xlu0 %v759, 64
        %v990 = vpop.permute.xlu0 %989
        %991 = vrot.lane.b32.xlu0 %v760, 64
        %v992 = vpop.permute.xlu0 %991
        %v994 = vsel %vm762, %v990, 0
        %v997 = vsel %vm762, %v992, 0
        %999 = vmatprep.subr.bf16.mxu0 0
        %1000 = vmatpush1.bf16.xpose.msra.mxu0 0
        %1001 = vmatprep.subr.bf16.mxu0 0
        %1002 = vmatpush1.bf16.xpose.msra.mxu0 0
        %1003 = vmatprep.subr.bf16.mxu0 0
        %1004 = vmatpush1.bf16.xpose.msra.mxu0 0
        %1005 = vmatprep.subr.bf16.mxu0 0
        %1006 = vmatpush1.bf16.xpose.msra.mxu0 0
        %1007 = vmatprep.subr.bf16.mxu0 0
        %1008 = vmatpush1.bf16.xpose.msra.mxu0 0
        %1009 = vmatprep.subr.bf16.mxu0 0
        %1010 = vmatpush1.bf16.xpose.msra.mxu0 0
        %1011 = vmatprep.subr.bf16.mxu0 0
        %1012 = vmatpush1.bf16.xpose.msra.mxu0 0
        %1013 = vmatprep.subr.bf16.mxu0 0
        %1014 = vmatpush1.bf16.xpose.msra.mxu0 %v997
        %1015 = vmatprep.subr.bf16.mxu0 0
        %1016 = vmatpush2.bf16.xpose.msra.mxu0 0
        %1017 = vmatprep.subr.bf16.mxu0 0
        %1018 = vmatpush2.bf16.xpose.msra.mxu0 0
        %1019 = vmatprep.subr.bf16.mxu0 0
        %1020 = vmatpush2.bf16.xpose.msra.mxu0 0
        %1021 = vmatprep.subr.bf16.mxu0 0
        %1022 = vmatpush2.bf16.xpose.msra.mxu0 0
        %1023 = vmatprep.subr.bf16.mxu0 0
        %1024 = vmatpush2.bf16.xpose.msra.mxu0 0
        %1025 = vmatprep.subr.bf16.mxu0 0
        %1026 = vmatpush2.bf16.xpose.msra.mxu0 0
        %1027 = vmatprep.subr.bf16.mxu0 0
        %1028 = vmatpush2.bf16.xpose.msra.mxu0 0
        %1029 = vmatprep.subr.bf16.mxu0 0
        %1030 = vmatpush2.bf16.xpose.msra.mxu0 0
        %1031 = vmatprep.mubr.bf16.mxu0 0
        %1032 = vmatmul.mubr.bf16.gmra.mxu0 %v994
        %v1033 = vpop.f32.mrf.mxu0
        %v1034 = vadd.f32 0.0, %v1033
        %v1035 = vpop.f32.mrf.mxu0
        %v1036 = vpop.f32.mrf.mxu0
        %v1037 = vpop.f32.mrf.mxu0
        %1038 = vdwg.mxu0
        %v1039 = vsel %vm809, %v1034, -inf
        %1040 = vmax.xlane.f32.xlu0 %v1039
        %v1041 = vpop.xlane.xlu0 %1040
        %v1042 = vsub.f32 %v1034, %v1041
        %v1043 = vmul.f32 %v1042, 1.442695
        %v1044 = vpow.pop %v1043
        %v1045 = vsel %vm809, %v1044, 0.0
        %1046 = vadd.xlane.f32.xlu0 %v1045
        %v1047 = vpop.xlane.xlu0 %1046
        %v1048 = vrcp.pop %v1047
        %v1049 = vmul.f32 %v1044, %v1048
        %v1050 = vpack.c.bf16 %v1049, %v1049
        %1051 = vrot.lane.b32.xlu0 %v761, 64
        %v1052 = vpop.permute.xlu0 %1051
        %v1054 = vsel %vm809, %v1050, 0
        %v1057 = vsel %vm825, %v1052, 0
        %1059 = vmatprep.subr.bf16.mxu0 0
        %1060 = vmatpush1.bf16.msra.mxu0 0
        %1061 = vmatprep.subr.bf16.mxu0 0
        %1062 = vmatpush1.bf16.msra.mxu0 0
        %1063 = vmatprep.subr.bf16.mxu0 0
        %1064 = vmatpush1.bf16.msra.mxu0 0
        %1065 = vmatprep.subr.bf16.mxu0 0
        %1066 = vmatpush1.bf16.msra.mxu0 0
        %1067 = vmatprep.subr.bf16.mxu0 0
        %1068 = vmatpush1.bf16.msra.mxu0 0
        %1069 = vmatprep.subr.bf16.mxu0 0
        %1070 = vmatpush1.bf16.msra.mxu0 0
        %1071 = vmatprep.subr.bf16.mxu0 0
        %1072 = vmatpush1.bf16.msra.mxu0 0
        %1073 = vmatprep.subr.bf16.mxu0 0
        %1074 = vmatpush1.bf16.msra.mxu0 %v1057
        %1075 = vmatprep.subr.bf16.mxu0 0
        %1076 = vmatpush2.bf16.msra.mxu0 0
        %1077 = vmatprep.subr.bf16.mxu0 0
        %1078 = vmatpush2.bf16.msra.mxu0 0
        %1079 = vmatprep.subr.bf16.mxu0 0
        %1080 = vmatpush2.bf16.msra.mxu0 0
        %1081 = vmatprep.subr.bf16.mxu0 0
        %1082 = vmatpush2.bf16.msra.mxu0 0
        %1083 = vmatprep.subr.bf16.mxu0 0
        %1084 = vmatpush2.bf16.msra.mxu0 0
        %1085 = vmatprep.subr.bf16.mxu0 0
        %1086 = vmatpush2.bf16.msra.mxu0 0
        %1087 = vmatprep.subr.bf16.mxu0 0
        %1088 = vmatpush2.bf16.msra.mxu0 0
        %1089 = vmatprep.subr.bf16.mxu0 0
        %1090 = vmatpush2.bf16.msra.mxu0 0
        %1091 = vmatprep.mubr.bf16.mxu0 0
        %1092 = vmatmul.mubr.bf16.gmra.mxu0 %v1054
        %v1093 = vpop.f32.mrf.mxu0
        %v1094 = vadd.f32 0.0, %v1093
        %v1095 = vpop.f32.mrf.mxu0
        %v1096 = vpop.f32.mrf.mxu0
        %v1097 = vpop.f32.mrf.mxu0
        %1098 = vdwg.mxu0
        %1100 = vrot.lane.b32.xlu0 %v1094, 64
        %v1101 = vpop.permute.xlu0 %1100
        %vm1103 = vcmask 785920
        %1104 = vst.msk [vmem:[#allocation2] sm:$0xff] %vm1103, %v1101
        %1105 = vrot.lane.b32.xlu0 %v759, 32
        %v1106 = vpop.permute.xlu0 %1105
        %1107 = vrot.lane.b32.xlu0 %v760, 32
        %v1108 = vpop.permute.xlu0 %1107
        %v1110 = vsel %vm762, %v1106, 0
        %v1113 = vsel %vm762, %v1108, 0
        %1115 = vmatprep.subr.bf16.mxu0 0
        %1116 = vmatpush1.bf16.xpose.msra.mxu0 0
        %1117 = vmatprep.subr.bf16.mxu0 0
        %1118 = vmatpush1.bf16.xpose.msra.mxu0 0
        %1119 = vmatprep.subr.bf16.mxu0 0
        %1120 = vmatpush1.bf16.xpose.msra.mxu0 0
        %1121 = vmatprep.subr.bf16.mxu0 0
        %1122 = vmatpush1.bf16.xpose.msra.mxu0 0
        %1123 = vmatprep.subr.bf16.mxu0 0
        %1124 = vmatpush1.bf16.xpose.msra.mxu0 0
        %1125 = vmatprep.subr.bf16.mxu0 0
        %1126 = vmatpush1.bf16.xpose.msra.mxu0 0
        %1127 = vmatprep.subr.bf16.mxu0 0
        %1128 = vmatpush1.bf16.xpose.msra.mxu0 0
        %1129 = vmatprep.subr.bf16.mxu0 0
        %1130 = vmatpush1.bf16.xpose.msra.mxu0 %v1113
        %1131 = vmatprep.subr.bf16.mxu0 0
        %1132 = vmatpush2.bf16.xpose.msra.mxu0 0
        %1133 = vmatprep.subr.bf16.mxu0 0
        %1134 = vmatpush2.bf16.xpose.msra.mxu0 0
        %1135 = vmatprep.subr.bf16.mxu0 0
        %1136 = vmatpush2.bf16.xpose.msra.mxu0 0
        %1137 = vmatprep.subr.bf16.mxu0 0
        %1138 = vmatpush2.bf16.xpose.msra.mxu0 0
        %1139 = vmatprep.subr.bf16.mxu0 0
        %1140 = vmatpush2.bf16.xpose.msra.mxu0 0
        %1141 = vmatprep.subr.bf16.mxu0 0
        %1142 = vmatpush2.bf16.xpose.msra.mxu0 0
        %1143 = vmatprep.subr.bf16.mxu0 0
        %1144 = vmatpush2.bf16.xpose.msra.mxu0 0
        %1145 = vmatprep.subr.bf16.mxu0 0
        %1146 = vmatpush2.bf16.xpose.msra.mxu0 0
        %1147 = vmatprep.mubr.bf16.mxu0 0
        %1148 = vmatmul.mubr.bf16.gmra.mxu0 %v1110
        %v1149 = vpop.f32.mrf.mxu0
        %v1150 = vadd.f32 0.0, %v1149
        %v1151 = vpop.f32.mrf.mxu0
        %v1152 = vpop.f32.mrf.mxu0
        %v1153 = vpop.f32.mrf.mxu0
        %1154 = vdwg.mxu0
        %v1155 = vsel %vm809, %v1150, -inf
        %1156 = vmax.xlane.f32.xlu0 %v1155
        %v1157 = vpop.xlane.xlu0 %1156
        %v1158 = vsub.f32 %v1150, %v1157
        %v1159 = vmul.f32 %v1158, 1.442695
        %v1160 = vpow.pop %v1159
        %v1161 = vsel %vm809, %v1160, 0.0
        %1162 = vadd.xlane.f32.xlu0 %v1161
        %v1163 = vpop.xlane.xlu0 %1162
        %v1164 = vrcp.pop %v1163
        %v1165 = vmul.f32 %v1160, %v1164
        %v1166 = vpack.c.bf16 %v1165, %v1165
        %1167 = vrot.lane.b32.xlu0 %v761, 32
        %v1168 = vpop.permute.xlu0 %1167
        %v1170 = vsel %vm809, %v1166, 0
        %v1173 = vsel %vm825, %v1168, 0
        %1175 = vmatprep.subr.bf16.mxu0 0
        %1176 = vmatpush1.bf16.msra.mxu0 0
        %1177 = vmatprep.subr.bf16.mxu0 0
        %1178 = vmatpush1.bf16.msra.mxu0 0
        %1179 = vmatprep.subr.bf16.mxu0 0
        %1180 = vmatpush1.bf16.msra.mxu0 0
        %1181 = vmatprep.subr.bf16.mxu0 0
        %1182 = vmatpush1.bf16.msra.mxu0 0
        %1183 = vmatprep.subr.bf16.mxu0 0
        %1184 = vmatpush1.bf16.msra.mxu0 0
        %1185 = vmatprep.subr.bf16.mxu0 0
        %1186 = vmatpush1.bf16.msra.mxu0 0
        %1187 = vmatprep.subr.bf16.mxu0 0
        %1188 = vmatpush1.bf16.msra.mxu0 0
        %1189 = vmatprep.subr.bf16.mxu0 0
        %1190 = vmatpush1.bf16.msra.mxu0 %v1173
        %1191 = vmatprep.subr.bf16.mxu0 0
        %1192 = vmatpush2.bf16.msra.mxu0 0
        %1193 = vmatprep.subr.bf16.mxu0 0
        %1194 = vmatpush2.bf16.msra.mxu0 0
        %1195 = vmatprep.subr.bf16.mxu0 0
        %1196 = vmatpush2.bf16.msra.mxu0 0
        %1197 = vmatprep.subr.bf16.mxu0 0
        %1198 = vmatpush2.bf16.msra.mxu0 0
        %1199 = vmatprep.subr.bf16.mxu0 0
        %1200 = vmatpush2.bf16.msra.mxu0 0
        %1201 = vmatprep.subr.bf16.mxu0 0
        %1202 = vmatpush2.bf16.msra.mxu0 0
        %1203 = vmatprep.subr.bf16.mxu0 0
        %1204 = vmatpush2.bf16.msra.mxu0 0
        %1205 = vmatprep.subr.bf16.mxu0 0
        %1206 = vmatpush2.bf16.msra.mxu0 0
        %1207 = vmatprep.mubr.bf16.mxu0 0
        %1208 = vmatmul.mubr.bf16.gmra.mxu0 %v1170
        %v1209 = vpop.f32.mrf.mxu0
        %v1210 = vadd.f32 0.0, %v1209
        %v1211 = vpop.f32.mrf.mxu0
        %v1212 = vpop.f32.mrf.mxu0
        %v1213 = vpop.f32.mrf.mxu0
        %1214 = vdwg.mxu0
        %1216 = vrot.lane.b32.xlu0 %v1210, 96
        %v1217 = vpop.permute.xlu0 %1216
        %vm1219 = vcmask 1048320
        %1220 = vst.msk [vmem:[#allocation2] sm:$0xff] %vm1219, %v1217
        %v1221 = vld [vmem:[#allocation2] sm:$0xff]
        %v1222 = vpack.c.bf16 %v1221, %v1221
        %v1223 = vld [vmem:[#allocation8] sm:$0xf]
        %v1224 = vld [vmem:[#allocation8 + $0x4] sm:$0xf]
        %v1225 = vld [vmem:[#allocation8 + $0x8] sm:$0xf]
        %v1226 = vld [vmem:[#allocation8 + $0xc] sm:$0xf]
        %v1227 = vld [vmem:[#allocation8 + $0x10] sm:$0xf]
        %v1228 = vld [vmem:[#allocation8 + $0x14] sm:$0xf]
        %v1229 = vld [vmem:[#allocation8 + $0x18] sm:$0xf]
        %v1230 = vld [vmem:[#allocation8 + $0x1c] sm:$0xf]
        %v1231 = vld [vmem:[#allocation8 + $0x20] sm:$0xf]
        %v1232 = vld [vmem:[#allocation8 + $0x24] sm:$0xf]
        %v1233 = vld [vmem:[#allocation8 + $0x28] sm:$0xf]
        %v1234 = vld [vmem:[#allocation8 + $0x2c] sm:$0xf]
        %v1235 = vld [vmem:[#allocation8 + $0x30] sm:$0xf]
        %v1236 = vld [vmem:[#allocation8 + $0x34] sm:$0xf]
        %v1237 = vld [vmem:[#allocation8 + $0x38] sm:$0xf]
        %v1238 = vld [vmem:[#allocation8 + $0x3c] sm:$0xf]
        %v1239 = vld [vmem:[%s5] sm:$0x1]
        %v1241 = vlaneseq
        %v1242 = vshrl.u32 %v1241, 7
        %v1243 = vsub.s32 0, %v1242
        %v1244 = vrot.slane %v1239, %v1243
        %v1262 = vunpack.c.l.b16 %v1223
        %v1263 = vunpack.c.l.b16 %v1224
        %v1264 = vunpack.c.l.b16 %v1225
        %v1265 = vunpack.c.l.b16 %v1226
        %v1266 = vunpack.c.l.b16 %v1227
        %v1267 = vunpack.c.l.b16 %v1228
        %v1268 = vunpack.c.l.b16 %v1229
        %v1269 = vunpack.c.l.b16 %v1230
        %v1270 = vunpack.c.l.b16 %v1231
        %v1271 = vunpack.c.l.b16 %v1232
        %v1272 = vunpack.c.l.b16 %v1233
        %v1273 = vunpack.c.l.b16 %v1234
        %v1274 = vunpack.c.l.b16 %v1235
        %v1275 = vunpack.c.l.b16 %v1236
        %v1276 = vunpack.c.l.b16 %v1237
        %v1277 = vunpack.c.l.b16 %v1238
        %v1278 = vpack.c.b16 %v1263, %v1262
        %v1279 = vpack.c.b16 %v1265, %v1264
        %v1280 = vpack.c.b16 %v1267, %v1266
        %v1281 = vpack.c.b16 %v1269, %v1268
        %v1282 = vpack.c.b16 %v1271, %v1270
        %v1283 = vpack.c.b16 %v1273, %v1272
        %v1284 = vpack.c.b16 %v1275, %v1274
        %v1285 = vpack.c.b16 %v1277, %v1276
        %1294 = vmatprep.subr.bf16.mxu0 0
        %1295 = vmatpush1.bf16.msra.mxu0 %v1285
        %1296 = vmatprep.subr.bf16.mxu0 0
        %1297 = vmatpush1.bf16.msra.mxu0 %v1284
        %1298 = vmatprep.subr.bf16.mxu0 0
        %1299 = vmatpush1.bf16.msra.mxu0 %v1283
        %1300 = vmatprep.subr.bf16.mxu0 0
        %1301 = vmatpush1.bf16.msra.mxu0 %v1282
        %1302 = vmatprep.subr.bf16.mxu0 0
        %1303 = vmatpush1.bf16.msra.mxu0 %v1281
        %1304 = vmatprep.subr.bf16.mxu0 0
        %1305 = vmatpush1.bf16.msra.mxu0 %v1280
        %1306 = vmatprep.subr.bf16.mxu0 0
        %1307 = vmatpush1.bf16.msra.mxu0 %v1279
        %1308 = vmatprep.subr.bf16.mxu0 0
        %1309 = vmatpush1.bf16.msra.mxu0 %v1278
        %1310 = vmatprep.subr.bf16.mxu0 0
        %1311 = vmatpush2.bf16.msra.mxu0 0
        %1312 = vmatprep.subr.bf16.mxu0 0
        %1313 = vmatpush2.bf16.msra.mxu0 0
        %1314 = vmatprep.subr.bf16.mxu0 0
        %1315 = vmatpush2.bf16.msra.mxu0 0
        %1316 = vmatprep.subr.bf16.mxu0 0
        %1317 = vmatpush2.bf16.msra.mxu0 0
        %1318 = vmatprep.subr.bf16.mxu0 0
        %1319 = vmatpush2.bf16.msra.mxu0 0
        %1320 = vmatprep.subr.bf16.mxu0 0
        %1321 = vmatpush2.bf16.msra.mxu0 0
        %1322 = vmatprep.subr.bf16.mxu0 0
        %1323 = vmatpush2.bf16.msra.mxu0 0
        %1324 = vmatprep.subr.bf16.mxu0 0
        %1325 = vmatpush2.bf16.msra.mxu0 0
        %1326 = vmatprep.mubr.bf16.mxu0 0
        %1327 = vmatmul.mubr.bf16.gmra.mxu0 %v1222
        %v1328 = vpop.f32.mrf.mxu0
        %v1329 = vadd.f32 %v1244, %v1328
        %v1330 = vpop.f32.mrf.mxu0
        %v1331 = vpop.f32.mrf.mxu0
        %v1332 = vpop.f32.mrf.mxu0
        %1333 = vdwg.mxu0
        %v1334 = vadd.f32 %v488, %v1329
        %v1335 = vld [vmem:[%s6] sm:$0x1]
        %v1336 = vld [vmem:[%s7] sm:$0x1]
        %1337 = vadd.xlane.f32.xlu0 %v1334
        %v1338 = vpop.xlane.xlu0 %1337
        %v1339 = vmul.f32 %v1338, %v493
        %v1340 = vsub.f32 %v1334, %v1339
        %v1341 = vmul.f32 %v1340, %v1340
        %1342 = vadd.xlane.f32.xlu0 %v1341
        %v1343 = vpop.xlane.xlu0 %1342
        %v1344 = vmul.f32 %v1343, %v493
        %v1345 = vadd.f32 %v1344, 1e-05
        %v1346 = vrsqrt.pop %v1345
        %v1347 = vmul.f32 %v1340, %v1346
        %v1349 = vlaneseq
        %v1350 = vshrl.u32 %v1349, 7
        %v1351 = vsub.s32 0, %v1350
        %v1352 = vrot.slane %v1335, %v1351
        %v1354 = vmul.f32 %v1347, %v1352
        %v1356 = vlaneseq
        %v1357 = vshrl.u32 %v1356, 7
        %v1358 = vsub.s32 0, %v1357
        %v1359 = vrot.slane %v1336, %v1358
        %v1361 = vadd.f32 %v1354, %v1359
        %v1362 = vpack.c.bf16 %v1361, %v1361
        %v1363 = vld [vmem:[#allocation9] sm:$0xff]
        %v1364 = vld [vmem:[#allocation9 + $0x8] sm:$0xff]
        %v1365 = vld [vmem:[#allocation9 + $0x10] sm:$0xff]
        %v1366 = vld [vmem:[#allocation9 + $0x18] sm:$0xff]
        %v1367 = vld [vmem:[#allocation9 + $0x20] sm:$0xff]
        %v1368 = vld [vmem:[#allocation9 + $0x28] sm:$0xff]
        %v1369 = vld [vmem:[#allocation9 + $0x30] sm:$0xff]
        %v1370 = vld [vmem:[#allocation9 + $0x38] sm:$0xff]
        %v1371 = vld [vmem:[#allocation9 + $0x40] sm:$0xff]
        %v1372 = vld [vmem:[#allocation9 + $0x48] sm:$0xff]
        %v1373 = vld [vmem:[#allocation9 + $0x50] sm:$0xff]
        %v1374 = vld [vmem:[#allocation9 + $0x58] sm:$0xff]
        %v1375 = vld [vmem:[#allocation9 + $0x60] sm:$0xff]
        %v1376 = vld [vmem:[#allocation9 + $0x68] sm:$0xff]
        %v1377 = vld [vmem:[#allocation9 + $0x70] sm:$0xff]
        %v1378 = vld [vmem:[#allocation9 + $0x78] sm:$0xff]
        %v1379 = vld [vmem:[#allocation9 + $0x80] sm:$0xff]
        %v1380 = vld [vmem:[#allocation9 + $0x88] sm:$0xff]
        %v1381 = vld [vmem:[#allocation9 + $0x90] sm:$0xff]
        %v1382 = vld [vmem:[#allocation9 + $0x98] sm:$0xff]
        %v1383 = vld [vmem:[#allocation9 + $0xa0] sm:$0xff]
        %v1384 = vld [vmem:[#allocation9 + $0xa8] sm:$0xff]
        %v1385 = vld [vmem:[#allocation9 + $0xb0] sm:$0xff]
        %v1386 = vld [vmem:[#allocation9 + $0xb8] sm:$0xff]
        %v1387 = vld [vmem:[#allocation9 + $0xc0] sm:$0xff]
        %v1388 = vld [vmem:[#allocation9 + $0xc8] sm:$0xff]
        %v1389 = vld [vmem:[#allocation9 + $0xd0] sm:$0xff]
        %v1390 = vld [vmem:[#allocation9 + $0xd8] sm:$0xff]
        %v1391 = vld [vmem:[#allocation9 + $0xe0] sm:$0xff]
        %v1392 = vld [vmem:[#allocation9 + $0xe8] sm:$0xff]
        %v1393 = vld [vmem:[#allocation9 + $0xf0] sm:$0xff]
        %v1394 = vld [vmem:[#allocation9 + $0xf8] sm:$0xff]
        %v1395 = vld [vmem:[%s9] sm:$0xf]
        %v1397 = vlaneseq
        %v1398 = vshrl.u32 %v1397, 7
        %v1399 = vsub.s32 0, %v1398
        %v1400 = vrot.slane %v1395, %v1399
        %v1401 = vlaneseq
        %v1402 = vshrl.u32 %v1401, 7
        %v1403 = vsub.s32 1, %v1402
        %v1404 = vrot.slane %v1395, %v1403
        %v1405 = vlaneseq
        %v1406 = vshrl.u32 %v1405, 7
        %v1407 = vsub.s32 2, %v1406
        %v1408 = vrot.slane %v1395, %v1407
        %v1409 = vlaneseq
        %v1410 = vshrl.u32 %v1409, 7
        %v1411 = vsub.s32 3, %v1410
        %v1412 = vrot.slane %v1395, %v1411
        %v1449 = vunpack.c.l.b16 %v1363
        %v1450 = vunpack.c.h.b16 %v1363
        %v1451 = vunpack.c.l.b16 %v1364
        %v1452 = vunpack.c.h.b16 %v1364
        %v1453 = vunpack.c.l.b16 %v1365
        %v1454 = vunpack.c.h.b16 %v1365
        %v1455 = vunpack.c.l.b16 %v1366
        %v1456 = vunpack.c.h.b16 %v1366
        %v1457 = vunpack.c.l.b16 %v1367
        %v1458 = vunpack.c.h.b16 %v1367
        %v1459 = vunpack.c.l.b16 %v1368
        %v1460 = vunpack.c.h.b16 %v1368
        %v1461 = vunpack.c.l.b16 %v1369
        %v1462 = vunpack.c.h.b16 %v1369
        %v1463 = vunpack.c.l.b16 %v1370
        %v1464 = vunpack.c.h.b16 %v1370
        %v1465 = vunpack.c.l.b16 %v1371
        %v1466 = vunpack.c.h.b16 %v1371
        %v1467 = vunpack.c.l.b16 %v1372
        %v1468 = vunpack.c.h.b16 %v1372
        %v1469 = vunpack.c.l.b16 %v1373
        %v1470 = vunpack.c.h.b16 %v1373
        %v1471 = vunpack.c.l.b16 %v1374
        %v1472 = vunpack.c.h.b16 %v1374
        %v1473 = vunpack.c.l.b16 %v1375
        %v1474 = vunpack.c.h.b16 %v1375
        %v1475 = vunpack.c.l.b16 %v1376
        %v1476 = vunpack.c.h.b16 %v1376
        %v1477 = vunpack.c.l.b16 %v1377
        %v1478 = vunpack.c.h.b16 %v1377
        %v1479 = vunpack.c.l.b16 %v1378
        %v1480 = vunpack.c.h.b16 %v1378
        %v1481 = vunpack.c.l.b16 %v1379
        %v1482 = vunpack.c.h.b16 %v1379
        %v1483 = vunpack.c.l.b16 %v1380
        %v1484 = vunpack.c.h.b16 %v1380
        %v1485 = vunpack.c.l.b16 %v1381
        %v1486 = vunpack.c.h.b16 %v1381
        %v1487 = vunpack.c.l.b16 %v1382
        %v1488 = vunpack.c.h.b16 %v1382
        %v1489 = vunpack.c.l.b16 %v1383
        %v1490 = vunpack.c.h.b16 %v1383
        %v1491 = vunpack.c.l.b16 %v1384
        %v1492 = vunpack.c.h.b16 %v1384
        %v1493 = vunpack.c.l.b16 %v1385
        %v1494 = vunpack.c.h.b16 %v1385
        %v1495 = vunpack.c.l.b16 %v1386
        %v1496 = vunpack.c.h.b16 %v1386
        %v1497 = vunpack.c.l.b16 %v1387
        %v1498 = vunpack.c.h.b16 %v1387
        %v1499 = vunpack.c.l.b16 %v1388
        %v1500 = vunpack.c.h.b16 %v1388
        %v1501 = vunpack.c.l.b16 %v1389
        %v1502 = vunpack.c.h.b16 %v1389
        %v1503 = vunpack.c.l.b16 %v1390
        %v1504 = vunpack.c.h.b16 %v1390
        %v1505 = vunpack.c.l.b16 %v1391
        %v1506 = vunpack.c.h.b16 %v1391
        %v1507 = vunpack.c.l.b16 %v1392
        %v1508 = vunpack.c.h.b16 %v1392
        %v1509 = vunpack.c.l.b16 %v1393
        %v1510 = vunpack.c.h.b16 %v1393
        %v1511 = vunpack.c.l.b16 %v1394
        %v1512 = vunpack.c.h.b16 %v1394
        %v1513 = vpack.c.b16 %v1453, %v1449
        %v1514 = vpack.c.b16 %v1454, %v1450
        %v1515 = vpack.c.b16 %v1455, %v1451
        %v1516 = vpack.c.b16 %v1456, %v1452
        %v1517 = vpack.c.b16 %v1461, %v1457
        %v1518 = vpack.c.b16 %v1462, %v1458
        %v1519 = vpack.c.b16 %v1463, %v1459
        %v1520 = vpack.c.b16 %v1464, %v1460
        %v1521 = vpack.c.b16 %v1469, %v1465
        %v1522 = vpack.c.b16 %v1470, %v1466
        %v1523 = vpack.c.b16 %v1471, %v1467
        %v1524 = vpack.c.b16 %v1472, %v1468
        %v1525 = vpack.c.b16 %v1477, %v1473
        %v1526 = vpack.c.b16 %v1478, %v1474
        %v1527 = vpack.c.b16 %v1479, %v1475
        %v1528 = vpack.c.b16 %v1480, %v1476
        %v1529 = vpack.c.b16 %v1485, %v1481
        %v1530 = vpack.c.b16 %v1486, %v1482
        %v1531 = vpack.c.b16 %v1487, %v1483
        %v1532 = vpack.c.b16 %v1488, %v1484
        %v1533 = vpack.c.b16 %v1493, %v1489
        %v1534 = vpack.c.b16 %v1494, %v1490
        %v1535 = vpack.c.b16 %v1495, %v1491
        %v1536 = vpack.c.b16 %v1496, %v1492
        %v1537 = vpack.c.b16 %v1501, %v1497
        %v1538 = vpack.c.b16 %v1502, %v1498
        %v1539 = vpack.c.b16 %v1503, %v1499
        %v1540 = vpack.c.b16 %v1504, %v1500
        %v1541 = vpack.c.b16 %v1509, %v1505
        %v1542 = vpack.c.b16 %v1510, %v1506
        %v1543 = vpack.c.b16 %v1511, %v1507
        %v1544 = vpack.c.b16 %v1512, %v1508
        %1577 = vmatprep.subr.bf16.mxu0 %v1542
        %1578 = vmatpush1.bf16.msra.mxu0 %v1541
        %1579 = vmatprep.subr.bf16.mxu0 %v1538
        %1580 = vmatpush1.bf16.msra.mxu0 %v1537
        %1581 = vmatprep.subr.bf16.mxu0 %v1534
        %1582 = vmatpush1.bf16.msra.mxu0 %v1533
        %1583 = vmatprep.subr.bf16.mxu0 %v1530
        %1584 = vmatpush1.bf16.msra.mxu0 %v1529
        %1585 = vmatprep.subr.bf16.mxu0 %v1526
        %1586 = vmatpush1.bf16.msra.mxu0 %v1525
        %1587 = vmatprep.subr.bf16.mxu0 %v1522
        %1588 = vmatpush1.bf16.msra.mxu0 %v1521
        %1589 = vmatprep.subr.bf16.mxu0 %v1518
        %1590 = vmatpush1.bf16.msra.mxu0 %v1517
        %1591 = vmatprep.subr.bf16.mxu0 %v1514
        %1592 = vmatpush1.bf16.msra.mxu0 %v1513
        %1593 = vmatprep.subr.bf16.mxu0 0
        %1594 = vmatpush2.bf16.msra.mxu0 0
        %1595 = vmatprep.subr.bf16.mxu0 0
        %1596 = vmatpush2.bf16.msra.mxu0 0
        %1597 = vmatprep.subr.bf16.mxu0 0
        %1598 = vmatpush2.bf16.msra.mxu0 0
        %1599 = vmatprep.subr.bf16.mxu0 0
        %1600 = vmatpush2.bf16.msra.mxu0 0
        %1601 = vmatprep.subr.bf16.mxu0 0
        %1602 = vmatpush2.bf16.msra.mxu0 0
        %1603 = vmatprep.subr.bf16.mxu0 0
        %1604 = vmatpush2.bf16.msra.mxu0 0
        %1605 = vmatprep.subr.bf16.mxu0 0
        %1606 = vmatpush2.bf16.msra.mxu0 0
        %1607 = vmatprep.subr.bf16.mxu0 0
        %1608 = vmatpush2.bf16.msra.mxu0 0
        %1609 = vmatprep.mubr.bf16.mxu0 0
        %1610 = vmatmul.mubr.bf16.gmra.mxu0 %v1362
        %v1611 = vpop.f32.mrf.mxu0
        %v1612 = vadd.f32 %v1400, %v1611
        %v1613 = vpop.f32.mrf.mxu0
        %v1614 = vadd.f32 %v1404, %v1613
        %v1615 = vpop.f32.mrf.mxu0
        %v1616 = vpop.f32.mrf.mxu0
        %1617 = vdwg.mxu0
        %1618 = vmatprep.subr.bf16.mxu0 %v1544
        %1619 = vmatpush1.bf16.msra.mxu0 %v1543
        %1620 = vmatprep.subr.bf16.mxu0 %v1540
        %1621 = vmatpush1.bf16.msra.mxu0 %v1539
        %1622 = vmatprep.subr.bf16.mxu0 %v1536
        %1623 = vmatpush1.bf16.msra.mxu0 %v1535
        %1624 = vmatprep.subr.bf16.mxu0 %v1532
        %1625 = vmatpush1.bf16.msra.mxu0 %v1531
        %1626 = vmatprep.subr.bf16.mxu0 %v1528
        %1627 = vmatpush1.bf16.msra.mxu0 %v1527
        %1628 = vmatprep.subr.bf16.mxu0 %v1524
        %1629 = vmatpush1.bf16.msra.mxu0 %v1523
        %1630 = vmatprep.subr.bf16.mxu0 %v1520
        %1631 = vmatpush1.bf16.msra.mxu0 %v1519
        %1632 = vmatprep.subr.bf16.mxu0 %v1516
        %1633 = vmatpush1.bf16.msra.mxu0 %v1515
        %1634 = vmatprep.subr.bf16.mxu0 0
        %1635 = vmatpush2.bf16.msra.mxu0 0
        %1636 = vmatprep.subr.bf16.mxu0 0
        %1637 = vmatpush2.bf16.msra.mxu0 0
        %1638 = vmatprep.subr.bf16.mxu0 0
        %1639 = vmatpush2.bf16.msra.mxu0 0
        %1640 = vmatprep.subr.bf16.mxu0 0
        %1641 = vmatpush2.bf16.msra.mxu0 0
        %1642 = vmatprep.subr.bf16.mxu0 0
        %1643 = vmatpush2.bf16.msra.mxu0 0
        %1644 = vmatprep.subr.bf16.mxu0 0
        %1645 = vmatpush2.bf16.msra.mxu0 0
        %1646 = vmatprep.subr.bf16.mxu0 0
        %1647 = vmatpush2.bf16.msra.mxu0 0
        %1648 = vmatprep.subr.bf16.mxu0 0
        %1649 = vmatpush2.bf16.msra.mxu0 0
        %1650 = vmatprep.mubr.bf16.mxu0 0
        %1651 = vmatmul.mubr.bf16.gmra.mxu0 %v1362
        %v1652 = vpop.f32.mrf.mxu0
        %v1653 = vadd.f32 %v1408, %v1652
        %v1654 = vpop.f32.mrf.mxu0
        %v1655 = vadd.f32 %v1412, %v1654
        %v1656 = vpop.f32.mrf.mxu0
        %v1657 = vpop.f32.mrf.mxu0
        %1658 = vdwg.mxu0
        %v1659 = vmul.f32 %v1612, 0.5
        %v1660 = vmul.f32 %v1614, 0.5
        %v1661 = vmul.f32 %v1653, 0.5
        %v1662 = vmul.f32 %v1655, 0.5
        %v1663 = vmul.f32 %v1612, 0.70710677
        %v1664 = vmul.f32 %v1614, 0.70710677
        %v1665 = vmul.f32 %v1653, 0.70710677
        %v1666 = vmul.f32 %v1655, 0.70710677
        %v1667 = verf.f32.pop %v1663
        %v1668 = verf.f32.pop %v1664
        %v1669 = verf.f32.pop %v1665
        %v1670 = verf.f32.pop %v1666
        %v1671 = vadd.f32 %v1667, 1.0
        %v1672 = vadd.f32 %v1668, 1.0
        %v1673 = vadd.f32 %v1669, 1.0
        %v1674 = vadd.f32 %v1670, 1.0
        %v1675 = vmul.f32 %v1659, %v1671
        %v1676 = vmul.f32 %v1660, %v1672
        %v1677 = vmul.f32 %v1661, %v1673
        %v1678 = vmul.f32 %v1662, %v1674
        %v1679 = vpack.c.bf16 %v1675, %v1675
        %v1680 = vpack.c.bf16 %v1676, %v1676
        %v1681 = vpack.c.bf16 %v1677, %v1677
        %v1682 = vpack.c.bf16 %v1678, %v1678
        %v1683 = vld [vmem:[#allocation11] sm:$0xf]
        %v1684 = vld [vmem:[#allocation11 + $0x4] sm:$0xf]
        %v1685 = vld [vmem:[#allocation11 + $0x8] sm:$0xf]
        %v1686 = vld [vmem:[#allocation11 + $0xc] sm:$0xf]
        %v1687 = vld [vmem:[#allocation11 + $0x10] sm:$0xf]
        %v1688 = vld [vmem:[#allocation11 + $0x14] sm:$0xf]
        %v1689 = vld [vmem:[#allocation11 + $0x18] sm:$0xf]
        %v1690 = vld [vmem:[#allocation11 + $0x1c] sm:$0xf]
        %v1691 = vld [vmem:[#allocation11 + $0x20] sm:$0xf]
        %v1692 = vld [vmem:[#allocation11 + $0x24] sm:$0xf]
        %v1693 = vld [vmem:[#allocation11 + $0x28] sm:$0xf]
        %v1694 = vld [vmem:[#allocation11 + $0x2c] sm:$0xf]
        %v1695 = vld [vmem:[#allocation11 + $0x30] sm:$0xf]
        %v1696 = vld [vmem:[#allocation11 + $0x34] sm:$0xf]
        %v1697 = vld [vmem:[#allocation11 + $0x38] sm:$0xf]
        %v1698 = vld [vmem:[#allocation11 + $0x3c] sm:$0xf]
        %v1699 = vld [vmem:[#allocation11 + $0x40] sm:$0xf]
        %v1700 = vld [vmem:[#allocation11 + $0x44] sm:$0xf]
        %v1701 = vld [vmem:[#allocation11 + $0x48] sm:$0xf]
        %v1702 = vld [vmem:[#allocation11 + $0x4c] sm:$0xf]
        %v1703 = vld [vmem:[#allocation11 + $0x50] sm:$0xf]
        %v1704 = vld [vmem:[#allocation11 + $0x54] sm:$0xf]
        %v1705 = vld [vmem:[#allocation11 + $0x58] sm:$0xf]
        %v1706 = vld [vmem:[#allocation11 + $0x5c] sm:$0xf]
        %v1707 = vld [vmem:[#allocation11 + $0x60] sm:$0xf]
        %v1708 = vld [vmem:[#allocation11 + $0x64] sm:$0xf]
        %v1709 = vld [vmem:[#allocation11 + $0x68] sm:$0xf]
        %v1710 = vld [vmem:[#allocation11 + $0x6c] sm:$0xf]
        %v1711 = vld [vmem:[#allocation11 + $0x70] sm:$0xf]
        %v1712 = vld [vmem:[#allocation11 + $0x74] sm:$0xf]
        %v1713 = vld [vmem:[#allocation11 + $0x78] sm:$0xf]
        %v1714 = vld [vmem:[#allocation11 + $0x7c] sm:$0xf]
        %v1715 = vld [vmem:[#allocation11 + $0x80] sm:$0xf]
        %v1716 = vld [vmem:[#allocation11 + $0x84] sm:$0xf]
        %v1717 = vld [vmem:[#allocation11 + $0x88] sm:$0xf]
        %v1718 = vld [vmem:[#allocation11 + $0x8c] sm:$0xf]
        %v1719 = vld [vmem:[#allocation11 + $0x90] sm:$0xf]
        %v1720 = vld [vmem:[#allocation11 + $0x94] sm:$0xf]
        %v1721 = vld [vmem:[#allocation11 + $0x98] sm:$0xf]
        %v1722 = vld [vmem:[#allocation11 + $0x9c] sm:$0xf]
        %v1723 = vld [vmem:[#allocation11 + $0xa0] sm:$0xf]
        %v1724 = vld [vmem:[#allocation11 + $0xa4] sm:$0xf]
        %v1725 = vld [vmem:[#allocation11 + $0xa8] sm:$0xf]
        %v1726 = vld [vmem:[#allocation11 + $0xac] sm:$0xf]
        %v1727 = vld [vmem:[#allocation11 + $0xb0] sm:$0xf]
        %v1728 = vld [vmem:[#allocation11 + $0xb4] sm:$0xf]
        %v1729 = vld [vmem:[#allocation11 + $0xb8] sm:$0xf]
        %v1730 = vld [vmem:[#allocation11 + $0xbc] sm:$0xf]
        %v1731 = vld [vmem:[#allocation11 + $0xc0] sm:$0xf]
        %v1732 = vld [vmem:[#allocation11 + $0xc4] sm:$0xf]
        %v1733 = vld [vmem:[#allocation11 + $0xc8] sm:$0xf]
        %v1734 = vld [vmem:[#allocation11 + $0xcc] sm:$0xf]
        %v1735 = vld [vmem:[#allocation11 + $0xd0] sm:$0xf]
        %v1736 = vld [vmem:[#allocation11 + $0xd4] sm:$0xf]
        %v1737 = vld [vmem:[#allocation11 + $0xd8] sm:$0xf]
        %v1738 = vld [vmem:[#allocation11 + $0xdc] sm:$0xf]
        %v1739 = vld [vmem:[#allocation11 + $0xe0] sm:$0xf]
        %v1740 = vld [vmem:[#allocation11 + $0xe4] sm:$0xf]
        %v1741 = vld [vmem:[#allocation11 + $0xe8] sm:$0xf]
        %v1742 = vld [vmem:[#allocation11 + $0xec] sm:$0xf]
        %v1743 = vld [vmem:[#allocation11 + $0xf0] sm:$0xf]
        %v1744 = vld [vmem:[#allocation11 + $0xf4] sm:$0xf]
        %v1745 = vld [vmem:[#allocation11 + $0xf8] sm:$0xf]
        %v1746 = vld [vmem:[#allocation11 + $0xfc] sm:$0xf]
        %v1747 = vld [vmem:[%s11] sm:$0x1]
        %v1749 = vlaneseq
        %v1750 = vshrl.u32 %v1749, 7
        %v1751 = vsub.s32 0, %v1750
        %v1752 = vrot.slane %v1747, %v1751
        %v1818 = vunpack.c.l.b16 %v1683
        %v1819 = vunpack.c.l.b16 %v1684
        %v1820 = vunpack.c.l.b16 %v1685
        %v1821 = vunpack.c.l.b16 %v1686
        %v1822 = vunpack.c.l.b16 %v1687
        %v1823 = vunpack.c.l.b16 %v1688
        %v1824 = vunpack.c.l.b16 %v1689
        %v1825 = vunpack.c.l.b16 %v1690
        %v1826 = vunpack.c.l.b16 %v1691
        %v1827 = vunpack.c.l.b16 %v1692
        %v1828 = vunpack.c.l.b16 %v1693
        %v1829 = vunpack.c.l.b16 %v1694
        %v1830 = vunpack.c.l.b16 %v1695
        %v1831 = vunpack.c.l.b16 %v1696
        %v1832 = vunpack.c.l.b16 %v1697
        %v1833 = vunpack.c.l.b16 %v1698
        %v1834 = vunpack.c.l.b16 %v1699
        %v1835 = vunpack.c.l.b16 %v1700
        %v1836 = vunpack.c.l.b16 %v1701
        %v1837 = vunpack.c.l.b16 %v1702
        %v1838 = vunpack.c.l.b16 %v1703
        %v1839 = vunpack.c.l.b16 %v1704
        %v1840 = vunpack.c.l.b16 %v1705
        %v1841 = vunpack.c.l.b16 %v1706
        %v1842 = vunpack.c.l.b16 %v1707
        %v1843 = vunpack.c.l.b16 %v1708
        %v1844 = vunpack.c.l.b16 %v1709
        %v1845 = vunpack.c.l.b16 %v1710
        %v1846 = vunpack.c.l.b16 %v1711
        %v1847 = vunpack.c.l.b16 %v1712
        %v1848 = vunpack.c.l.b16 %v1713
        %v1849 = vunpack.c.l.b16 %v1714
        %v1850 = vunpack.c.l.b16 %v1715
        %v1851 = vunpack.c.l.b16 %v1716
        %v1852 = vunpack.c.l.b16 %v1717
        %v1853 = vunpack.c.l.b16 %v1718
        %v1854 = vunpack.c.l.b16 %v1719
        %v1855 = vunpack.c.l.b16 %v1720
        %v1856 = vunpack.c.l.b16 %v1721
        %v1857 = vunpack.c.l.b16 %v1722
        %v1858 = vunpack.c.l.b16 %v1723
        %v1859 = vunpack.c.l.b16 %v1724
        %v1860 = vunpack.c.l.b16 %v1725
        %v1861 = vunpack.c.l.b16 %v1726
        %v1862 = vunpack.c.l.b16 %v1727
        %v1863 = vunpack.c.l.b16 %v1728
        %v1864 = vunpack.c.l.b16 %v1729
        %v1865 = vunpack.c.l.b16 %v1730
        %v1866 = vunpack.c.l.b16 %v1731
        %v1867 = vunpack.c.l.b16 %v1732
        %v1868 = vunpack.c.l.b16 %v1733
        %v1869 = vunpack.c.l.b16 %v1734
        %v1870 = vunpack.c.l.b16 %v1735
        %v1871 = vunpack.c.l.b16 %v1736
        %v1872 = vunpack.c.l.b16 %v1737
        %v1873 = vunpack.c.l.b16 %v1738
        %v1874 = vunpack.c.l.b16 %v1739
        %v1875 = vunpack.c.l.b16 %v1740
        %v1876 = vunpack.c.l.b16 %v1741
        %v1877 = vunpack.c.l.b16 %v1742
        %v1878 = vunpack.c.l.b16 %v1743
        %v1879 = vunpack.c.l.b16 %v1744
        %v1880 = vunpack.c.l.b16 %v1745
        %v1881 = vunpack.c.l.b16 %v1746
        %v1882 = vpack.c.b16 %v1819, %v1818
        %v1883 = vpack.c.b16 %v1821, %v1820
        %v1884 = vpack.c.b16 %v1823, %v1822
        %v1885 = vpack.c.b16 %v1825, %v1824
        %v1886 = vpack.c.b16 %v1827, %v1826
        %v1887 = vpack.c.b16 %v1829, %v1828
        %v1888 = vpack.c.b16 %v1831, %v1830
        %v1889 = vpack.c.b16 %v1833, %v1832
        %v1890 = vpack.c.b16 %v1835, %v1834
        %v1891 = vpack.c.b16 %v1837, %v1836
        %v1892 = vpack.c.b16 %v1839, %v1838
        %v1893 = vpack.c.b16 %v1841, %v1840
        %v1894 = vpack.c.b16 %v1843, %v1842
        %v1895 = vpack.c.b16 %v1845, %v1844
        %v1896 = vpack.c.b16 %v1847, %v1846
        %v1897 = vpack.c.b16 %v1849, %v1848
        %v1898 = vpack.c.b16 %v1851, %v1850
        %v1899 = vpack.c.b16 %v1853, %v1852
        %v1900 = vpack.c.b16 %v1855, %v1854
        %v1901 = vpack.c.b16 %v1857, %v1856
        %v1902 = vpack.c.b16 %v1859, %v1858
        %v1903 = vpack.c.b16 %v1861, %v1860
        %v1904 = vpack.c.b16 %v1863, %v1862
        %v1905 = vpack.c.b16 %v1865, %v1864
        %v1906 = vpack.c.b16 %v1867, %v1866
        %v1907 = vpack.c.b16 %v1869, %v1868
        %v1908 = vpack.c.b16 %v1871, %v1870
        %v1909 = vpack.c.b16 %v1873, %v1872
        %v1910 = vpack.c.b16 %v1875, %v1874
        %v1911 = vpack.c.b16 %v1877, %v1876
        %v1912 = vpack.c.b16 %v1879, %v1878
        %v1913 = vpack.c.b16 %v1881, %v1880
        %1946 = vmatprep.subr.bf16.mxu0 0
        %1947 = vmatpush1.bf16.msra.mxu0 %v1889
        %1948 = vmatprep.subr.bf16.mxu0 0
        %1949 = vmatpush1.bf16.msra.mxu0 %v1888
        %1950 = vmatprep.subr.bf16.mxu0 0
        %1951 = vmatpush1.bf16.msra.mxu0 %v1887
        %1952 = vmatprep.subr.bf16.mxu0 0
        %1953 = vmatpush1.bf16.msra.mxu0 %v1886
        %1954 = vmatprep.subr.bf16.mxu0 0
        %1955 = vmatpush1.bf16.msra.mxu0 %v1885
        %1956 = vmatprep.subr.bf16.mxu0 0
        %1957 = vmatpush1.bf16.msra.mxu0 %v1884
        %1958 = vmatprep.subr.bf16.mxu0 0
        %1959 = vmatpush1.bf16.msra.mxu0 %v1883
        %1960 = vmatprep.subr.bf16.mxu0 0
        %1961 = vmatpush1.bf16.msra.mxu0 %v1882
        %1962 = vmatprep.subr.bf16.mxu0 0
        %1963 = vmatpush2.bf16.msra.mxu0 %v1897
        %1964 = vmatprep.subr.bf16.mxu0 0
        %1965 = vmatpush2.bf16.msra.mxu0 %v1896
        %1966 = vmatprep.subr.bf16.mxu0 0
        %1967 = vmatpush2.bf16.msra.mxu0 %v1895
        %1968 = vmatprep.subr.bf16.mxu0 0
        %1969 = vmatpush2.bf16.msra.mxu0 %v1894
        %1970 = vmatprep.subr.bf16.mxu0 0
        %1971 = vmatpush2.bf16.msra.mxu0 %v1893
        %1972 = vmatprep.subr.bf16.mxu0 0
        %1973 = vmatpush2.bf16.msra.mxu0 %v1892
        %1974 = vmatprep.subr.bf16.mxu0 0
        %1975 = vmatpush2.bf16.msra.mxu0 %v1891
        %1976 = vmatprep.subr.bf16.mxu0 0
        %1977 = vmatpush2.bf16.msra.mxu0 %v1890
        %1978 = vmatprep.mubr.bf16.mxu0 %v1680
        %1979 = vmatmul.mubr.bf16.gmra.mxu0 %v1679
        %v1980 = vpop.f32.mrf.mxu0
        %v1981 = vadd.f32 %v1752, %v1980
        %v1982 = vpop.f32.mrf.mxu0
        %v1983 = vpop.f32.mrf.mxu0
        %v1984 = vpop.f32.mrf.mxu0
        %1985 = vdwg.mxu0
        %1986 = vmatprep.subr.bf16.mxu0 0
        %1987 = vmatpush1.bf16.msra.mxu0 %v1905
        %1988 = vmatprep.subr.bf16.mxu0 0
        %1989 = vmatpush1.bf16.msra.mxu0 %v1904
        %1990 = vmatprep.subr.bf16.mxu0 0
        %1991 = vmatpush1.bf16.msra.mxu0 %v1903
        %1992 = vmatprep.subr.bf16.mxu0 0
        %1993 = vmatpush1.bf16.msra.mxu0 %v1902
        %1994 = vmatprep.subr.bf16.mxu0 0
        %1995 = vmatpush1.bf16.msra.mxu0 %v1901
        %1996 = vmatprep.subr.bf16.mxu0 0
        %1997 = vmatpush1.bf16.msra.mxu0 %v1900
        %1998 = vmatprep.subr.bf16.mxu0 0
        %1999 = vmatpush1.bf16.msra.mxu0 %v1899
        %2000 = vmatprep.subr.bf16.mxu0 0
        %2001 = vmatpush1.bf16.msra.mxu0 %v1898
        %2002 = vmatprep.subr.bf16.mxu0 0
        %2003 = vmatpush2.bf16.msra.mxu0 %v1913
        %2004 = vmatprep.subr.bf16.mxu0 0
        %2005 = vmatpush2.bf16.msra.mxu0 %v1912
        %2006 = vmatprep.subr.bf16.mxu0 0
        %2007 = vmatpush2.bf16.msra.mxu0 %v1911
        %2008 = vmatprep.subr.bf16.mxu0 0
        %2009 = vmatpush2.bf16.msra.mxu0 %v1910
        %2010 = vmatprep.subr.bf16.mxu0 0
        %2011 = vmatpush2.bf16.msra.mxu0 %v1909
        %2012 = vmatprep.subr.bf16.mxu0 0
        %2013 = vmatpush2.bf16.msra.mxu0 %v1908
        %2014 = vmatprep.subr.bf16.mxu0 0
        %2015 = vmatpush2.bf16.msra.mxu0 %v1907
        %2016 = vmatprep.subr.bf16.mxu0 0
        %2017 = vmatpush2.bf16.msra.mxu0 %v1906
        %2018 = vmatprep.mubr.bf16.mxu0 %v1682
        %2019 = vmatmul.mubr.bf16.gmra.mxu0 %v1681
        %v2020 = vpop.f32.mrf.mxu0
        %v2021 = vadd.f32 %v1981, %v2020
        %v2022 = vpop.f32.mrf.mxu0
        %v2023 = vpop.f32.mrf.mxu0
        %v2024 = vpop.f32.mrf.mxu0
        %2025 = vdwg.mxu0
        %v2026 = vadd.f32 %v1334, %v2021
        %2027 = vst [vmem:[%s486] sm:$0xff] %v2026
        %s2028 = sand.u32 %s296, 1
        %s2029 = scalar_lea.sflag [#allocation5], %s2028
        %s2030 = sand.u32 %s296, 1
        %s2031 = smul.addr %s2030, 8
        %s2032 = scalar_lea.vmem [#allocation12], %s2031
        // Predicated region
        $region89: #{tpu_custom_call.1} parent=67 // pred_check
          %p2033 = pneg %p306
        $region90: #{tpu_custom_call.1} parent=67 // pred_check_branch
          %2035 = sbr.rel (%p2033) target = $region92
        $region91: #{tpu_custom_call.1} parent=67 // pred_region
          %s2037 = ssub.s32 128, 128
          %2038 = vsyncadd %s2029, %s2037
          %s2039 = smul.addr %s31, 128
          %s2040 = scalar_lea.hbm %s12, %s2039
          %s2042 = sshll.u32 %s2032, 4
          %s2043 = int_to_ptr.vmem [resolvable:$true] %s2042
          %2045 = dma.vmem_to_hbm [thread:$0]  %s2043, 128, %s2040, %s2029
        $region92: #{tpu_custom_call.1} parent=67 // pred_fallthru
          _
      $region68: #{tpu_custom_call.1} parent=5 // pred_fallthru
        _
      %p2046 = scmp.le.s32.totalorder 2, %s26
      // Predicated region
      $region93: #{tpu_custom_call.1} parent=5 // pred_check
        %p2047 = pneg %p2046
      $region94: #{tpu_custom_call.1} parent=5 // pred_check_branch
        %2049 = sbr.rel (%p2047) target = $region96
      $region95: #{tpu_custom_call.1} parent=5 // pred_region
        %s2050 = ssub.s32 %s26, 2
        // Predicated region
        $region97: #{tpu_custom_call.1} parent=95 // pred_check
          %p2051 = pneg %p312
        $region98: #{tpu_custom_call.1} parent=95 // pred_check_branch
          %2053 = sbr.rel (%p2051) target = $region100
        $region99: #{tpu_custom_call.1} parent=95 // pred_region
          %s2054 = sand.u32 %s297, 1
          %s2055 = scalar_lea.sflag [#allocation5], %s2054
          %s2056 = sand.u32 %s297, 1
          %s2057 = smul.addr %s2056, 8
          %s2058 = scalar_lea.vmem [#allocation12], %s2057
          %2059 = dma.done %s2055, 128
        $region100: #{tpu_custom_call.1} parent=95 // pred_fallthru
          _
      $region96: #{tpu_custom_call.1} parent=5 // pred_fallthru
        _
    $region6: #{tpu_custom_call.1} parent=1 // loop_footer
      %s30 = sadd.s32 1, %s26
    $region7: #{tpu_custom_call.1} parent=1 // loop_footer_branch
      %25 = sbr.rel target = $region3
    $region8: #{tpu_custom_call.1} parent=1 // loop_exit
      _
    %2060 = vsyncpa [#allocation4], 1
    %s2061 = scalar_lea.sflag [#allocation4], 1
    %2062 = vsyncpa %s2061, 1
    %2063 = vsyncpa [#allocation7], 1
    %2064 = vsyncpa [#allocation10], 1
    %2065 = vsyncpa [#allocation5], 1
    %s2066 = scalar_lea.sflag [#allocation5], 1
    %2067 = vsyncpa %s2066, 1

</llo_original>
